<compile_context>
chip_gen: v7x
topology: tpu7x:2x2x1
jax: 0.10.0
libtpu: 0.0.40
codegen_flags: <defaults>
</compile_context>

<pallas_src>
import math

import numpy as np

import jax
import jax.numpy as jnp
from jax.experimental import pallas as pl
from jax.experimental.pallas import tpu as pltpu


# Conv trunk config: (out_channels, kernel, stride) — matches DQNBase.
_LAYERS = ((16, 3, 3), (64, 3, 2), (128, 3, 2), (256, 3, 2))
_BT = 8          # batch elements fused per grid step (multiple of 8 -> sublane aligned)


# ------------------------------ Pallas kernel ------------------------------ #

def _dqn_trunk_kernel(p_ref, w1_ref, b1_ref, w2_ref, b2_ref,
                      g3_ref, w3_ref, b3_ref, w4_ref, b4_ref, o_ref):
    """Whole DQNBase trunk for BT batch elements; everything stays in VMEM."""
    f32, bf16 = jnp.float32, jnp.bfloat16
    bt = o_ref.shape[0]                       # batch elements in this step
    taps3 = g3_ref.shape[0]                   # 9 layer-3 taps
    s3 = g3_ref.shape[1] // bt                # layer-3 spatial positions (9)

    # -- layer 1 (block-diag weight computes all 9 layer-2 taps at once) ----- #
    y = jnp.dot(p_ref[...], w1_ref[...], preferred_element_type=f32)
    y = jnp.maximum(y + b1_ref[...], 0.0)                      # (bt*49, 144) f32

    # -- layer 2: patch matrix already along lanes -> one matmul ------------- #
    y = jnp.dot(y.astype(bf16), w2_ref[...], preferred_element_type=f32)
    y = jnp.maximum(y + b2_ref[...], 0.0).astype(bf16)         # (bt*49, 64)

    # -- layer-3 im2col: one 0/1 gather matmul per tap (exact in bf16) ------- #
    taps = [jnp.dot(g3_ref[t], y, preferred_element_type=f32).astype(bf16)
            for t in range(taps3)]
    p3 = jnp.concatenate(taps, axis=-1)                        # (bt*9, 576)

    # -- layer 3 -------------------------------------------------------------- #
    y = jnp.dot(p3, w3_ref[...], preferred_element_type=f32)
    y = jnp.maximum(y + b3_ref[...], 0.0)                      # (bt*9, 128) f32

    # -- layer 4: 1x1 output -> flatten spatial row-blocks onto lanes -------- #
    p4 = jnp.concatenate([y[j * bt:(j + 1) * bt, :] for j in range(s3)],
                         axis=-1)                              # (bt, 1152) f32
    y = jnp.dot(p4.astype(bf16), w4_ref[...], preferred_element_type=f32)
    y = jnp.maximum(y + b4_ref[...], 0.0)                      # (bt, 256) f32

    # AdaptiveAvgPool2d(1) over a 1x1 map + Flatten == identity.
    o_ref[...] = y.astype(o_ref.dtype)


def _dqn_trunk_pallas(patches, consts, bt, s2):
    """patches: (B_pad*S2, 324) bf16; consts: (w1blk,b1t, w2,b2, g3, w3,b3, w4,b4)."""
    rows, kdim = patches.shape
    feat = consts[-2].shape[1]                # w4: (1152, 256)
    n_blocks = rows // (bt * s2)

    def const_spec(a):
        idx = (0,) * a.ndim
        return pl.BlockSpec(a.shape, lambda b, idx=idx: idx)   # same block every step

    in_specs = [pl.BlockSpec((bt * s2, kdim), lambda b: (b, 0))]
    in_specs += [const_spec(a) for a in consts]

    return pl.pallas_call(
        _dqn_trunk_kernel,
        out_shape=jax.ShapeDtypeStruct((n_blocks * bt, feat), jnp.float32),
        grid_spec=pltpu.PrefetchScalarGridSpec(
            num_scalar_prefetch=0,
            grid=(n_blocks,),
            in_specs=in_specs,
            out_specs=pl.BlockSpec((bt, feat), lambda b: (b, 0)),
        ),
        compiler_params=pltpu.CompilerParams(
            dimension_semantics=("parallel",)),
    )(patches, *consts)


# ------------------------------ JAX wrapper -------------------------------- #

@jax.jit
def dqn_base_forward(states_nchw, params):
    """DQNBase.forward: states (B, C, H, W) f32 -> features (B, 256) f32."""
    B, C, H, W = states_nchw.shape
    (_, k1, st1), (_, k2, st2) = _LAYERS[0], _LAYERS[1]
    h1, w1 = (H - k1) // st1 + 1, (W - k1) // st1 + 1
    h2, w2 = (h1 - k2) // st2 + 1, (w1 - k2) // st2 + 1
    s2 = h2 * w2

    g3 = params[4]
    bt = g3.shape[2] // s2
    b_pad = ((B + bt - 1) // bt) * bt

    x = states_nchw.astype(jnp.float32)
    if b_pad != B:                                   # zero-pad batch; padded rows never
        x = jnp.pad(x, ((0, b_pad - B), (0, 0), (0, 0), (0, 0)))   # mix with real ones

    # layer-1 patchify: kernel == stride -> pure reshape + ONE transpose, cast bf16.
    x = x[:, :, :h1 * k1, :w1 * k1]
    x = x.reshape(b_pad, C, h1, k1, w1, k1).transpose(0, 2, 4, 3, 5, 1)
    x = x.reshape(b_pad, h1 * w1, k1 * k1 * C).astype(jnp.bfloat16)

    # Duplicate layer-1 patches into layer-2 (position, tap) order; the 9 taps land
    # concatenated along the feature axis -> rows of shape 324 feed the kernel.
    oh = np.arange(h2)[:, None, None, None]
    ow = np.arange(w2)[None, :, None, None]
    kk = np.arange(k2)
    idx = ((st2 * oh + kk[None, None, :, None]) * w1
           + (st2 * ow + kk[None, None, None, :])).reshape(-1).astype(np.int32)
    x = jnp.take(x, idx, axis=1)                                 # (b_pad, 441, 36)
    x = x.reshape(b_pad * s2, k2 * k2 * k1 * k1 * C)             # (b_pad*49, 324)

    out = _dqn_trunk_pallas(x, params, bt, s2)
    return out[:B]


# --------------------------- parameter handling ----------------------------- #

def kaiming_uniform_conv(key, shape_oihw):
    # torch.nn.init.kaiming_uniform_ defaults: a=0, fan_in, gain=sqrt(2)
    oc, ic, kh, kw = shape_oihw
    bound = math.sqrt(6.0 / (ic * kh * kw))
    return jax.random.uniform(key, shape_oihw, jnp.float32, -bound, bound)


def make_raw_params(key, num_channels):
    """PyTorch-style conv weights (OIHW) + zero biases, He-uniform init."""
    params, ic = [], num_channels
    for i, (oc, k, s) in enumerate(_LAYERS):
        w = kaiming_uniform_conv(jax.random.fold_in(key, i), (oc, ic, k, k))
        b = jnp.zeros((oc,), jnp.float32)
        params.append((w, b, k, s))
        ic = oc
    return params


def _wT(w_oihw):
    """(OC, IC, KH, KW) -> ((kh, kw, ic), OC) im2col weight layout."""
    oc, ic, kh, kw = w_oihw.shape
    return jnp.transpose(w_oihw, (2, 3, 1, 0)).reshape(kh * kw * ic, oc)


def prepare_params(raw_params, in_hw, bt=_BT):
    """Precompute (once) kernel-ready bf16 weights + layer-3 gather matrices."""
    (w1, b1, k1, st1), (w2, b2, k2, st2), (w3, b3, k3, st3), (w4, b4, k4, st4) = raw_params
    H, W = in_hw
    assert k1 == st1, "layer-1 patchify relies on kernel == stride"
    h1, w1s = (H - k1) // st1 + 1, (W - k1) // st1 + 1
    h2, w2s = (h1 - k2) // st2 + 1, (w1s - k2) // st2 + 1
    h3, w3s = (h2 - k3) // st3 + 1, (w2s - k3) // st3 + 1
    h4, w4s = (h3 - k4) // st4 + 1, (w3s - k4) // st4 + 1
    assert (h4, w4s) == (1, 1) and (h3, w3s) == (k4, k4), (
        "kernel specialised to a 1x1 layer-4 output (e.g. 48x48 inputs)")
    s2 = h2 * w2s

    # Layer-1 weight as a block-diagonal (9*36, 9*16): one block per layer-2 tap,
    # so one matmul produces conv2's im2col patch matrix directly along lanes.
    w1m = _wT(w1)
    kin, kout = w1m.shape
    t2 = k2 * k2
    w1blk = jnp.zeros((t2 * kin, t2 * kout), jnp.float32)
    for t in range(t2):
        w1blk = w1blk.at[t * kin:(t + 1) * kin, t * kout:(t + 1) * kout].set(w1m)
    b1t = jnp.tile(b1.reshape(1, -1), (1, t2)).astype(jnp.float32)

    # Layer-3 im2col gather matrices: per tap, block-diagonal over the BT folded
    # batch, rows ordered (spatial position, batch) so layer 4 can slice contiguous
    # row blocks.  0/1 entries are exact in bf16.
    oh = np.arange(h3)[:, None]
    ow = np.arange(w3s)[None, :]
    g3 = []
    for kh in range(k3):
        for kw in range(k3):
            src = ((st3 * oh + kh) * w2s + (st3 * ow + kw)).reshape(-1)     # (9,)
            cols = (np.arange(bt)[None, :] * s2 + src[:, None]).reshape(-1)
            g3.append(jax.nn.one_hot(cols, bt * s2, dtype=jnp.bfloat16))
    g3 = jnp.stack(g3, 0)                                     # (9, bt*9, bt*49)

    return (w1blk.astype(jnp.bfloat16), b1t,
            _wT(w2).astype(jnp.bfloat16), b2.reshape(1, -1).astype(jnp.float32),
            g3,
            _wT(w3).astype(jnp.bfloat16), b3.reshape(1, -1).astype(jnp.float32),
            _wT(w4).astype(jnp.bfloat16), b4.reshape(1, -1).astype(jnp.float32))


# --------------------------------- main ------------------------------------- #

if __name__ == "__main__":
    key = jax.random.PRNGKey(0)
    k_x, k_w = jax.random.split(key)

    num_channels, B, H, W = 4, 2, 48, 48        # spatial: 48 -> 16 -> 7 -> 3 -> 1
    states = jax.random.normal(k_x, (B, num_channels, H, W), jnp.float32)

    raw = make_raw_params(k_w, num_channels)
    params = prepare_params(raw, (H, W), bt=_BT)

    out = jax.block_until_ready(dqn_base_forward(states, params))
    assert out.shape == (B, 256), out.shape

    # Pure-JAX reference: lax.conv chain with matching bf16-operand / f32-acc numerics.
    ref = states
    for w_oihw, b, _, s in raw:
        ref = jax.lax.conv_general_dilated(
            ref.astype(jnp.bfloat16), w_oihw.astype(jnp.bfloat16), (s, s), "VALID",
            dimension_numbers=("NCHW", "OIHW", "NCHW"),
            preferred_element_type=jnp.float32)
        ref = jnp.maximum(ref + b[None, :, None, None], 0.0)
    ref = jnp.mean(ref, axis=(2, 3))

    assert bool(jnp.all(jnp.isfinite(out)))
    max_err = float(jnp.max(jnp.abs(out - ref)))
    assert jnp.allclose(out, ref, atol=2e-2, rtol=2e-2), max_err

    print("KERNEL_OK")
</pallas_src>

<mosaic_0001>
module attributes {stable_mosaic.version = 11 : i64} {
  func.func @_dqn_trunk_kernel(%arg0: i32, %arg1: memref<392x324xbf16, #tpu.memory_space<vmem>>, %arg2: memref<324x144xbf16, #tpu.memory_space<vmem>>, %arg3: memref<1x144xf32, #tpu.memory_space<vmem>>, %arg4: memref<144x64xbf16, #tpu.memory_space<vmem>>, %arg5: memref<1x64xf32, #tpu.memory_space<vmem>>, %arg6: memref<9x72x392xbf16, #tpu.memory_space<vmem>>, %arg7: memref<576x128xbf16, #tpu.memory_space<vmem>>, %arg8: memref<1x128xf32, #tpu.memory_space<vmem>>, %arg9: memref<1152x256xbf16, #tpu.memory_space<vmem>>, %arg10: memref<1x256xf32, #tpu.memory_space<vmem>>, %arg11: memref<8x256xf32, #tpu.memory_space<vmem>>) attributes {dimension_semantics = [#tpu.dimension_semantics<parallel>], iteration_bounds = array<i64: 1>, scalar_prefetch = 0 : i64, scratch_operands = 0 : i64, tpu.core_type = #tpu.core_type<tc>, window_params = [{transform_indices = @transform_0, window_bounds = array<i64: 392, 324>}, {pipeline_mode = #tpu.pipeline_mode<synchronous>, transform_indices = @transform_1, window_bounds = array<i64: 324, 144>}, {pipeline_mode = #tpu.pipeline_mode<synchronous>, transform_indices = @transform_2, window_bounds = array<i64: 1, 144>}, {pipeline_mode = #tpu.pipeline_mode<synchronous>, transform_indices = @transform_3, window_bounds = array<i64: 144, 64>}, {pipeline_mode = #tpu.pipeline_mode<synchronous>, transform_indices = @transform_4, window_bounds = array<i64: 1, 64>}, {pipeline_mode = #tpu.pipeline_mode<synchronous>, transform_indices = @transform_5, window_bounds = array<i64: 9, 72, 392>}, {pipeline_mode = #tpu.pipeline_mode<synchronous>, transform_indices = @transform_6, window_bounds = array<i64: 576, 128>}, {pipeline_mode = #tpu.pipeline_mode<synchronous>, transform_indices = @transform_7, window_bounds = array<i64: 1, 128>}, {pipeline_mode = #tpu.pipeline_mode<synchronous>, transform_indices = @transform_8, window_bounds = array<i64: 1152, 256>}, {pipeline_mode = #tpu.pipeline_mode<synchronous>, transform_indices = @transform_9, window_bounds = array<i64: 1, 256>}, {transform_indices = @transform_10, window_bounds = array<i64: 8, 256>}]} {
    %c0 = arith.constant 0 : index
    %c0_0 = arith.constant 0 : index
    %0 = vector.load %arg1[%c0, %c0_0] : memref<392x324xbf16, #tpu.memory_space<vmem>>, vector<392x324xbf16>
    %c0_1 = arith.constant 0 : index
    %c0_2 = arith.constant 0 : index
    %1 = vector.load %arg2[%c0_1, %c0_2] : memref<324x144xbf16, #tpu.memory_space<vmem>>, vector<324x144xbf16>
    %cst = arith.constant dense<0.000000e+00> : vector<392x144xf32>
    %2 = tpu.matmul %0, %1, %cst {dimension_numbers = #tpu.dot_dimension_numbers<[1], [0], [0], [1], [0, 0, 1, 1], [], []>} : vector<392x324xbf16>, vector<324x144xbf16>, vector<392x144xf32> -> vector<392x144xf32>
    %c0_3 = arith.constant 0 : index
    %c0_4 = arith.constant 0 : index
    %3 = vector.load %arg3[%c0_3, %c0_4] : memref<1x144xf32, #tpu.memory_space<vmem>>, vector<1x144xf32>
    %4 = vector.broadcast %3 : vector<1x144xf32> to vector<392x144xf32>
    %5 = arith.addf %2, %4 : vector<392x144xf32>
    %cst_5 = arith.constant 0.000000e+00 : f32
    %6 = vector.broadcast %cst_5 : f32 to vector<392x144xf32>
    %7 = arith.maximumf %5, %6 : vector<392x144xf32>
    %8 = arith.truncf %7 : vector<392x144xf32> to vector<392x144xbf16>
    %c0_6 = arith.constant 0 : index
    %c0_7 = arith.constant 0 : index
    %9 = vector.load %arg4[%c0_6, %c0_7] : memref<144x64xbf16, #tpu.memory_space<vmem>>, vector<144x64xbf16>
    %cst_8 = arith.constant dense<0.000000e+00> : vector<392x64xf32>
    %10 = tpu.matmul %8, %9, %cst_8 {dimension_numbers = #tpu.dot_dimension_numbers<[1], [0], [0], [1], [0, 0, 1, 1], [], []>} : vector<392x144xbf16>, vector<144x64xbf16>, vector<392x64xf32> -> vector<392x64xf32>
    %c0_9 = arith.constant 0 : index
    %c0_10 = arith.constant 0 : index
    %11 = vector.load %arg5[%c0_9, %c0_10] : memref<1x64xf32, #tpu.memory_space<vmem>>, vector<1x64xf32>
    %12 = vector.broadcast %11 : vector<1x64xf32> to vector<392x64xf32>
    %13 = arith.addf %10, %12 : vector<392x64xf32>
    %cst_11 = arith.constant 0.000000e+00 : f32
    %14 = vector.broadcast %cst_11 : f32 to vector<392x64xf32>
    %15 = arith.maximumf %13, %14 : vector<392x64xf32>
    %16 = arith.truncf %15 : vector<392x64xf32> to vector<392x64xbf16>
    %c0_12 = arith.constant 0 : index
    %c0_13 = arith.constant 0 : index
    %c0_14 = arith.constant 0 : index
    %17 = vector.load %arg6[%c0_12, %c0_13, %c0_14] : memref<9x72x392xbf16, #tpu.memory_space<vmem>>, vector<1x72x392xbf16>
    %18 = vector.shape_cast %17 : vector<1x72x392xbf16> to vector<72x392xbf16>
    %cst_15 = arith.constant dense<0.000000e+00> : vector<72x64xf32>
    %19 = tpu.matmul %18, %16, %cst_15 {dimension_numbers = #tpu.dot_dimension_numbers<[1], [0], [0], [1], [0, 0, 1, 1], [], []>} : vector<72x392xbf16>, vector<392x64xbf16>, vector<72x64xf32> -> vector<72x64xf32>
    %20 = arith.truncf %19 : vector<72x64xf32> to vector<72x64xbf16>
    %c1 = arith.constant 1 : index
    %c0_16 = arith.constant 0 : index
    %c0_17 = arith.constant 0 : index
    %21 = vector.load %arg6[%c1, %c0_16, %c0_17] : memref<9x72x392xbf16, #tpu.memory_space<vmem>>, vector<1x72x392xbf16>
    %22 = vector.shape_cast %21 : vector<1x72x392xbf16> to vector<72x392xbf16>
    %cst_18 = arith.constant dense<0.000000e+00> : vector<72x64xf32>
    %23 = tpu.matmul %22, %16, %cst_18 {dimension_numbers = #tpu.dot_dimension_numbers<[1], [0], [0], [1], [0, 0, 1, 1], [], []>} : vector<72x392xbf16>, vector<392x64xbf16>, vector<72x64xf32> -> vector<72x64xf32>
    %24 = arith.truncf %23 : vector<72x64xf32> to vector<72x64xbf16>
    %c2 = arith.constant 2 : index
    %c0_19 = arith.constant 0 : index
    %c0_20 = arith.constant 0 : index
    %25 = vector.load %arg6[%c2, %c0_19, %c0_20] : memref<9x72x392xbf16, #tpu.memory_space<vmem>>, vector<1x72x392xbf16>
    %26 = vector.shape_cast %25 : vector<1x72x392xbf16> to vector<72x392xbf16>
    %cst_21 = arith.constant dense<0.000000e+00> : vector<72x64xf32>
    %27 = tpu.matmul %26, %16, %cst_21 {dimension_numbers = #tpu.dot_dimension_numbers<[1], [0], [0], [1], [0, 0, 1, 1], [], []>} : vector<72x392xbf16>, vector<392x64xbf16>, vector<72x64xf32> -> vector<72x64xf32>
    %28 = arith.truncf %27 : vector<72x64xf32> to vector<72x64xbf16>
    %c3 = arith.constant 3 : index
    %c0_22 = arith.constant 0 : index
    %c0_23 = arith.constant 0 : index
    %29 = vector.load %arg6[%c3, %c0_22, %c0_23] : memref<9x72x392xbf16, #tpu.memory_space<vmem>>, vector<1x72x392xbf16>
    %30 = vector.shape_cast %29 : vector<1x72x392xbf16> to vector<72x392xbf16>
    %cst_24 = arith.constant dense<0.000000e+00> : vector<72x64xf32>
    %31 = tpu.matmul %30, %16, %cst_24 {dimension_numbers = #tpu.dot_dimension_numbers<[1], [0], [0], [1], [0, 0, 1, 1], [], []>} : vector<72x392xbf16>, vector<392x64xbf16>, vector<72x64xf32> -> vector<72x64xf32>
    %32 = arith.truncf %31 : vector<72x64xf32> to vector<72x64xbf16>
    %c4 = arith.constant 4 : index
    %c0_25 = arith.constant 0 : index
    %c0_26 = arith.constant 0 : index
    %33 = vector.load %arg6[%c4, %c0_25, %c0_26] : memref<9x72x392xbf16, #tpu.memory_space<vmem>>, vector<1x72x392xbf16>
    %34 = vector.shape_cast %33 : vector<1x72x392xbf16> to vector<72x392xbf16>
    %cst_27 = arith.constant dense<0.000000e+00> : vector<72x64xf32>
    %35 = tpu.matmul %34, %16, %cst_27 {dimension_numbers = #tpu.dot_dimension_numbers<[1], [0], [0], [1], [0, 0, 1, 1], [], []>} : vector<72x392xbf16>, vector<392x64xbf16>, vector<72x64xf32> -> vector<72x64xf32>
    %36 = arith.truncf %35 : vector<72x64xf32> to vector<72x64xbf16>
    %c5 = arith.constant 5 : index
    %c0_28 = arith.constant 0 : index
    %c0_29 = arith.constant 0 : index
    %37 = vector.load %arg6[%c5, %c0_28, %c0_29] : memref<9x72x392xbf16, #tpu.memory_space<vmem>>, vector<1x72x392xbf16>
    %38 = vector.shape_cast %37 : vector<1x72x392xbf16> to vector<72x392xbf16>
    %cst_30 = arith.constant dense<0.000000e+00> : vector<72x64xf32>
    %39 = tpu.matmul %38, %16, %cst_30 {dimension_numbers = #tpu.dot_dimension_numbers<[1], [0], [0], [1], [0, 0, 1, 1], [], []>} : vector<72x392xbf16>, vector<392x64xbf16>, vector<72x64xf32> -> vector<72x64xf32>
    %40 = arith.truncf %39 : vector<72x64xf32> to vector<72x64xbf16>
    %c6 = arith.constant 6 : index
    %c0_31 = arith.constant 0 : index
    %c0_32 = arith.constant 0 : index
    %41 = vector.load %arg6[%c6, %c0_31, %c0_32] : memref<9x72x392xbf16, #tpu.memory_space<vmem>>, vector<1x72x392xbf16>
    %42 = vector.shape_cast %41 : vector<1x72x392xbf16> to vector<72x392xbf16>
    %cst_33 = arith.constant dense<0.000000e+00> : vector<72x64xf32>
    %43 = tpu.matmul %42, %16, %cst_33 {dimension_numbers = #tpu.dot_dimension_numbers<[1], [0], [0], [1], [0, 0, 1, 1], [], []>} : vector<72x392xbf16>, vector<392x64xbf16>, vector<72x64xf32> -> vector<72x64xf32>
    %44 = arith.truncf %43 : vector<72x64xf32> to vector<72x64xbf16>
    %c7 = arith.constant 7 : index
    %c0_34 = arith.constant 0 : index
    %c0_35 = arith.constant 0 : index
    %45 = vector.load %arg6[%c7, %c0_34, %c0_35] : memref<9x72x392xbf16, #tpu.memory_space<vmem>>, vector<1x72x392xbf16>
    %46 = vector.shape_cast %45 : vector<1x72x392xbf16> to vector<72x392xbf16>
    %cst_36 = arith.constant dense<0.000000e+00> : vector<72x64xf32>
    %47 = tpu.matmul %46, %16, %cst_36 {dimension_numbers = #tpu.dot_dimension_numbers<[1], [0], [0], [1], [0, 0, 1, 1], [], []>} : vector<72x392xbf16>, vector<392x64xbf16>, vector<72x64xf32> -> vector<72x64xf32>
    %48 = arith.truncf %47 : vector<72x64xf32> to vector<72x64xbf16>
    %c8 = arith.constant 8 : index
    %c0_37 = arith.constant 0 : index
    %c0_38 = arith.constant 0 : index
    %49 = vector.load %arg6[%c8, %c0_37, %c0_38] : memref<9x72x392xbf16, #tpu.memory_space<vmem>>, vector<1x72x392xbf16>
    %50 = vector.shape_cast %49 : vector<1x72x392xbf16> to vector<72x392xbf16>
    %cst_39 = arith.constant dense<0.000000e+00> : vector<72x64xf32>
    %51 = tpu.matmul %50, %16, %cst_39 {dimension_numbers = #tpu.dot_dimension_numbers<[1], [0], [0], [1], [0, 0, 1, 1], [], []>} : vector<72x392xbf16>, vector<392x64xbf16>, vector<72x64xf32> -> vector<72x64xf32>
    %52 = arith.truncf %51 : vector<72x64xf32> to vector<72x64xbf16>
    %53 = tpu.concatenate %20, %24, %28, %32, %36, %40, %44, %48, %52 in 1 : vector<72x64xbf16>, vector<72x64xbf16>, vector<72x64xbf16>, vector<72x64xbf16>, vector<72x64xbf16>, vector<72x64xbf16>, vector<72x64xbf16>, vector<72x64xbf16>, vector<72x64xbf16> -> vector<72x576xbf16>
    %c0_40 = arith.constant 0 : index
    %c0_41 = arith.constant 0 : index
    %54 = vector.load %arg7[%c0_40, %c0_41] : memref<576x128xbf16, #tpu.memory_space<vmem>>, vector<576x128xbf16>
    %cst_42 = arith.constant dense<0.000000e+00> : vector<72x128xf32>
    %55 = tpu.matmul %53, %54, %cst_42 {dimension_numbers = #tpu.dot_dimension_numbers<[1], [0], [0], [1], [0, 0, 1, 1], [], []>} : vector<72x576xbf16>, vector<576x128xbf16>, vector<72x128xf32> -> vector<72x128xf32>
    %c0_43 = arith.constant 0 : index
    %c0_44 = arith.constant 0 : index
    %56 = vector.load %arg8[%c0_43, %c0_44] : memref<1x128xf32, #tpu.memory_space<vmem>>, vector<1x128xf32>
    %57 = vector.broadcast %56 : vector<1x128xf32> to vector<72x128xf32>
    %58 = arith.addf %55, %57 : vector<72x128xf32>
    %cst_45 = arith.constant 0.000000e+00 : f32
    %59 = vector.broadcast %cst_45 : f32 to vector<72x128xf32>
    %60 = arith.maximumf %58, %59 : vector<72x128xf32>
    %61 = vector.extract_strided_slice %60 {offsets = [0, 0], sizes = [8, 128], strides = [1, 1]} : vector<72x128xf32> to vector<8x128xf32>
    %62 = vector.extract_strided_slice %60 {offsets = [8, 0], sizes = [8, 128], strides = [1, 1]} : vector<72x128xf32> to vector<8x128xf32>
    %63 = vector.extract_strided_slice %60 {offsets = [16, 0], sizes = [8, 128], strides = [1, 1]} : vector<72x128xf32> to vector<8x128xf32>
    %64 = vector.extract_strided_slice %60 {offsets = [24, 0], sizes = [8, 128], strides = [1, 1]} : vector<72x128xf32> to vector<8x128xf32>
    %65 = vector.extract_strided_slice %60 {offsets = [32, 0], sizes = [8, 128], strides = [1, 1]} : vector<72x128xf32> to vector<8x128xf32>
    %66 = vector.extract_strided_slice %60 {offsets = [40, 0], sizes = [8, 128], strides = [1, 1]} : vector<72x128xf32> to vector<8x128xf32>
    %67 = vector.extract_strided_slice %60 {offsets = [48, 0], sizes = [8, 128], strides = [1, 1]} : vector<72x128xf32> to vector<8x128xf32>
    %68 = vector.extract_strided_slice %60 {offsets = [56, 0], sizes = [8, 128], strides = [1, 1]} : vector<72x128xf32> to vector<8x128xf32>
    %69 = vector.extract_strided_slice %60 {offsets = [64, 0], sizes = [8, 128], strides = [1, 1]} : vector<72x128xf32> to vector<8x128xf32>
    %70 = tpu.concatenate %61, %62, %63, %64, %65, %66, %67, %68, %69 in 1 : vector<8x128xf32>, vector<8x128xf32>, vector<8x128xf32>, vector<8x128xf32>, vector<8x128xf32>, vector<8x128xf32>, vector<8x128xf32>, vector<8x128xf32>, vector<8x128xf32> -> vector<8x1152xf32>
    %71 = arith.truncf %70 : vector<8x1152xf32> to vector<8x1152xbf16>
    %c0_46 = arith.constant 0 : index
    %c0_47 = arith.constant 0 : index
    %72 = vector.load %arg9[%c0_46, %c0_47] : memref<1152x256xbf16, #tpu.memory_space<vmem>>, vector<1152x256xbf16>
    %cst_48 = arith.constant dense<0.000000e+00> : vector<8x256xf32>
    %73 = tpu.matmul %71, %72, %cst_48 {dimension_numbers = #tpu.dot_dimension_numbers<[1], [0], [0], [1], [0, 0, 1, 1], [], []>} : vector<8x1152xbf16>, vector<1152x256xbf16>, vector<8x256xf32> -> vector<8x256xf32>
    %c0_49 = arith.constant 0 : index
    %c0_50 = arith.constant 0 : index
    %74 = vector.load %arg10[%c0_49, %c0_50] : memref<1x256xf32, #tpu.memory_space<vmem>>, vector<1x256xf32>
    %75 = vector.broadcast %74 : vector<1x256xf32> to vector<8x256xf32>
    %76 = arith.addf %73, %75 : vector<8x256xf32>
    %cst_51 = arith.constant 0.000000e+00 : f32
    %77 = vector.broadcast %cst_51 : f32 to vector<8x256xf32>
    %78 = arith.maximumf %76, %77 : vector<8x256xf32>
    %c0_52 = arith.constant 0 : index
    %c0_53 = arith.constant 0 : index
    %79 = vector.load %arg11[%c0_52, %c0_53] : memref<8x256xf32, #tpu.memory_space<vmem>>, vector<8x256xf32>
    tpu.vector_store %arg11[%c0_52, %c0_53], %78 {strides = array<i32>} : memref<8x256xf32, #tpu.memory_space<vmem>>, vector<8x256xf32>,
    return
  }
  func.func @transform_0(%arg0: i32) -> (i32, i32) {
    %c0_i32 = arith.constant 0 : i32
    %c0_i32_0 = arith.constant 0 : i32
    return %arg0, %c0_i32 : i32, i32
  }
  func.func @transform_1(%arg0: i32) -> (i32, i32) {
    %c0_i32 = arith.constant 0 : i32
    %c0_i32_0 = arith.constant 0 : i32
    %c0_i32_1 = arith.constant 0 : i32
    return %c0_i32, %c0_i32_0 : i32, i32
  }
  func.func @transform_2(%arg0: i32) -> (i32, i32) {
    %c0_i32 = arith.constant 0 : i32
    %c0_i32_0 = arith.constant 0 : i32
    %c0_i32_1 = arith.constant 0 : i32
    return %c0_i32, %c0_i32_0 : i32, i32
  }
  func.func @transform_3(%arg0: i32) -> (i32, i32) {
    %c0_i32 = arith.constant 0 : i32
    %c0_i32_0 = arith.constant 0 : i32
    %c0_i32_1 = arith.constant 0 : i32
    return %c0_i32, %c0_i32_0 : i32, i32
  }
  func.func @transform_4(%arg0: i32) -> (i32, i32) {
    %c0_i32 = arith.constant 0 : i32
    %c0_i32_0 = arith.constant 0 : i32
    %c0_i32_1 = arith.constant 0 : i32
    return %c0_i32, %c0_i32_0 : i32, i32
  }
  func.func @transform_5(%arg0: i32) -> (i32, i32, i32) {
    %c0_i32 = arith.constant 0 : i32
    %c0_i32_0 = arith.constant 0 : i32
    %c0_i32_1 = arith.constant 0 : i32
    %c0_i32_2 = arith.constant 0 : i32
    return %c0_i32, %c0_i32_0, %c0_i32_1 : i32, i32, i32
  }
  func.func @transform_6(%arg0: i32) -> (i32, i32) {
    %c0_i32 = arith.constant 0 : i32
    %c0_i32_0 = arith.constant 0 : i32
    %c0_i32_1 = arith.constant 0 : i32
    return %c0_i32, %c0_i32_0 : i32, i32
  }
  func.func @transform_7(%arg0: i32) -> (i32, i32) {
    %c0_i32 = arith.constant 0 : i32
    %c0_i32_0 = arith.constant 0 : i32
    %c0_i32_1 = arith.constant 0 : i32
    return %c0_i32, %c0_i32_0 : i32, i32
  }
  func.func @transform_8(%arg0: i32) -> (i32, i32) {
    %c0_i32 = arith.constant 0 : i32
    %c0_i32_0 = arith.constant 0 : i32
    %c0_i32_1 = arith.constant 0 : i32
    return %c0_i32, %c0_i32_0 : i32, i32
  }
  func.func @transform_9(%arg0: i32) -> (i32, i32) {
    %c0_i32 = arith.constant 0 : i32
    %c0_i32_0 = arith.constant 0 : i32
    %c0_i32_1 = arith.constant 0 : i32
    return %c0_i32, %c0_i32_0 : i32, i32
  }
  func.func @transform_10(%arg0: i32) -> (i32, i32) {
    %c0_i32 = arith.constant 0 : i32
    %c0_i32_0 = arith.constant 0 : i32
    return %arg0, %c0_i32 : i32, i32
  }
}

</mosaic_0001>

<llo_original>
// kernel: dqn_base_forward.1
$region0: #{dqn_base_forward.1}
  #allocation0 [shape = 'u32[]', space=smem, size = 0x4, offset = 0x4, fixed_abs, tag = 'smem constant byte address 0x4 - core index']
  #allocation1 [shape = 'u32[144,128]{1,0:T(1,128)}', space=vmem, size = 0x12000, scoped, tag = 'internal scratch']
  %s0 = inlined_call_operand.vmem [shape: bf16[392,324], index: 0, kind: input, shape index: {}]
  %s1 = inlined_call_operand.vmem [shape: bf16[324,144], index: 1, kind: input, shape index: {}]
  %s2 = inlined_call_operand.vmem [shape: f32[1,144], index: 2, kind: input, shape index: {}]
  %s3 = inlined_call_operand.vmem [shape: bf16[144,64], index: 3, kind: input, shape index: {}]
  %s4 = inlined_call_operand.vmem [shape: f32[1,64], index: 4, kind: input, shape index: {}]
  %s5 = inlined_call_operand.vmem [shape: bf16[9,72,392], index: 5, kind: input, shape index: {}]
  %s6 = inlined_call_operand.vmem [shape: bf16[576,128], index: 6, kind: input, shape index: {}]
  %s7 = inlined_call_operand.vmem [shape: f32[1,128], index: 7, kind: input, shape index: {}]
  %s8 = inlined_call_operand.vmem [shape: bf16[1152,256], index: 8, kind: input, shape index: {}]
  %s9 = inlined_call_operand.vmem [shape: f32[1,256], index: 9, kind: input, shape index: {}]
  %s10 = inlined_call_operand.vmem [shape: f32[8,256], index: 10, kind: output, shape index: {}]
  %s11 = sld [smem:[#allocation0]]
  $region50: #{dqn_base_forward.1} parent=0
    _
  %s13 = ssub.s32 1, %s11
  %s14 = scalar_select 0, %s13, %s11
  // Predicated region
  $region2: #{dqn_base_forward.1} parent=0 // pred_check
    _
  $region3: #{dqn_base_forward.1} parent=0 // pred_check_branch
    %16 = sbr.rel (0) target = $region5
  $region4: #{dqn_base_forward.1} parent=0 // pred_region
    _
  $region5: #{dqn_base_forward.1} parent=0 // pred_fallthru
    _
  // Predicated region
  $region6: #{dqn_base_forward.1} parent=0 // pred_check
    _
  $region7: #{dqn_base_forward.1} parent=0 // pred_check_branch
    %18 = sbr.rel (0) target = $region9
  $region8: #{dqn_base_forward.1} parent=0 // pred_region
    _
  $region9: #{dqn_base_forward.1} parent=0 // pred_fallthru
    _
  // Predicated region
  $region10: #{dqn_base_forward.1} parent=0 // pred_check
    _
  $region11: #{dqn_base_forward.1} parent=0 // pred_check_branch
    %20 = sbr.rel (0) target = $region13
  $region12: #{dqn_base_forward.1} parent=0 // pred_region
    _
  $region13: #{dqn_base_forward.1} parent=0 // pred_fallthru
    _
  // Predicated region
  $region14: #{dqn_base_forward.1} parent=0 // pred_check
    _
  $region15: #{dqn_base_forward.1} parent=0 // pred_check_branch
    %22 = sbr.rel (0) target = $region17
  $region16: #{dqn_base_forward.1} parent=0 // pred_region
    _
  $region17: #{dqn_base_forward.1} parent=0 // pred_fallthru
    _
  // Predicated region
  $region18: #{dqn_base_forward.1} parent=0 // pred_check
    _
  $region19: #{dqn_base_forward.1} parent=0 // pred_check_branch
    %24 = sbr.rel (0) target = $region21
  $region20: #{dqn_base_forward.1} parent=0 // pred_region
    _
  $region21: #{dqn_base_forward.1} parent=0 // pred_fallthru
    _
  // Predicated region
  $region22: #{dqn_base_forward.1} parent=0 // pred_check
    _
  $region23: #{dqn_base_forward.1} parent=0 // pred_check_branch
    %26 = sbr.rel (0) target = $region25
  $region24: #{dqn_base_forward.1} parent=0 // pred_region
    _
  $region25: #{dqn_base_forward.1} parent=0 // pred_fallthru
    _
  // Predicated region
  $region26: #{dqn_base_forward.1} parent=0 // pred_check
    _
  $region27: #{dqn_base_forward.1} parent=0 // pred_check_branch
    %28 = sbr.rel (0) target = $region29
  $region28: #{dqn_base_forward.1} parent=0 // pred_region
    _
  $region29: #{dqn_base_forward.1} parent=0 // pred_fallthru
    _
  // Predicated region
  $region30: #{dqn_base_forward.1} parent=0 // pred_check
    _
  $region31: #{dqn_base_forward.1} parent=0 // pred_check_branch
    %30 = sbr.rel (0) target = $region33
  $region32: #{dqn_base_forward.1} parent=0 // pred_region
    _
  $region33: #{dqn_base_forward.1} parent=0 // pred_fallthru
    _
  // Predicated region
  $region34: #{dqn_base_forward.1} parent=0 // pred_check
    _
  $region35: #{dqn_base_forward.1} parent=0 // pred_check_branch
    %32 = sbr.rel (0) target = $region37
  $region36: #{dqn_base_forward.1} parent=0 // pred_region
    _
  $region37: #{dqn_base_forward.1} parent=0 // pred_fallthru
    _
  // Predicated region
  $region38: #{dqn_base_forward.1} parent=0 // pred_check
    _
  $region39: #{dqn_base_forward.1} parent=0 // pred_check_branch
    %34 = sbr.rel (0) target = $region41
  $region40: #{dqn_base_forward.1} parent=0 // pred_region
    _
  $region41: #{dqn_base_forward.1} parent=0 // pred_fallthru
    _
  %v36 = vld [vmem:[%s0] sm:$0xff]
  %v37 = vld [vmem:[%s0 + $0x8] sm:$0xf]
  %v38 = vld [vmem:[%s0 + $0xc] sm:$0xff]
  %v39 = vld [vmem:[%s0 + $0x14] sm:$0xf]
  %v40 = vld [vmem:[%s0 + $0x18] sm:$0xff]
  %v41 = vld [vmem:[%s0 + $0x20] sm:$0xf]
  %v42 = vld [vmem:[%s0 + $0x24] sm:$0xff]
  %v43 = vld [vmem:[%s0 + $0x2c] sm:$0xf]
  %v44 = vld [vmem:[%s0 + $0x30] sm:$0xff]
  %v45 = vld [vmem:[%s0 + $0x38] sm:$0xf]
  %v46 = vld [vmem:[%s0 + $0x3c] sm:$0xff]
  %v47 = vld [vmem:[%s0 + $0x44] sm:$0xf]
  %v48 = vld [vmem:[%s0 + $0x48] sm:$0xff]
  %v49 = vld [vmem:[%s0 + $0x50] sm:$0xf]
  %v50 = vld [vmem:[%s0 + $0x54] sm:$0xff]
  %v51 = vld [vmem:[%s0 + $0x5c] sm:$0xf]
  %v52 = vld [vmem:[%s0 + $0x60] sm:$0xff]
  %v53 = vld [vmem:[%s0 + $0x68] sm:$0xf]
  %v54 = vld [vmem:[%s0 + $0x6c] sm:$0xff]
  %v55 = vld [vmem:[%s0 + $0x74] sm:$0xf]
  %v56 = vld [vmem:[%s0 + $0x78] sm:$0xff]
  %v57 = vld [vmem:[%s0 + $0x80] sm:$0xf]
  %v58 = vld [vmem:[%s0 + $0x84] sm:$0xff]
  %v59 = vld [vmem:[%s0 + $0x8c] sm:$0xf]
  %v60 = vld [vmem:[%s0 + $0x90] sm:$0xff]
  %v61 = vld [vmem:[%s0 + $0x98] sm:$0xf]
  %v62 = vld [vmem:[%s0 + $0x9c] sm:$0xff]
  %v63 = vld [vmem:[%s0 + $0xa4] sm:$0xf]
  %v64 = vld [vmem:[%s0 + $0xa8] sm:$0xff]
  %v65 = vld [vmem:[%s0 + $0xb0] sm:$0xf]
  %v66 = vld [vmem:[%s0 + $0xb4] sm:$0xff]
  %v67 = vld [vmem:[%s0 + $0xbc] sm:$0xf]
  %v68 = vld [vmem:[%s0 + $0xc0] sm:$0xff]
  %v69 = vld [vmem:[%s0 + $0xc8] sm:$0xf]
  %v70 = vld [vmem:[%s0 + $0xcc] sm:$0xff]
  %v71 = vld [vmem:[%s0 + $0xd4] sm:$0xf]
  %v72 = vld [vmem:[%s0 + $0xd8] sm:$0xff]
  %v73 = vld [vmem:[%s0 + $0xe0] sm:$0xf]
  %v74 = vld [vmem:[%s0 + $0xe4] sm:$0xff]
  %v75 = vld [vmem:[%s0 + $0xec] sm:$0xf]
  %v76 = vld [vmem:[%s0 + $0xf0] sm:$0xff]
  %v77 = vld [vmem:[%s0 + $0xf8] sm:$0xf]
  %v78 = vld [vmem:[%s0 + $0xfc] sm:$0xff]
  %v79 = vld [vmem:[%s0 + $0x104] sm:$0xf]
  %v80 = vld [vmem:[%s0 + $0x108] sm:$0xff]
  %v81 = vld [vmem:[%s0 + $0x110] sm:$0xf]
  %v82 = vld [vmem:[%s0 + $0x114] sm:$0xff]
  %v83 = vld [vmem:[%s0 + $0x11c] sm:$0xf]
  %v84 = vld [vmem:[%s0 + $0x120] sm:$0xff]
  %v85 = vld [vmem:[%s0 + $0x128] sm:$0xf]
  %v86 = vld [vmem:[%s0 + $0x12c] sm:$0xff]
  %v87 = vld [vmem:[%s0 + $0x134] sm:$0xf]
  %v88 = vld [vmem:[%s0 + $0x138] sm:$0xff]
  %v89 = vld [vmem:[%s0 + $0x140] sm:$0xf]
  %v90 = vld [vmem:[%s0 + $0x144] sm:$0xff]
  %v91 = vld [vmem:[%s0 + $0x14c] sm:$0xf]
  %v92 = vld [vmem:[%s0 + $0x150] sm:$0xff]
  %v93 = vld [vmem:[%s0 + $0x158] sm:$0xf]
  %v94 = vld [vmem:[%s0 + $0x15c] sm:$0xff]
  %v95 = vld [vmem:[%s0 + $0x164] sm:$0xf]
  %v96 = vld [vmem:[%s0 + $0x168] sm:$0xff]
  %v97 = vld [vmem:[%s0 + $0x170] sm:$0xf]
  %v98 = vld [vmem:[%s0 + $0x174] sm:$0xff]
  %v99 = vld [vmem:[%s0 + $0x17c] sm:$0xf]
  %v100 = vld [vmem:[%s0 + $0x180] sm:$0xff]
  %v101 = vld [vmem:[%s0 + $0x188] sm:$0xf]
  %v102 = vld [vmem:[%s0 + $0x18c] sm:$0xff]
  %v103 = vld [vmem:[%s0 + $0x194] sm:$0xf]
  %v104 = vld [vmem:[%s0 + $0x198] sm:$0xff]
  %v105 = vld [vmem:[%s0 + $0x1a0] sm:$0xf]
  %v106 = vld [vmem:[%s0 + $0x1a4] sm:$0xff]
  %v107 = vld [vmem:[%s0 + $0x1ac] sm:$0xf]
  %v108 = vld [vmem:[%s0 + $0x1b0] sm:$0xff]
  %v109 = vld [vmem:[%s0 + $0x1b8] sm:$0xf]
  %v110 = vld [vmem:[%s0 + $0x1bc] sm:$0xff]
  %v111 = vld [vmem:[%s0 + $0x1c4] sm:$0xf]
  %v112 = vld [vmem:[%s0 + $0x1c8] sm:$0xff]
  %v113 = vld [vmem:[%s0 + $0x1d0] sm:$0xf]
  %v114 = vld [vmem:[%s0 + $0x1d4] sm:$0xff]
  %v115 = vld [vmem:[%s0 + $0x1dc] sm:$0xf]
  %v116 = vld [vmem:[%s0 + $0x1e0] sm:$0xff]
  %v117 = vld [vmem:[%s0 + $0x1e8] sm:$0xf]
  %v118 = vld [vmem:[%s0 + $0x1ec] sm:$0xff]
  %v119 = vld [vmem:[%s0 + $0x1f4] sm:$0xf]
  %v120 = vld [vmem:[%s0 + $0x1f8] sm:$0xff]
  %v121 = vld [vmem:[%s0 + $0x200] sm:$0xf]
  %v122 = vld [vmem:[%s0 + $0x204] sm:$0xff]
  %v123 = vld [vmem:[%s0 + $0x20c] sm:$0xf]
  %v124 = vld [vmem:[%s0 + $0x210] sm:$0xff]
  %v125 = vld [vmem:[%s0 + $0x218] sm:$0xf]
  %v126 = vld [vmem:[%s0 + $0x21c] sm:$0xff]
  %v127 = vld [vmem:[%s0 + $0x224] sm:$0xf]
  %v128 = vld [vmem:[%s0 + $0x228] sm:$0xff]
  %v129 = vld [vmem:[%s0 + $0x230] sm:$0xf]
  %v130 = vld [vmem:[%s0 + $0x234] sm:$0xff]
  %v131 = vld [vmem:[%s0 + $0x23c] sm:$0xf]
  %v132 = vld [vmem:[%s0 + $0x240] sm:$0xff]
  %v133 = vld [vmem:[%s0 + $0x248] sm:$0xf]
  %v134 = vld [vmem:[%s1] sm:$0xff]
  %v135 = vld [vmem:[%s1 + $0x8] sm:$0xff]
  %v136 = vld [vmem:[%s1 + $0x10] sm:$0xff]
  %v137 = vld [vmem:[%s1 + $0x18] sm:$0xff]
  %v138 = vld [vmem:[%s1 + $0x20] sm:$0xff]
  %v139 = vld [vmem:[%s1 + $0x28] sm:$0xff]
  %v140 = vld [vmem:[%s1 + $0x30] sm:$0xff]
  %v141 = vld [vmem:[%s1 + $0x38] sm:$0xff]
  %v142 = vld [vmem:[%s1 + $0x40] sm:$0xff]
  %v143 = vld [vmem:[%s1 + $0x48] sm:$0xff]
  %v144 = vld [vmem:[%s1 + $0x50] sm:$0xff]
  %v145 = vld [vmem:[%s1 + $0x58] sm:$0xff]
  %v146 = vld [vmem:[%s1 + $0x60] sm:$0xff]
  %v147 = vld [vmem:[%s1 + $0x68] sm:$0xff]
  %v148 = vld [vmem:[%s1 + $0x70] sm:$0xff]
  %v149 = vld [vmem:[%s1 + $0x78] sm:$0xff]
  %v150 = vld [vmem:[%s1 + $0x80] sm:$0xff]
  %v151 = vld [vmem:[%s1 + $0x88] sm:$0xff]
  %v152 = vld [vmem:[%s1 + $0x90] sm:$0xff]
  %v153 = vld [vmem:[%s1 + $0x98] sm:$0xff]
  %v154 = vld [vmem:[%s1 + $0xa0] sm:$0xff]
  %v155 = vld [vmem:[%s1 + $0xa8] sm:$0xff]
  %v156 = vld [vmem:[%s1 + $0xb0] sm:$0xff]
  %v157 = vld [vmem:[%s1 + $0xb8] sm:$0xff]
  %v158 = vld [vmem:[%s1 + $0xc0] sm:$0xff]
  %v159 = vld [vmem:[%s1 + $0xc8] sm:$0xff]
  %v160 = vld [vmem:[%s1 + $0xd0] sm:$0xff]
  %v161 = vld [vmem:[%s1 + $0xd8] sm:$0xff]
  %v162 = vld [vmem:[%s1 + $0xe0] sm:$0xff]
  %v163 = vld [vmem:[%s1 + $0xe8] sm:$0xff]
  %v164 = vld [vmem:[%s1 + $0xf0] sm:$0xff]
  %v165 = vld [vmem:[%s1 + $0xf8] sm:$0xff]
  %v166 = vld [vmem:[%s1 + $0x100] sm:$0xff]
  %v167 = vld [vmem:[%s1 + $0x108] sm:$0xff]
  %v168 = vld [vmem:[%s1 + $0x110] sm:$0xff]
  %v169 = vld [vmem:[%s1 + $0x118] sm:$0xff]
  %v170 = vld [vmem:[%s1 + $0x120] sm:$0xff]
  %v171 = vld [vmem:[%s1 + $0x128] sm:$0xff]
  %v172 = vld [vmem:[%s1 + $0x130] sm:$0xff]
  %v173 = vld [vmem:[%s1 + $0x138] sm:$0xff]
  %v174 = vld [vmem:[%s1 + $0x140] sm:$0x33]
  %v175 = vld [vmem:[%s2] sm:$0x3]
  %v177 = vlaneseq
  %v178 = vshrl.u32 %v177, 7
  %v179 = vsub.s32 0, %v178
  %v180 = vrot.slane %v175, %v179
  %v181 = vlaneseq
  %v182 = vshrl.u32 %v181, 7
  %v183 = vsub.s32 1, %v182
  %v184 = vrot.slane %v175, %v183
  %v285 = vunpack.c.l.b16 %v36
  %v286 = vunpack.c.h.b16 %v36
  %v287 = vunpack.c.l.b16 %v37
  %v288 = vunpack.c.l.b16 %v38
  %v289 = vunpack.c.h.b16 %v38
  %v290 = vunpack.c.l.b16 %v39
  %v291 = vunpack.c.l.b16 %v40
  %v292 = vunpack.c.h.b16 %v40
  %v293 = vunpack.c.l.b16 %v41
  %v294 = vunpack.c.l.b16 %v42
  %v295 = vunpack.c.h.b16 %v42
  %v296 = vunpack.c.l.b16 %v43
  %v297 = vunpack.c.l.b16 %v44
  %v298 = vunpack.c.h.b16 %v44
  %v299 = vunpack.c.l.b16 %v45
  %v300 = vunpack.c.l.b16 %v46
  %v301 = vunpack.c.h.b16 %v46
  %v302 = vunpack.c.l.b16 %v47
  %v303 = vunpack.c.l.b16 %v48
  %v304 = vunpack.c.h.b16 %v48
  %v305 = vunpack.c.l.b16 %v49
  %v306 = vunpack.c.l.b16 %v50
  %v307 = vunpack.c.h.b16 %v50
  %v308 = vunpack.c.l.b16 %v51
  %v309 = vunpack.c.l.b16 %v52
  %v310 = vunpack.c.h.b16 %v52
  %v311 = vunpack.c.l.b16 %v53
  %v312 = vunpack.c.l.b16 %v54
  %v313 = vunpack.c.h.b16 %v54
  %v314 = vunpack.c.l.b16 %v55
  %v315 = vunpack.c.l.b16 %v56
  %v316 = vunpack.c.h.b16 %v56
  %v317 = vunpack.c.l.b16 %v57
  %v318 = vunpack.c.l.b16 %v58
  %v319 = vunpack.c.h.b16 %v58
  %v320 = vunpack.c.l.b16 %v59
  %v321 = vunpack.c.l.b16 %v60
  %v322 = vunpack.c.h.b16 %v60
  %v323 = vunpack.c.l.b16 %v61
  %v324 = vunpack.c.l.b16 %v62
  %v325 = vunpack.c.h.b16 %v62
  %v326 = vunpack.c.l.b16 %v63
  %v327 = vunpack.c.l.b16 %v64
  %v328 = vunpack.c.h.b16 %v64
  %v329 = vunpack.c.l.b16 %v65
  %v330 = vunpack.c.l.b16 %v66
  %v331 = vunpack.c.h.b16 %v66
  %v332 = vunpack.c.l.b16 %v67
  %v333 = vunpack.c.l.b16 %v68
  %v334 = vunpack.c.h.b16 %v68
  %v335 = vunpack.c.l.b16 %v69
  %v336 = vunpack.c.l.b16 %v70
  %v337 = vunpack.c.h.b16 %v70
  %v338 = vunpack.c.l.b16 %v71
  %v339 = vunpack.c.l.b16 %v72
  %v340 = vunpack.c.h.b16 %v72
  %v341 = vunpack.c.l.b16 %v73
  %v342 = vunpack.c.l.b16 %v74
  %v343 = vunpack.c.h.b16 %v74
  %v344 = vunpack.c.l.b16 %v75
  %v345 = vunpack.c.l.b16 %v76
  %v346 = vunpack.c.h.b16 %v76
  %v347 = vunpack.c.l.b16 %v77
  %v348 = vunpack.c.l.b16 %v78
  %v349 = vunpack.c.h.b16 %v78
  %v350 = vunpack.c.l.b16 %v79
  %v351 = vunpack.c.l.b16 %v80
  %v352 = vunpack.c.h.b16 %v80
  %v353 = vunpack.c.l.b16 %v81
  %v354 = vunpack.c.l.b16 %v82
  %v355 = vunpack.c.h.b16 %v82
  %v356 = vunpack.c.l.b16 %v83
  %v357 = vunpack.c.l.b16 %v84
  %v358 = vunpack.c.h.b16 %v84
  %v359 = vunpack.c.l.b16 %v85
  %v360 = vunpack.c.l.b16 %v86
  %v361 = vunpack.c.h.b16 %v86
  %v362 = vunpack.c.l.b16 %v87
  %v363 = vunpack.c.l.b16 %v88
  %v364 = vunpack.c.h.b16 %v88
  %v365 = vunpack.c.l.b16 %v89
  %v366 = vunpack.c.l.b16 %v90
  %v367 = vunpack.c.h.b16 %v90
  %v368 = vunpack.c.l.b16 %v91
  %v369 = vunpack.c.l.b16 %v92
  %v370 = vunpack.c.h.b16 %v92
  %v371 = vunpack.c.l.b16 %v93
  %v372 = vunpack.c.l.b16 %v94
  %v373 = vunpack.c.h.b16 %v94
  %v374 = vunpack.c.l.b16 %v95
  %v375 = vunpack.c.l.b16 %v96
  %v376 = vunpack.c.h.b16 %v96
  %v377 = vunpack.c.l.b16 %v97
  %v378 = vunpack.c.l.b16 %v98
  %v379 = vunpack.c.h.b16 %v98
  %v380 = vunpack.c.l.b16 %v99
  %v381 = vunpack.c.l.b16 %v100
  %v382 = vunpack.c.h.b16 %v100
  %v383 = vunpack.c.l.b16 %v101
  %v384 = vunpack.c.l.b16 %v102
  %v385 = vunpack.c.h.b16 %v102
  %v386 = vunpack.c.l.b16 %v103
  %v387 = vunpack.c.l.b16 %v104
  %v388 = vunpack.c.h.b16 %v104
  %v389 = vunpack.c.l.b16 %v105
  %v390 = vunpack.c.l.b16 %v106
  %v391 = vunpack.c.h.b16 %v106
  %v392 = vunpack.c.l.b16 %v107
  %v393 = vunpack.c.l.b16 %v108
  %v394 = vunpack.c.h.b16 %v108
  %v395 = vunpack.c.l.b16 %v109
  %v396 = vunpack.c.l.b16 %v110
  %v397 = vunpack.c.h.b16 %v110
  %v398 = vunpack.c.l.b16 %v111
  %v399 = vunpack.c.l.b16 %v112
  %v400 = vunpack.c.h.b16 %v112
  %v401 = vunpack.c.l.b16 %v113
  %v402 = vunpack.c.l.b16 %v114
  %v403 = vunpack.c.h.b16 %v114
  %v404 = vunpack.c.l.b16 %v115
  %v405 = vunpack.c.l.b16 %v116
  %v406 = vunpack.c.h.b16 %v116
  %v407 = vunpack.c.l.b16 %v117
  %v408 = vunpack.c.l.b16 %v118
  %v409 = vunpack.c.h.b16 %v118
  %v410 = vunpack.c.l.b16 %v119
  %v411 = vunpack.c.l.b16 %v120
  %v412 = vunpack.c.h.b16 %v120
  %v413 = vunpack.c.l.b16 %v121
  %v414 = vunpack.c.l.b16 %v122
  %v415 = vunpack.c.h.b16 %v122
  %v416 = vunpack.c.l.b16 %v123
  %v417 = vunpack.c.l.b16 %v124
  %v418 = vunpack.c.h.b16 %v124
  %v419 = vunpack.c.l.b16 %v125
  %v420 = vunpack.c.l.b16 %v126
  %v421 = vunpack.c.h.b16 %v126
  %v422 = vunpack.c.l.b16 %v127
  %v423 = vunpack.c.l.b16 %v128
  %v424 = vunpack.c.h.b16 %v128
  %v425 = vunpack.c.l.b16 %v129
  %v426 = vunpack.c.l.b16 %v130
  %v427 = vunpack.c.h.b16 %v130
  %v428 = vunpack.c.l.b16 %v131
  %v429 = vunpack.c.l.b16 %v132
  %v430 = vunpack.c.h.b16 %v132
  %v431 = vunpack.c.l.b16 %v133
  %v432 = vpack.c.b16 %v288, %v285
  %v433 = vpack.c.b16 %v289, %v286
  %v434 = vpack.c.b16 %v290, %v287
  %v435 = vpack.c.b16 %v294, %v291
  %v436 = vpack.c.b16 %v295, %v292
  %v437 = vpack.c.b16 %v296, %v293
  %v438 = vpack.c.b16 %v300, %v297
  %v439 = vpack.c.b16 %v301, %v298
  %v440 = vpack.c.b16 %v302, %v299
  %v441 = vpack.c.b16 %v306, %v303
  %v442 = vpack.c.b16 %v307, %v304
  %v443 = vpack.c.b16 %v308, %v305
  %v444 = vpack.c.b16 %v312, %v309
  %v445 = vpack.c.b16 %v313, %v310
  %v446 = vpack.c.b16 %v314, %v311
  %v447 = vpack.c.b16 %v318, %v315
  %v448 = vpack.c.b16 %v319, %v316
  %v449 = vpack.c.b16 %v320, %v317
  %v450 = vpack.c.b16 %v324, %v321
  %v451 = vpack.c.b16 %v325, %v322
  %v452 = vpack.c.b16 %v326, %v323
  %v453 = vpack.c.b16 %v330, %v327
  %v454 = vpack.c.b16 %v331, %v328
  %v455 = vpack.c.b16 %v332, %v329
  %v456 = vpack.c.b16 %v336, %v333
  %v457 = vpack.c.b16 %v337, %v334
  %v458 = vpack.c.b16 %v338, %v335
  %v459 = vpack.c.b16 %v342, %v339
  %v460 = vpack.c.b16 %v343, %v340
  %v461 = vpack.c.b16 %v344, %v341
  %v462 = vpack.c.b16 %v348, %v345
  %v463 = vpack.c.b16 %v349, %v346
  %v464 = vpack.c.b16 %v350, %v347
  %v465 = vpack.c.b16 %v354, %v351
  %v466 = vpack.c.b16 %v355, %v352
  %v467 = vpack.c.b16 %v356, %v353
  %v468 = vpack.c.b16 %v360, %v357
  %v469 = vpack.c.b16 %v361, %v358
  %v470 = vpack.c.b16 %v362, %v359
  %v471 = vpack.c.b16 %v366, %v363
  %v472 = vpack.c.b16 %v367, %v364
  %v473 = vpack.c.b16 %v368, %v365
  %v474 = vpack.c.b16 %v372, %v369
  %v475 = vpack.c.b16 %v373, %v370
  %v476 = vpack.c.b16 %v374, %v371
  %v477 = vpack.c.b16 %v378, %v375
  %v478 = vpack.c.b16 %v379, %v376
  %v479 = vpack.c.b16 %v380, %v377
  %v480 = vpack.c.b16 %v384, %v381
  %v481 = vpack.c.b16 %v385, %v382
  %v482 = vpack.c.b16 %v386, %v383
  %v483 = vpack.c.b16 %v390, %v387
  %v484 = vpack.c.b16 %v391, %v388
  %v485 = vpack.c.b16 %v392, %v389
  %v486 = vpack.c.b16 %v396, %v393
  %v487 = vpack.c.b16 %v397, %v394
  %v488 = vpack.c.b16 %v398, %v395
  %v489 = vpack.c.b16 %v402, %v399
  %v490 = vpack.c.b16 %v403, %v400
  %v491 = vpack.c.b16 %v404, %v401
  %v492 = vpack.c.b16 %v408, %v405
  %v493 = vpack.c.b16 %v409, %v406
  %v494 = vpack.c.b16 %v410, %v407
  %v495 = vpack.c.b16 %v414, %v411
  %v496 = vpack.c.b16 %v415, %v412
  %v497 = vpack.c.b16 %v416, %v413
  %v498 = vpack.c.b16 %v420, %v417
  %v499 = vpack.c.b16 %v421, %v418
  %v500 = vpack.c.b16 %v422, %v419
  %v501 = vpack.c.b16 %v426, %v423
  %v502 = vpack.c.b16 %v427, %v424
  %v503 = vpack.c.b16 %v428, %v425
  %v504 = vpack.c.b16 %v429, %v429
  %v505 = vpack.c.b16 %v430, %v430
  %v506 = vpack.c.b16 %v431, %v431
  %v598 = vunpack.c.l.b16 %v134
  %v599 = vunpack.c.h.b16 %v134
  %v600 = vunpack.c.l.b16 %v135
  %v601 = vunpack.c.h.b16 %v135
  %v602 = vunpack.c.l.b16 %v136
  %v603 = vunpack.c.h.b16 %v136
  %v604 = vunpack.c.l.b16 %v137
  %v605 = vunpack.c.h.b16 %v137
  %v606 = vunpack.c.l.b16 %v138
  %v607 = vunpack.c.h.b16 %v138
  %v608 = vunpack.c.l.b16 %v139
  %v609 = vunpack.c.h.b16 %v139
  %v610 = vunpack.c.l.b16 %v140
  %v611 = vunpack.c.h.b16 %v140
  %v612 = vunpack.c.l.b16 %v141
  %v613 = vunpack.c.h.b16 %v141
  %v614 = vunpack.c.l.b16 %v142
  %v615 = vunpack.c.h.b16 %v142
  %v616 = vunpack.c.l.b16 %v143
  %v617 = vunpack.c.h.b16 %v143
  %v618 = vunpack.c.l.b16 %v144
  %v619 = vunpack.c.h.b16 %v144
  %v620 = vunpack.c.l.b16 %v145
  %v621 = vunpack.c.h.b16 %v145
  %v622 = vunpack.c.l.b16 %v146
  %v623 = vunpack.c.h.b16 %v146
  %v624 = vunpack.c.l.b16 %v147
  %v625 = vunpack.c.h.b16 %v147
  %v626 = vunpack.c.l.b16 %v148
  %v627 = vunpack.c.h.b16 %v148
  %v628 = vunpack.c.l.b16 %v149
  %v629 = vunpack.c.h.b16 %v149
  %v630 = vunpack.c.l.b16 %v150
  %v631 = vunpack.c.h.b16 %v150
  %v632 = vunpack.c.l.b16 %v151
  %v633 = vunpack.c.h.b16 %v151
  %v634 = vunpack.c.l.b16 %v152
  %v635 = vunpack.c.h.b16 %v152
  %v636 = vunpack.c.l.b16 %v153
  %v637 = vunpack.c.h.b16 %v153
  %v638 = vunpack.c.l.b16 %v154
  %v639 = vunpack.c.h.b16 %v154
  %v640 = vunpack.c.l.b16 %v155
  %v641 = vunpack.c.h.b16 %v155
  %v642 = vunpack.c.l.b16 %v156
  %v643 = vunpack.c.h.b16 %v156
  %v644 = vunpack.c.l.b16 %v157
  %v645 = vunpack.c.h.b16 %v157
  %v646 = vunpack.c.l.b16 %v158
  %v647 = vunpack.c.h.b16 %v158
  %v648 = vunpack.c.l.b16 %v159
  %v649 = vunpack.c.h.b16 %v159
  %v650 = vunpack.c.l.b16 %v160
  %v651 = vunpack.c.h.b16 %v160
  %v652 = vunpack.c.l.b16 %v161
  %v653 = vunpack.c.h.b16 %v161
  %v654 = vunpack.c.l.b16 %v162
  %v655 = vunpack.c.h.b16 %v162
  %v656 = vunpack.c.l.b16 %v163
  %v657 = vunpack.c.h.b16 %v163
  %v658 = vunpack.c.l.b16 %v164
  %v659 = vunpack.c.h.b16 %v164
  %v660 = vunpack.c.l.b16 %v165
  %v661 = vunpack.c.h.b16 %v165
  %v662 = vunpack.c.l.b16 %v166
  %v663 = vunpack.c.h.b16 %v166
  %v664 = vunpack.c.l.b16 %v167
  %v665 = vunpack.c.h.b16 %v167
  %v666 = vunpack.c.l.b16 %v168
  %v667 = vunpack.c.h.b16 %v168
  %v668 = vunpack.c.l.b16 %v169
  %v669 = vunpack.c.h.b16 %v169
  %v670 = vunpack.c.l.b16 %v170
  %v671 = vunpack.c.h.b16 %v170
  %v672 = vunpack.c.l.b16 %v171
  %v673 = vunpack.c.h.b16 %v171
  %v674 = vunpack.c.l.b16 %v172
  %v675 = vunpack.c.h.b16 %v172
  %v676 = vunpack.c.l.b16 %v173
  %v677 = vunpack.c.h.b16 %v173
  %v678 = vunpack.c.l.b16 %v174
  %v679 = vunpack.c.h.b16 %v174
  %v680 = vpack.c.b16 %v600, %v598
  %v681 = vpack.c.b16 %v601, %v599
  %v682 = vpack.c.b16 %v604, %v602
  %v683 = vpack.c.b16 %v605, %v603
  %v684 = vpack.c.b16 %v608, %v606
  %v685 = vpack.c.b16 %v609, %v607
  %v686 = vpack.c.b16 %v612, %v610
  %v687 = vpack.c.b16 %v613, %v611
  %v688 = vpack.c.b16 %v616, %v614
  %v689 = vpack.c.b16 %v617, %v615
  %v690 = vpack.c.b16 %v620, %v618
  %v691 = vpack.c.b16 %v621, %v619
  %v692 = vpack.c.b16 %v624, %v622
  %v693 = vpack.c.b16 %v625, %v623
  %v694 = vpack.c.b16 %v628, %v626
  %v695 = vpack.c.b16 %v629, %v627
  %v696 = vpack.c.b16 %v632, %v630
  %v697 = vpack.c.b16 %v633, %v631
  %v698 = vpack.c.b16 %v636, %v634
  %v699 = vpack.c.b16 %v637, %v635
  %v700 = vpack.c.b16 %v640, %v638
  %v701 = vpack.c.b16 %v641, %v639
  %v702 = vpack.c.b16 %v644, %v642
  %v703 = vpack.c.b16 %v645, %v643
  %v704 = vpack.c.b16 %v648, %v646
  %v705 = vpack.c.b16 %v649, %v647
  %v706 = vpack.c.b16 %v652, %v650
  %v707 = vpack.c.b16 %v653, %v651
  %v708 = vpack.c.b16 %v656, %v654
  %v709 = vpack.c.b16 %v657, %v655
  %v710 = vpack.c.b16 %v660, %v658
  %v711 = vpack.c.b16 %v661, %v659
  %v712 = vpack.c.b16 %v664, %v662
  %v713 = vpack.c.b16 %v665, %v663
  %v714 = vpack.c.b16 %v668, %v666
  %v715 = vpack.c.b16 %v669, %v667
  %v716 = vpack.c.b16 %v672, %v670
  %v717 = vpack.c.b16 %v673, %v671
  %v718 = vpack.c.b16 %v676, %v674
  %v719 = vpack.c.b16 %v677, %v675
  %v720 = vpack.c.b16 %v678, %v678
  %v721 = vpack.c.b16 %v679, %v679
  %vm762 = vcmask 556032
  %v764 = vsel %vm762, %v434, 0
  %v767 = vsel %vm762, %v437, 0
  %v770 = vsel %vm762, %v440, 0
  %v773 = vsel %vm762, %v443, 0
  %v776 = vsel %vm762, %v446, 0
  %v779 = vsel %vm762, %v449, 0
  %v782 = vsel %vm762, %v452, 0
  %v785 = vsel %vm762, %v455, 0
  %v788 = vsel %vm762, %v458, 0
  %v791 = vsel %vm762, %v461, 0
  %v794 = vsel %vm762, %v464, 0
  %v797 = vsel %vm762, %v467, 0
  %v800 = vsel %vm762, %v470, 0
  %v803 = vsel %vm762, %v473, 0
  %v806 = vsel %vm762, %v476, 0
  %v809 = vsel %vm762, %v479, 0
  %v812 = vsel %vm762, %v482, 0
  %v815 = vsel %vm762, %v485, 0
  %v818 = vsel %vm762, %v488, 0
  %v821 = vsel %vm762, %v491, 0
  %v824 = vsel %vm762, %v494, 0
  %v827 = vsel %vm762, %v497, 0
  %v830 = vsel %vm762, %v500, 0
  %v833 = vsel %vm762, %v503, 0
  %v836 = vsel %vm762, %v506, 0
  %vm838 = vcmask 1041408
  %v840 = vsel %vm838, %v720, 0
  %v843 = vsel %vm838, %v721, 0
  %845 = vmatprep.subr.bf16.mxu0 %v681
  %846 = vmatpush1.bf16.msra.mxu0 %v680
  %847 = vmatprep.subr.bf16.mxu0 %v683
  %848 = vmatpush1.bf16.msra.mxu0 %v682
  %849 = vmatprep.subr.bf16.mxu0 %v685
  %850 = vmatpush1.bf16.msra.mxu0 %v684
  %851 = vmatprep.subr.bf16.mxu0 %v687
  %852 = vmatpush1.bf16.msra.mxu0 %v686
  %853 = vmatprep.subr.bf16.mxu0 %v689
  %854 = vmatpush1.bf16.msra.mxu0 %v688
  %855 = vmatprep.subr.bf16.mxu0 %v691
  %856 = vmatpush1.bf16.msra.mxu0 %v690
  %857 = vmatprep.subr.bf16.mxu0 %v693
  %858 = vmatpush1.bf16.msra.mxu0 %v692
  %859 = vmatprep.subr.bf16.mxu0 %v695
  %860 = vmatpush1.bf16.msra.mxu0 %v694
  %861 = vmatprep.subr.bf16.mxu0 %v697
  %862 = vmatpush1.bf16.msra.mxu0 %v696
  %863 = vmatprep.subr.bf16.mxu0 %v699
  %864 = vmatpush1.bf16.msra.mxu0 %v698
  %865 = vmatprep.subr.bf16.mxu0 %v701
  %866 = vmatpush1.bf16.msra.mxu0 %v700
  %867 = vmatprep.subr.bf16.mxu0 %v703
  %868 = vmatpush1.bf16.msra.mxu0 %v702
  %869 = vmatprep.subr.bf16.mxu0 %v705
  %870 = vmatpush1.bf16.msra.mxu0 %v704
  %871 = vmatprep.subr.bf16.mxu0 %v707
  %872 = vmatpush1.bf16.msra.mxu0 %v706
  %873 = vmatprep.subr.bf16.mxu0 %v709
  %874 = vmatpush1.bf16.msra.mxu0 %v708
  %875 = vmatprep.subr.bf16.mxu0 %v711
  %876 = vmatpush1.bf16.msra.mxu0 %v710
  %877 = vmatprep.mubr.bf16.mxu0 %v433
  %878 = vmatmul.mubr.bf16.gmra.mrb[0].mxu0 %v432
  %v879 = vpop.f32.mrb[0].mxu0
  %v880 = vadd.f32 %v180, %v879
  %v881 = vpop.f32.mrb[0].mxu0
  %v882 = vadd.f32 %v184, %v881
  %v883 = vpop.f32.mrb[0].mxu0
  %v884 = vadd.f32 %v180, %v883
  %v885 = vpop.f32.mrb[0].mxu0
  %v886 = vadd.f32 %v184, %v885
  %887 = vmatprep.mubr.bf16.mxu0 %v436
  %888 = vmatmul.mubr.bf16.gmra.mrb[0].mxu0 %v435
  %v889 = vpop.f32.mrb[0].mxu0
  %v890 = vadd.f32 %v180, %v889
  %v891 = vpop.f32.mrb[0].mxu0
  %v892 = vadd.f32 %v184, %v891
  %v893 = vpop.f32.mrb[0].mxu0
  %v894 = vadd.f32 %v180, %v893
  %v895 = vpop.f32.mrb[0].mxu0
  %v896 = vadd.f32 %v184, %v895
  %897 = vmatprep.mubr.bf16.mxu0 %v439
  %898 = vmatmul.mubr.bf16.gmra.mrb[0].mxu0 %v438
  %v899 = vpop.f32.mrb[0].mxu0
  %v900 = vadd.f32 %v180, %v899
  %v901 = vpop.f32.mrb[0].mxu0
  %v902 = vadd.f32 %v184, %v901
  %v903 = vpop.f32.mrb[0].mxu0
  %v904 = vadd.f32 %v180, %v903
  %v905 = vpop.f32.mrb[0].mxu0
  %v906 = vadd.f32 %v184, %v905
  %907 = vmatprep.mubr.bf16.mxu0 %v442
  %908 = vmatmul.mubr.bf16.gmra.mrb[0].mxu0 %v441
  %v909 = vpop.f32.mrb[0].mxu0
  %v910 = vadd.f32 %v180, %v909
  %v911 = vpop.f32.mrb[0].mxu0
  %v912 = vadd.f32 %v184, %v911
  %v913 = vpop.f32.mrb[0].mxu0
  %v914 = vadd.f32 %v180, %v913
  %v915 = vpop.f32.mrb[0].mxu0
  %v916 = vadd.f32 %v184, %v915
  %917 = vmatprep.mubr.bf16.mxu0 %v445
  %918 = vmatmul.mubr.bf16.gmra.mrb[0].mxu0 %v444
  %v919 = vpop.f32.mrb[0].mxu0
  %v920 = vadd.f32 %v180, %v919
  %v921 = vpop.f32.mrb[0].mxu0
  %v922 = vadd.f32 %v184, %v921
  %v923 = vpop.f32.mrb[0].mxu0
  %v924 = vadd.f32 %v180, %v923
  %v925 = vpop.f32.mrb[0].mxu0
  %v926 = vadd.f32 %v184, %v925
  %927 = vmatprep.mubr.bf16.mxu0 %v448
  %928 = vmatmul.mubr.bf16.gmra.mrb[0].mxu0 %v447
  %v929 = vpop.f32.mrb[0].mxu0
  %v930 = vadd.f32 %v180, %v929
  %v931 = vpop.f32.mrb[0].mxu0
  %v932 = vadd.f32 %v184, %v931
  %v933 = vpop.f32.mrb[0].mxu0
  %v934 = vadd.f32 %v180, %v933
  %v935 = vpop.f32.mrb[0].mxu0
  %v936 = vadd.f32 %v184, %v935
  %937 = vmatprep.mubr.bf16.mxu0 %v451
  %938 = vmatmul.mubr.bf16.gmra.mrb[0].mxu0 %v450
  %v939 = vpop.f32.mrb[0].mxu0
  %v940 = vadd.f32 %v180, %v939
  %v941 = vpop.f32.mrb[0].mxu0
  %v942 = vadd.f32 %v184, %v941
  %v943 = vpop.f32.mrb[0].mxu0
  %v944 = vadd.f32 %v180, %v943
  %v945 = vpop.f32.mrb[0].mxu0
  %v946 = vadd.f32 %v184, %v945
  %947 = vmatprep.mubr.bf16.mxu0 %v454
  %948 = vmatmul.mubr.bf16.gmra.mrb[0].mxu0 %v453
  %v949 = vpop.f32.mrb[0].mxu0
  %v950 = vadd.f32 %v180, %v949
  %v951 = vpop.f32.mrb[0].mxu0
  %v952 = vadd.f32 %v184, %v951
  %v953 = vpop.f32.mrb[0].mxu0
  %v954 = vadd.f32 %v180, %v953
  %v955 = vpop.f32.mrb[0].mxu0
  %v956 = vadd.f32 %v184, %v955
  %957 = vmatprep.mubr.bf16.mxu0 %v457
  %958 = vmatmul.mubr.bf16.gmra.mrb[0].mxu0 %v456
  %v959 = vpop.f32.mrb[0].mxu0
  %v960 = vadd.f32 %v180, %v959
  %v961 = vpop.f32.mrb[0].mxu0
  %v962 = vadd.f32 %v184, %v961
  %v963 = vpop.f32.mrb[0].mxu0
  %v964 = vadd.f32 %v180, %v963
  %v965 = vpop.f32.mrb[0].mxu0
  %v966 = vadd.f32 %v184, %v965
  %967 = vmatprep.mubr.bf16.mxu0 %v460
  %968 = vmatmul.mubr.bf16.gmra.mrb[0].mxu0 %v459
  %v969 = vpop.f32.mrb[0].mxu0
  %v970 = vadd.f32 %v180, %v969
  %v971 = vpop.f32.mrb[0].mxu0
  %v972 = vadd.f32 %v184, %v971
  %v973 = vpop.f32.mrb[0].mxu0
  %v974 = vadd.f32 %v180, %v973
  %v975 = vpop.f32.mrb[0].mxu0
  %v976 = vadd.f32 %v184, %v975
  %977 = vmatprep.mubr.bf16.mxu0 %v463
  %978 = vmatmul.mubr.bf16.gmra.mrb[0].mxu0 %v462
  %v979 = vpop.f32.mrb[0].mxu0
  %v980 = vadd.f32 %v180, %v979
  %v981 = vpop.f32.mrb[0].mxu0
  %v982 = vadd.f32 %v184, %v981
  %v983 = vpop.f32.mrb[0].mxu0
  %v984 = vadd.f32 %v180, %v983
  %v985 = vpop.f32.mrb[0].mxu0
  %v986 = vadd.f32 %v184, %v985
  %987 = vmatprep.mubr.bf16.mxu0 %v466
  %988 = vmatmul.mubr.bf16.gmra.mrb[0].mxu0 %v465
  %v989 = vpop.f32.mrb[0].mxu0
  %v990 = vadd.f32 %v180, %v989
  %v991 = vpop.f32.mrb[0].mxu0
  %v992 = vadd.f32 %v184, %v991
  %v993 = vpop.f32.mrb[0].mxu0
  %v994 = vadd.f32 %v180, %v993
  %v995 = vpop.f32.mrb[0].mxu0
  %v996 = vadd.f32 %v184, %v995
  %997 = vmatprep.mubr.bf16.mxu0 %v469
  %998 = vmatmul.mubr.bf16.gmra.mrb[0].mxu0 %v468
  %v999 = vpop.f32.mrb[0].mxu0
  %v1000 = vadd.f32 %v180, %v999
  %v1001 = vpop.f32.mrb[0].mxu0
  %v1002 = vadd.f32 %v184, %v1001
  %v1003 = vpop.f32.mrb[0].mxu0
  %v1004 = vadd.f32 %v180, %v1003
  %v1005 = vpop.f32.mrb[0].mxu0
  %v1006 = vadd.f32 %v184, %v1005
  %1007 = vmatprep.mubr.bf16.mxu0 %v472
  %1008 = vmatmul.mubr.bf16.gmra.mrb[0].mxu0 %v471
  %v1009 = vpop.f32.mrb[0].mxu0
  %v1010 = vadd.f32 %v180, %v1009
  %v1011 = vpop.f32.mrb[0].mxu0
  %v1012 = vadd.f32 %v184, %v1011
  %v1013 = vpop.f32.mrb[0].mxu0
  %v1014 = vadd.f32 %v180, %v1013
  %v1015 = vpop.f32.mrb[0].mxu0
  %v1016 = vadd.f32 %v184, %v1015
  %1017 = vmatprep.mubr.bf16.mxu0 %v475
  %1018 = vmatmul.mubr.bf16.gmra.mrb[0].mxu0 %v474
  %v1019 = vpop.f32.mrb[0].mxu0
  %v1020 = vadd.f32 %v180, %v1019
  %v1021 = vpop.f32.mrb[0].mxu0
  %v1022 = vadd.f32 %v184, %v1021
  %v1023 = vpop.f32.mrb[0].mxu0
  %v1024 = vadd.f32 %v180, %v1023
  %v1025 = vpop.f32.mrb[0].mxu0
  %v1026 = vadd.f32 %v184, %v1025
  %1027 = vmatprep.mubr.bf16.mxu0 %v478
  %1028 = vmatmul.mubr.bf16.gmra.mrb[0].mxu0 %v477
  %v1029 = vpop.f32.mrb[0].mxu0
  %v1030 = vadd.f32 %v180, %v1029
  %v1031 = vpop.f32.mrb[0].mxu0
  %v1032 = vadd.f32 %v184, %v1031
  %v1033 = vpop.f32.mrb[0].mxu0
  %v1034 = vadd.f32 %v180, %v1033
  %v1035 = vpop.f32.mrb[0].mxu0
  %v1036 = vadd.f32 %v184, %v1035
  %1037 = vmatprep.mubr.bf16.mxu0 %v481
  %1038 = vmatmul.mubr.bf16.gmra.mrb[0].mxu0 %v480
  %v1039 = vpop.f32.mrb[0].mxu0
  %v1040 = vadd.f32 %v180, %v1039
  %v1041 = vpop.f32.mrb[0].mxu0
  %v1042 = vadd.f32 %v184, %v1041
  %v1043 = vpop.f32.mrb[0].mxu0
  %v1044 = vadd.f32 %v180, %v1043
  %v1045 = vpop.f32.mrb[0].mxu0
  %v1046 = vadd.f32 %v184, %v1045
  %1047 = vmatprep.mubr.bf16.mxu0 %v484
  %1048 = vmatmul.mubr.bf16.gmra.mrb[0].mxu0 %v483
  %v1049 = vpop.f32.mrb[0].mxu0
  %v1050 = vadd.f32 %v180, %v1049
  %v1051 = vpop.f32.mrb[0].mxu0
  %v1052 = vadd.f32 %v184, %v1051
  %v1053 = vpop.f32.mrb[0].mxu0
  %v1054 = vadd.f32 %v180, %v1053
  %v1055 = vpop.f32.mrb[0].mxu0
  %v1056 = vadd.f32 %v184, %v1055
  %1057 = vmatprep.mubr.bf16.mxu0 %v487
  %1058 = vmatmul.mubr.bf16.gmra.mrb[0].mxu0 %v486
  %v1059 = vpop.f32.mrb[0].mxu0
  %v1060 = vadd.f32 %v180, %v1059
  %v1061 = vpop.f32.mrb[0].mxu0
  %v1062 = vadd.f32 %v184, %v1061
  %v1063 = vpop.f32.mrb[0].mxu0
  %v1064 = vadd.f32 %v180, %v1063
  %v1065 = vpop.f32.mrb[0].mxu0
  %v1066 = vadd.f32 %v184, %v1065
  %1067 = vmatprep.mubr.bf16.mxu0 %v490
  %1068 = vmatmul.mubr.bf16.gmra.mrb[0].mxu0 %v489
  %v1069 = vpop.f32.mrb[0].mxu0
  %v1070 = vadd.f32 %v180, %v1069
  %v1071 = vpop.f32.mrb[0].mxu0
  %v1072 = vadd.f32 %v184, %v1071
  %v1073 = vpop.f32.mrb[0].mxu0
  %v1074 = vadd.f32 %v180, %v1073
  %v1075 = vpop.f32.mrb[0].mxu0
  %v1076 = vadd.f32 %v184, %v1075
  %1077 = vmatprep.mubr.bf16.mxu0 %v493
  %1078 = vmatmul.mubr.bf16.gmra.mrb[0].mxu0 %v492
  %v1079 = vpop.f32.mrb[0].mxu0
  %v1080 = vadd.f32 %v180, %v1079
  %v1081 = vpop.f32.mrb[0].mxu0
  %v1082 = vadd.f32 %v184, %v1081
  %v1083 = vpop.f32.mrb[0].mxu0
  %v1084 = vadd.f32 %v180, %v1083
  %v1085 = vpop.f32.mrb[0].mxu0
  %v1086 = vadd.f32 %v184, %v1085
  %1087 = vmatprep.mubr.bf16.mxu0 %v496
  %1088 = vmatmul.mubr.bf16.gmra.mrb[0].mxu0 %v495
  %v1089 = vpop.f32.mrb[0].mxu0
  %v1090 = vadd.f32 %v180, %v1089
  %v1091 = vpop.f32.mrb[0].mxu0
  %v1092 = vadd.f32 %v184, %v1091
  %v1093 = vpop.f32.mrb[0].mxu0
  %v1094 = vadd.f32 %v180, %v1093
  %v1095 = vpop.f32.mrb[0].mxu0
  %v1096 = vadd.f32 %v184, %v1095
  %1097 = vmatprep.mubr.bf16.mxu0 %v499
  %1098 = vmatmul.mubr.bf16.gmra.mrb[0].mxu0 %v498
  %v1099 = vpop.f32.mrb[0].mxu0
  %v1100 = vadd.f32 %v180, %v1099
  %v1101 = vpop.f32.mrb[0].mxu0
  %v1102 = vadd.f32 %v184, %v1101
  %v1103 = vpop.f32.mrb[0].mxu0
  %v1104 = vadd.f32 %v180, %v1103
  %v1105 = vpop.f32.mrb[0].mxu0
  %v1106 = vadd.f32 %v184, %v1105
  %1107 = vmatprep.mubr.bf16.mxu0 %v502
  %1108 = vmatmul.mubr.bf16.gmra.mrb[0].mxu0 %v501
  %v1109 = vpop.f32.mrb[0].mxu0
  %v1110 = vadd.f32 %v180, %v1109
  %v1111 = vpop.f32.mrb[0].mxu0
  %v1112 = vadd.f32 %v184, %v1111
  %v1113 = vpop.f32.mrb[0].mxu0
  %v1114 = vadd.f32 %v180, %v1113
  %v1115 = vpop.f32.mrb[0].mxu0
  %v1116 = vadd.f32 %v184, %v1115
  %1117 = vmatprep.mubr.bf16.mxu0 %v505
  %1118 = vmatmul.mubr.bf16.gmra.mrb[0].mxu0 %v504
  %v1119 = vpop.f32.mrb[0].mxu0
  %v1120 = vadd.f32 %v180, %v1119
  %v1121 = vpop.f32.mrb[0].mxu0
  %v1122 = vadd.f32 %v184, %v1121
  %v1123 = vpop.f32.mrb[0].mxu0
  %v1124 = vpop.f32.mrb[0].mxu0
  %1125 = vdwg.mxu0
  %1126 = vmatprep.subr.bf16.mxu0 %v713
  %1127 = vmatpush1.bf16.msra.mxu0 %v712
  %1128 = vmatprep.subr.bf16.mxu0 %v715
  %1129 = vmatpush1.bf16.msra.mxu0 %v714
  %1130 = vmatprep.subr.bf16.mxu0 %v717
  %1131 = vmatpush1.bf16.msra.mxu0 %v716
  %1132 = vmatprep.subr.bf16.mxu0 %v719
  %1133 = vmatpush1.bf16.msra.mxu0 %v718
  %1134 = vmatprep.subr.bf16.mxu0 %v843
  %1135 = vmatpush1.bf16.msra.mxu0 %v840
  %1136 = vmatprep.subr.bf16.mxu0 0
  %1137 = vmatpush1.bf16.msra.mxu0 0
  %1138 = vmatprep.subr.bf16.mxu0 0
  %1139 = vmatpush1.bf16.msra.mxu0 0
  %1140 = vmatprep.subr.bf16.mxu0 0
  %1141 = vmatpush1.bf16.msra.mxu0 0
  %1142 = vmatprep.subr.bf16.mxu0 0
  %1143 = vmatpush1.bf16.msra.mxu0 0
  %1144 = vmatprep.subr.bf16.mxu0 0
  %1145 = vmatpush1.bf16.msra.mxu0 0
  %1146 = vmatprep.subr.bf16.mxu0 0
  %1147 = vmatpush1.bf16.msra.mxu0 0
  %1148 = vmatprep.subr.bf16.mxu0 0
  %1149 = vmatpush1.bf16.msra.mxu0 0
  %1150 = vmatprep.subr.bf16.mxu0 0
  %1151 = vmatpush1.bf16.msra.mxu0 0
  %1152 = vmatprep.subr.bf16.mxu0 0
  %1153 = vmatpush1.bf16.msra.mxu0 0
  %1154 = vmatprep.subr.bf16.mxu0 0
  %1155 = vmatpush1.bf16.msra.mxu0 0
  %1156 = vmatprep.subr.bf16.mxu0 0
  %1157 = vmatpush1.bf16.msra.mxu0 0
  %1158 = vmatprep.mubr.bf16.mxu0 0
  %1159 = vmatmul.mubr.bf16.gmra.mrb[0].mxu0 %v764
  %v1160 = vpop.f32.mrb[0].mxu0
  %v1161 = vadd.f32 %v880, %v1160
  %v1162 = vpop.f32.mrb[0].mxu0
  %v1163 = vadd.f32 %v882, %v1162
  %v1164 = vpop.f32.mrb[0].mxu0
  %v1165 = vadd.f32 %v884, %v1164
  %v1166 = vpop.f32.mrb[0].mxu0
  %v1167 = vadd.f32 %v886, %v1166
  %1168 = vmatprep.mubr.bf16.mxu0 0
  %1169 = vmatmul.mubr.bf16.gmra.mrb[0].mxu0 %v767
  %v1170 = vpop.f32.mrb[0].mxu0
  %v1171 = vadd.f32 %v890, %v1170
  %v1172 = vpop.f32.mrb[0].mxu0
  %v1173 = vadd.f32 %v892, %v1172
  %v1174 = vpop.f32.mrb[0].mxu0
  %v1175 = vadd.f32 %v894, %v1174
  %v1176 = vpop.f32.mrb[0].mxu0
  %v1177 = vadd.f32 %v896, %v1176
  %1178 = vmatprep.mubr.bf16.mxu0 0
  %1179 = vmatmul.mubr.bf16.gmra.mrb[0].mxu0 %v770
  %v1180 = vpop.f32.mrb[0].mxu0
  %v1181 = vadd.f32 %v900, %v1180
  %v1182 = vpop.f32.mrb[0].mxu0
  %v1183 = vadd.f32 %v902, %v1182
  %v1184 = vpop.f32.mrb[0].mxu0
  %v1185 = vadd.f32 %v904, %v1184
  %v1186 = vpop.f32.mrb[0].mxu0
  %v1187 = vadd.f32 %v906, %v1186
  %1188 = vmatprep.mubr.bf16.mxu0 0
  %1189 = vmatmul.mubr.bf16.gmra.mrb[0].mxu0 %v773
  %v1190 = vpop.f32.mrb[0].mxu0
  %v1191 = vadd.f32 %v910, %v1190
  %v1192 = vpop.f32.mrb[0].mxu0
  %v1193 = vadd.f32 %v912, %v1192
  %v1194 = vpop.f32.mrb[0].mxu0
  %v1195 = vadd.f32 %v914, %v1194
  %v1196 = vpop.f32.mrb[0].mxu0
  %v1197 = vadd.f32 %v916, %v1196
  %1198 = vmatprep.mubr.bf16.mxu0 0
  %1199 = vmatmul.mubr.bf16.gmra.mrb[0].mxu0 %v776
  %v1200 = vpop.f32.mrb[0].mxu0
  %v1201 = vadd.f32 %v920, %v1200
  %v1202 = vpop.f32.mrb[0].mxu0
  %v1203 = vadd.f32 %v922, %v1202
  %v1204 = vpop.f32.mrb[0].mxu0
  %v1205 = vadd.f32 %v924, %v1204
  %v1206 = vpop.f32.mrb[0].mxu0
  %v1207 = vadd.f32 %v926, %v1206
  %1208 = vmatprep.mubr.bf16.mxu0 0
  %1209 = vmatmul.mubr.bf16.gmra.mrb[0].mxu0 %v779
  %v1210 = vpop.f32.mrb[0].mxu0
  %v1211 = vadd.f32 %v930, %v1210
  %v1212 = vpop.f32.mrb[0].mxu0
  %v1213 = vadd.f32 %v932, %v1212
  %v1214 = vpop.f32.mrb[0].mxu0
  %v1215 = vadd.f32 %v934, %v1214
  %v1216 = vpop.f32.mrb[0].mxu0
  %v1217 = vadd.f32 %v936, %v1216
  %1218 = vmatprep.mubr.bf16.mxu0 0
  %1219 = vmatmul.mubr.bf16.gmra.mrb[0].mxu0 %v782
  %v1220 = vpop.f32.mrb[0].mxu0
  %v1221 = vadd.f32 %v940, %v1220
  %v1222 = vpop.f32.mrb[0].mxu0
  %v1223 = vadd.f32 %v942, %v1222
  %v1224 = vpop.f32.mrb[0].mxu0
  %v1225 = vadd.f32 %v944, %v1224
  %v1226 = vpop.f32.mrb[0].mxu0
  %v1227 = vadd.f32 %v946, %v1226
  %1228 = vmatprep.mubr.bf16.mxu0 0
  %1229 = vmatmul.mubr.bf16.gmra.mrb[0].mxu0 %v785
  %v1230 = vpop.f32.mrb[0].mxu0
  %v1231 = vadd.f32 %v950, %v1230
  %v1232 = vpop.f32.mrb[0].mxu0
  %v1233 = vadd.f32 %v952, %v1232
  %v1234 = vpop.f32.mrb[0].mxu0
  %v1235 = vadd.f32 %v954, %v1234
  %v1236 = vpop.f32.mrb[0].mxu0
  %v1237 = vadd.f32 %v956, %v1236
  %1238 = vmatprep.mubr.bf16.mxu0 0
  %1239 = vmatmul.mubr.bf16.gmra.mrb[0].mxu0 %v788
  %v1240 = vpop.f32.mrb[0].mxu0
  %v1241 = vadd.f32 %v960, %v1240
  %v1242 = vpop.f32.mrb[0].mxu0
  %v1243 = vadd.f32 %v962, %v1242
  %v1244 = vpop.f32.mrb[0].mxu0
  %v1245 = vadd.f32 %v964, %v1244
  %v1246 = vpop.f32.mrb[0].mxu0
  %v1247 = vadd.f32 %v966, %v1246
  %1248 = vmatprep.mubr.bf16.mxu0 0
  %1249 = vmatmul.mubr.bf16.gmra.mrb[0].mxu0 %v791
  %v1250 = vpop.f32.mrb[0].mxu0
  %v1251 = vadd.f32 %v970, %v1250
  %v1252 = vpop.f32.mrb[0].mxu0
  %v1253 = vadd.f32 %v972, %v1252
  %v1254 = vpop.f32.mrb[0].mxu0
  %v1255 = vadd.f32 %v974, %v1254
  %v1256 = vpop.f32.mrb[0].mxu0
  %v1257 = vadd.f32 %v976, %v1256
  %1258 = vmatprep.mubr.bf16.mxu0 0
  %1259 = vmatmul.mubr.bf16.gmra.mrb[0].mxu0 %v794
  %v1260 = vpop.f32.mrb[0].mxu0
  %v1261 = vadd.f32 %v980, %v1260
  %v1262 = vpop.f32.mrb[0].mxu0
  %v1263 = vadd.f32 %v982, %v1262
  %v1264 = vpop.f32.mrb[0].mxu0
  %v1265 = vadd.f32 %v984, %v1264
  %v1266 = vpop.f32.mrb[0].mxu0
  %v1267 = vadd.f32 %v986, %v1266
  %1268 = vmatprep.mubr.bf16.mxu0 0
  %1269 = vmatmul.mubr.bf16.gmra.mrb[0].mxu0 %v797
  %v1270 = vpop.f32.mrb[0].mxu0
  %v1271 = vadd.f32 %v990, %v1270
  %v1272 = vpop.f32.mrb[0].mxu0
  %v1273 = vadd.f32 %v992, %v1272
  %v1274 = vpop.f32.mrb[0].mxu0
  %v1275 = vadd.f32 %v994, %v1274
  %v1276 = vpop.f32.mrb[0].mxu0
  %v1277 = vadd.f32 %v996, %v1276
  %1278 = vmatprep.mubr.bf16.mxu0 0
  %1279 = vmatmul.mubr.bf16.gmra.mrb[0].mxu0 %v800
  %v1280 = vpop.f32.mrb[0].mxu0
  %v1281 = vadd.f32 %v1000, %v1280
  %v1282 = vpop.f32.mrb[0].mxu0
  %v1283 = vadd.f32 %v1002, %v1282
  %v1284 = vpop.f32.mrb[0].mxu0
  %v1285 = vadd.f32 %v1004, %v1284
  %v1286 = vpop.f32.mrb[0].mxu0
  %v1287 = vadd.f32 %v1006, %v1286
  %1288 = vmatprep.mubr.bf16.mxu0 0
  %1289 = vmatmul.mubr.bf16.gmra.mrb[0].mxu0 %v803
  %v1290 = vpop.f32.mrb[0].mxu0
  %v1291 = vadd.f32 %v1010, %v1290
  %v1292 = vpop.f32.mrb[0].mxu0
  %v1293 = vadd.f32 %v1012, %v1292
  %v1294 = vpop.f32.mrb[0].mxu0
  %v1295 = vadd.f32 %v1014, %v1294
  %v1296 = vpop.f32.mrb[0].mxu0
  %v1297 = vadd.f32 %v1016, %v1296
  %1298 = vmatprep.mubr.bf16.mxu0 0
  %1299 = vmatmul.mubr.bf16.gmra.mrb[0].mxu0 %v806
  %v1300 = vpop.f32.mrb[0].mxu0
  %v1301 = vadd.f32 %v1020, %v1300
  %v1302 = vpop.f32.mrb[0].mxu0
  %v1303 = vadd.f32 %v1022, %v1302
  %v1304 = vpop.f32.mrb[0].mxu0
  %v1305 = vadd.f32 %v1024, %v1304
  %v1306 = vpop.f32.mrb[0].mxu0
  %v1307 = vadd.f32 %v1026, %v1306
  %1308 = vmatprep.mubr.bf16.mxu0 0
  %1309 = vmatmul.mubr.bf16.gmra.mrb[0].mxu0 %v809
  %v1310 = vpop.f32.mrb[0].mxu0
  %v1311 = vadd.f32 %v1030, %v1310
  %v1312 = vpop.f32.mrb[0].mxu0
  %v1313 = vadd.f32 %v1032, %v1312
  %v1314 = vpop.f32.mrb[0].mxu0
  %v1315 = vadd.f32 %v1034, %v1314
  %v1316 = vpop.f32.mrb[0].mxu0
  %v1317 = vadd.f32 %v1036, %v1316
  %1318 = vmatprep.mubr.bf16.mxu0 0
  %1319 = vmatmul.mubr.bf16.gmra.mrb[0].mxu0 %v812
  %v1320 = vpop.f32.mrb[0].mxu0
  %v1321 = vadd.f32 %v1040, %v1320
  %v1322 = vpop.f32.mrb[0].mxu0
  %v1323 = vadd.f32 %v1042, %v1322
  %v1324 = vpop.f32.mrb[0].mxu0
  %v1325 = vadd.f32 %v1044, %v1324
  %v1326 = vpop.f32.mrb[0].mxu0
  %v1327 = vadd.f32 %v1046, %v1326
  %1328 = vmatprep.mubr.bf16.mxu0 0
  %1329 = vmatmul.mubr.bf16.gmra.mrb[0].mxu0 %v815
  %v1330 = vpop.f32.mrb[0].mxu0
  %v1331 = vadd.f32 %v1050, %v1330
  %v1332 = vpop.f32.mrb[0].mxu0
  %v1333 = vadd.f32 %v1052, %v1332
  %v1334 = vpop.f32.mrb[0].mxu0
  %v1335 = vadd.f32 %v1054, %v1334
  %v1336 = vpop.f32.mrb[0].mxu0
  %v1337 = vadd.f32 %v1056, %v1336
  %1338 = vmatprep.mubr.bf16.mxu0 0
  %1339 = vmatmul.mubr.bf16.gmra.mrb[0].mxu0 %v818
  %v1340 = vpop.f32.mrb[0].mxu0
  %v1341 = vadd.f32 %v1060, %v1340
  %v1342 = vpop.f32.mrb[0].mxu0
  %v1343 = vadd.f32 %v1062, %v1342
  %v1344 = vpop.f32.mrb[0].mxu0
  %v1345 = vadd.f32 %v1064, %v1344
  %v1346 = vpop.f32.mrb[0].mxu0
  %v1347 = vadd.f32 %v1066, %v1346
  %1348 = vmatprep.mubr.bf16.mxu0 0
  %1349 = vmatmul.mubr.bf16.gmra.mrb[0].mxu0 %v821
  %v1350 = vpop.f32.mrb[0].mxu0
  %v1351 = vadd.f32 %v1070, %v1350
  %v1352 = vpop.f32.mrb[0].mxu0
  %v1353 = vadd.f32 %v1072, %v1352
  %v1354 = vpop.f32.mrb[0].mxu0
  %v1355 = vadd.f32 %v1074, %v1354
  %v1356 = vpop.f32.mrb[0].mxu0
  %v1357 = vadd.f32 %v1076, %v1356
  %1358 = vmatprep.mubr.bf16.mxu0 0
  %1359 = vmatmul.mubr.bf16.gmra.mrb[0].mxu0 %v824
  %v1360 = vpop.f32.mrb[0].mxu0
  %v1361 = vadd.f32 %v1080, %v1360
  %v1362 = vpop.f32.mrb[0].mxu0
  %v1363 = vadd.f32 %v1082, %v1362
  %v1364 = vpop.f32.mrb[0].mxu0
  %v1365 = vadd.f32 %v1084, %v1364
  %v1366 = vpop.f32.mrb[0].mxu0
  %v1367 = vadd.f32 %v1086, %v1366
  %1368 = vmatprep.mubr.bf16.mxu0 0
  %1369 = vmatmul.mubr.bf16.gmra.mrb[0].mxu0 %v827
  %v1370 = vpop.f32.mrb[0].mxu0
  %v1371 = vadd.f32 %v1090, %v1370
  %v1372 = vpop.f32.mrb[0].mxu0
  %v1373 = vadd.f32 %v1092, %v1372
  %v1374 = vpop.f32.mrb[0].mxu0
  %v1375 = vadd.f32 %v1094, %v1374
  %v1376 = vpop.f32.mrb[0].mxu0
  %v1377 = vadd.f32 %v1096, %v1376
  %1378 = vmatprep.mubr.bf16.mxu0 0
  %1379 = vmatmul.mubr.bf16.gmra.mrb[0].mxu0 %v830
  %v1380 = vpop.f32.mrb[0].mxu0
  %v1381 = vadd.f32 %v1100, %v1380
  %v1382 = vpop.f32.mrb[0].mxu0
  %v1383 = vadd.f32 %v1102, %v1382
  %v1384 = vpop.f32.mrb[0].mxu0
  %v1385 = vadd.f32 %v1104, %v1384
  %v1386 = vpop.f32.mrb[0].mxu0
  %v1387 = vadd.f32 %v1106, %v1386
  %1388 = vmatprep.mubr.bf16.mxu0 0
  %1389 = vmatmul.mubr.bf16.gmra.mrb[0].mxu0 %v833
  %v1390 = vpop.f32.mrb[0].mxu0
  %v1391 = vadd.f32 %v1110, %v1390
  %v1392 = vpop.f32.mrb[0].mxu0
  %v1393 = vadd.f32 %v1112, %v1392
  %v1394 = vpop.f32.mrb[0].mxu0
  %v1395 = vadd.f32 %v1114, %v1394
  %v1396 = vpop.f32.mrb[0].mxu0
  %v1397 = vadd.f32 %v1116, %v1396
  %1398 = vmatprep.mubr.bf16.mxu0 0
  %1399 = vmatmul.mubr.bf16.gmra.mrb[0].mxu0 %v836
  %v1400 = vpop.f32.mrb[0].mxu0
  %v1401 = vadd.f32 %v1120, %v1400
  %v1402 = vpop.f32.mrb[0].mxu0
  %v1403 = vadd.f32 %v1122, %v1402
  %v1404 = vpop.f32.mrb[0].mxu0
  %v1405 = vpop.f32.mrb[0].mxu0
  %1406 = vdwg.mxu0
  %v1407 = vmax.f32 %v1161, 0.0
  %v1408 = vmax.f32 %v1163, 0.0
  %v1409 = vmax.f32 %v1165, 0.0
  %v1410 = vmax.f32 %v1167, 0.0
  %v1411 = vmax.f32 %v1171, 0.0
  %v1412 = vmax.f32 %v1173, 0.0
  %v1413 = vmax.f32 %v1175, 0.0
  %v1414 = vmax.f32 %v1177, 0.0
  %v1415 = vmax.f32 %v1181, 0.0
  %v1416 = vmax.f32 %v1183, 0.0
  %v1417 = vmax.f32 %v1185, 0.0
  %v1418 = vmax.f32 %v1187, 0.0
  %v1419 = vmax.f32 %v1191, 0.0
  %v1420 = vmax.f32 %v1193, 0.0
  %v1421 = vmax.f32 %v1195, 0.0
  %v1422 = vmax.f32 %v1197, 0.0
  %v1423 = vmax.f32 %v1201, 0.0
  %v1424 = vmax.f32 %v1203, 0.0
  %v1425 = vmax.f32 %v1205, 0.0
  %v1426 = vmax.f32 %v1207, 0.0
  %v1427 = vmax.f32 %v1211, 0.0
  %v1428 = vmax.f32 %v1213, 0.0
  %v1429 = vmax.f32 %v1215, 0.0
  %v1430 = vmax.f32 %v1217, 0.0
  %v1431 = vmax.f32 %v1221, 0.0
  %v1432 = vmax.f32 %v1223, 0.0
  %v1433 = vmax.f32 %v1225, 0.0
  %v1434 = vmax.f32 %v1227, 0.0
  %v1435 = vmax.f32 %v1231, 0.0
  %v1436 = vmax.f32 %v1233, 0.0
  %v1437 = vmax.f32 %v1235, 0.0
  %v1438 = vmax.f32 %v1237, 0.0
  %v1439 = vmax.f32 %v1241, 0.0
  %v1440 = vmax.f32 %v1243, 0.0
  %v1441 = vmax.f32 %v1245, 0.0
  %v1442 = vmax.f32 %v1247, 0.0
  %v1443 = vmax.f32 %v1251, 0.0
  %v1444 = vmax.f32 %v1253, 0.0
  %v1445 = vmax.f32 %v1255, 0.0
  %v1446 = vmax.f32 %v1257, 0.0
  %v1447 = vmax.f32 %v1261, 0.0
  %v1448 = vmax.f32 %v1263, 0.0
  %v1449 = vmax.f32 %v1265, 0.0
  %v1450 = vmax.f32 %v1267, 0.0
  %v1451 = vmax.f32 %v1271, 0.0
  %v1452 = vmax.f32 %v1273, 0.0
  %v1453 = vmax.f32 %v1275, 0.0
  %v1454 = vmax.f32 %v1277, 0.0
  %v1455 = vmax.f32 %v1281, 0.0
  %v1456 = vmax.f32 %v1283, 0.0
  %v1457 = vmax.f32 %v1285, 0.0
  %v1458 = vmax.f32 %v1287, 0.0
  %v1459 = vmax.f32 %v1291, 0.0
  %v1460 = vmax.f32 %v1293, 0.0
  %v1461 = vmax.f32 %v1295, 0.0
  %v1462 = vmax.f32 %v1297, 0.0
  %v1463 = vmax.f32 %v1301, 0.0
  %v1464 = vmax.f32 %v1303, 0.0
  %v1465 = vmax.f32 %v1305, 0.0
  %v1466 = vmax.f32 %v1307, 0.0
  %v1467 = vmax.f32 %v1311, 0.0
  %v1468 = vmax.f32 %v1313, 0.0
  %v1469 = vmax.f32 %v1315, 0.0
  %v1470 = vmax.f32 %v1317, 0.0
  %v1471 = vmax.f32 %v1321, 0.0
  %v1472 = vmax.f32 %v1323, 0.0
  %v1473 = vmax.f32 %v1325, 0.0
  %v1474 = vmax.f32 %v1327, 0.0
  %v1475 = vmax.f32 %v1331, 0.0
  %v1476 = vmax.f32 %v1333, 0.0
  %v1477 = vmax.f32 %v1335, 0.0
  %v1478 = vmax.f32 %v1337, 0.0
  %v1479 = vmax.f32 %v1341, 0.0
  %v1480 = vmax.f32 %v1343, 0.0
  %v1481 = vmax.f32 %v1345, 0.0
  %v1482 = vmax.f32 %v1347, 0.0
  %v1483 = vmax.f32 %v1351, 0.0
  %v1484 = vmax.f32 %v1353, 0.0
  %v1485 = vmax.f32 %v1355, 0.0
  %v1486 = vmax.f32 %v1357, 0.0
  %v1487 = vmax.f32 %v1361, 0.0
  %v1488 = vmax.f32 %v1363, 0.0
  %v1489 = vmax.f32 %v1365, 0.0
  %v1490 = vmax.f32 %v1367, 0.0
  %v1491 = vmax.f32 %v1371, 0.0
  %v1492 = vmax.f32 %v1373, 0.0
  %v1493 = vmax.f32 %v1375, 0.0
  %v1494 = vmax.f32 %v1377, 0.0
  %v1495 = vmax.f32 %v1381, 0.0
  %v1496 = vmax.f32 %v1383, 0.0
  %v1497 = vmax.f32 %v1385, 0.0
  %v1498 = vmax.f32 %v1387, 0.0
  %v1499 = vmax.f32 %v1391, 0.0
  %v1500 = vmax.f32 %v1393, 0.0
  %v1501 = vmax.f32 %v1395, 0.0
  %v1502 = vmax.f32 %v1397, 0.0
  %v1503 = vmax.f32 %v1401, 0.0
  %v1504 = vmax.f32 %v1403, 0.0
  %v1505 = vpack.c.bf16 %v1409, %v1407
  %v1506 = vpack.c.bf16 %v1410, %v1408
  %v1507 = vpack.c.bf16 %v1413, %v1411
  %v1508 = vpack.c.bf16 %v1414, %v1412
  %v1509 = vpack.c.bf16 %v1417, %v1415
  %v1510 = vpack.c.bf16 %v1418, %v1416
  %v1511 = vpack.c.bf16 %v1421, %v1419
  %v1512 = vpack.c.bf16 %v1422, %v1420
  %v1513 = vpack.c.bf16 %v1425, %v1423
  %v1514 = vpack.c.bf16 %v1426, %v1424
  %v1515 = vpack.c.bf16 %v1429, %v1427
  %v1516 = vpack.c.bf16 %v1430, %v1428
  %v1517 = vpack.c.bf16 %v1433, %v1431
  %v1518 = vpack.c.bf16 %v1434, %v1432
  %v1519 = vpack.c.bf16 %v1437, %v1435
  %v1520 = vpack.c.bf16 %v1438, %v1436
  %v1521 = vpack.c.bf16 %v1441, %v1439
  %v1522 = vpack.c.bf16 %v1442, %v1440
  %v1523 = vpack.c.bf16 %v1445, %v1443
  %v1524 = vpack.c.bf16 %v1446, %v1444
  %v1525 = vpack.c.bf16 %v1449, %v1447
  %v1526 = vpack.c.bf16 %v1450, %v1448
  %v1527 = vpack.c.bf16 %v1453, %v1451
  %v1528 = vpack.c.bf16 %v1454, %v1452
  %v1529 = vpack.c.bf16 %v1457, %v1455
  %v1530 = vpack.c.bf16 %v1458, %v1456
  %v1531 = vpack.c.bf16 %v1461, %v1459
  %v1532 = vpack.c.bf16 %v1462, %v1460
  %v1533 = vpack.c.bf16 %v1465, %v1463
  %v1534 = vpack.c.bf16 %v1466, %v1464
  %v1535 = vpack.c.bf16 %v1469, %v1467
  %v1536 = vpack.c.bf16 %v1470, %v1468
  %v1537 = vpack.c.bf16 %v1473, %v1471
  %v1538 = vpack.c.bf16 %v1474, %v1472
  %v1539 = vpack.c.bf16 %v1477, %v1475
  %v1540 = vpack.c.bf16 %v1478, %v1476
  %v1541 = vpack.c.bf16 %v1481, %v1479
  %v1542 = vpack.c.bf16 %v1482, %v1480
  %v1543 = vpack.c.bf16 %v1485, %v1483
  %v1544 = vpack.c.bf16 %v1486, %v1484
  %v1545 = vpack.c.bf16 %v1489, %v1487
  %v1546 = vpack.c.bf16 %v1490, %v1488
  %v1547 = vpack.c.bf16 %v1493, %v1491
  %v1548 = vpack.c.bf16 %v1494, %v1492
  %v1549 = vpack.c.bf16 %v1497, %v1495
  %v1550 = vpack.c.bf16 %v1498, %v1496
  %v1551 = vpack.c.bf16 %v1501, %v1499
  %v1552 = vpack.c.bf16 %v1502, %v1500
  %v1553 = vpack.c.bf16 %v1503, %v1503
  %v1554 = vpack.c.bf16 %v1504, %v1504
  %v1555 = vld [vmem:[%s3] sm:$0xf]
  %v1556 = vld [vmem:[%s3 + $0x4] sm:$0xf]
  %v1557 = vld [vmem:[%s3 + $0x8] sm:$0xf]
  %v1558 = vld [vmem:[%s3 + $0xc] sm:$0xf]
  %v1559 = vld [vmem:[%s3 + $0x10] sm:$0xf]
  %v1560 = vld [vmem:[%s3 + $0x14] sm:$0xf]
  %v1561 = vld [vmem:[%s3 + $0x18] sm:$0xf]
  %v1562 = vld [vmem:[%s3 + $0x1c] sm:$0xf]
  %v1563 = vld [vmem:[%s3 + $0x20] sm:$0xf]
  %v1564 = vld [vmem:[%s3 + $0x24] sm:$0xf]
  %v1565 = vld [vmem:[%s3 + $0x28] sm:$0xf]
  %v1566 = vld [vmem:[%s3 + $0x2c] sm:$0xf]
  %v1567 = vld [vmem:[%s3 + $0x30] sm:$0xf]
  %v1568 = vld [vmem:[%s3 + $0x34] sm:$0xf]
  %v1569 = vld [vmem:[%s3 + $0x38] sm:$0xf]
  %v1570 = vld [vmem:[%s3 + $0x3c] sm:$0xf]
  %v1571 = vld [vmem:[%s3 + $0x40] sm:$0xf]
  %v1572 = vld [vmem:[%s3 + $0x44] sm:$0xf]
  %v1573 = vld [vmem:[%s4] sm:$0x1]
  %v1575 = vlaneseq
  %v1576 = vshrl.u32 %v1575, 7
  %v1577 = vsub.s32 0, %v1576
  %v1578 = vrot.slane %v1573, %v1577
  %v1598 = vunpack.c.l.b16 %v1555
  %v1599 = vunpack.c.l.b16 %v1556
  %v1600 = vunpack.c.l.b16 %v1557
  %v1601 = vunpack.c.l.b16 %v1558
  %v1602 = vunpack.c.l.b16 %v1559
  %v1603 = vunpack.c.l.b16 %v1560
  %v1604 = vunpack.c.l.b16 %v1561
  %v1605 = vunpack.c.l.b16 %v1562
  %v1606 = vunpack.c.l.b16 %v1563
  %v1607 = vunpack.c.l.b16 %v1564
  %v1608 = vunpack.c.l.b16 %v1565
  %v1609 = vunpack.c.l.b16 %v1566
  %v1610 = vunpack.c.l.b16 %v1567
  %v1611 = vunpack.c.l.b16 %v1568
  %v1612 = vunpack.c.l.b16 %v1569
  %v1613 = vunpack.c.l.b16 %v1570
  %v1614 = vunpack.c.l.b16 %v1571
  %v1615 = vunpack.c.l.b16 %v1572
  %v1616 = vpack.c.b16 %v1599, %v1598
  %v1617 = vpack.c.b16 %v1601, %v1600
  %v1618 = vpack.c.b16 %v1603, %v1602
  %v1619 = vpack.c.b16 %v1605, %v1604
  %v1620 = vpack.c.b16 %v1607, %v1606
  %v1621 = vpack.c.b16 %v1609, %v1608
  %v1622 = vpack.c.b16 %v1611, %v1610
  %v1623 = vpack.c.b16 %v1613, %v1612
  %v1624 = vpack.c.b16 %v1615, %v1614
  %vm1634 = vcmask 130048
  %v1636 = vsel %vm1634, %v1506, 0
  %v1639 = vsel %vm1634, %v1508, 0
  %v1642 = vsel %vm1634, %v1510, 0
  %v1645 = vsel %vm1634, %v1512, 0
  %v1648 = vsel %vm1634, %v1514, 0
  %v1651 = vsel %vm1634, %v1516, 0
  %v1654 = vsel %vm1634, %v1518, 0
  %v1657 = vsel %vm1634, %v1520, 0
  %v1660 = vsel %vm1634, %v1522, 0
  %v1663 = vsel %vm1634, %v1524, 0
  %v1666 = vsel %vm1634, %v1526, 0
  %v1669 = vsel %vm1634, %v1528, 0
  %v1672 = vsel %vm1634, %v1530, 0
  %v1675 = vsel %vm1634, %v1532, 0
  %v1678 = vsel %vm1634, %v1534, 0
  %v1681 = vsel %vm1634, %v1536, 0
  %v1684 = vsel %vm1634, %v1538, 0
  %v1687 = vsel %vm1634, %v1540, 0
  %v1690 = vsel %vm1634, %v1542, 0
  %v1693 = vsel %vm1634, %v1544, 0
  %v1696 = vsel %vm1634, %v1546, 0
  %v1699 = vsel %vm1634, %v1548, 0
  %v1702 = vsel %vm1634, %v1550, 0
  %v1705 = vsel %vm1634, %v1552, 0
  %v1708 = vsel %vm1634, %v1554, 0
  %1710 = vmatprep.subr.bf16.mxu0 0
  %1711 = vmatpush1.bf16.msra.mxu0 %v1616
  %1712 = vmatprep.subr.bf16.mxu0 0
  %1713 = vmatpush1.bf16.msra.mxu0 %v1617
  %1714 = vmatprep.subr.bf16.mxu0 0
  %1715 = vmatpush1.bf16.msra.mxu0 %v1618
  %1716 = vmatprep.subr.bf16.mxu0 0
  %1717 = vmatpush1.bf16.msra.mxu0 %v1619
  %1718 = vmatprep.subr.bf16.mxu0 0
  %1719 = vmatpush1.bf16.msra.mxu0 %v1620
  %1720 = vmatprep.subr.bf16.mxu0 0
  %1721 = vmatpush1.bf16.msra.mxu0 %v1621
  %1722 = vmatprep.subr.bf16.mxu0 0
  %1723 = vmatpush1.bf16.msra.mxu0 %v1622
  %1724 = vmatprep.subr.bf16.mxu0 0
  %1725 = vmatpush1.bf16.msra.mxu0 %v1623
  %1726 = vmatprep.subr.bf16.mxu0 0
  %1727 = vmatpush1.bf16.msra.mxu0 %v1624
  %1728 = vmatprep.subr.bf16.mxu0 0
  %1729 = vmatpush1.bf16.msra.mxu0 0
  %1730 = vmatprep.subr.bf16.mxu0 0
  %1731 = vmatpush1.bf16.msra.mxu0 0
  %1732 = vmatprep.subr.bf16.mxu0 0
  %1733 = vmatpush1.bf16.msra.mxu0 0
  %1734 = vmatprep.subr.bf16.mxu0 0
  %1735 = vmatpush1.bf16.msra.mxu0 0
  %1736 = vmatprep.subr.bf16.mxu0 0
  %1737 = vmatpush1.bf16.msra.mxu0 0
  %1738 = vmatprep.subr.bf16.mxu0 0
  %1739 = vmatpush1.bf16.msra.mxu0 0
  %1740 = vmatprep.subr.bf16.mxu0 0
  %1741 = vmatpush1.bf16.msra.mxu0 0
  %1742 = vmatprep.mubr.bf16.mxu0 %v1636
  %1743 = vmatmul.mubr.bf16.gmra.mrb[0].mxu0 %v1505
  %v1744 = vpop.f32.mrb[0].mxu0
  %v1745 = vadd.f32 %v1578, %v1744
  %v1746 = vpop.f32.mrb[0].mxu0
  %v1747 = vpop.f32.mrb[0].mxu0
  %v1748 = vadd.f32 %v1578, %v1747
  %v1749 = vpop.f32.mrb[0].mxu0
  %1750 = vmatprep.mubr.bf16.mxu0 %v1639
  %1751 = vmatmul.mubr.bf16.gmra.mrb[0].mxu0 %v1507
  %v1752 = vpop.f32.mrb[0].mxu0
  %v1753 = vadd.f32 %v1578, %v1752
  %v1754 = vpop.f32.mrb[0].mxu0
  %v1755 = vpop.f32.mrb[0].mxu0
  %v1756 = vadd.f32 %v1578, %v1755
  %v1757 = vpop.f32.mrb[0].mxu0
  %1758 = vmatprep.mubr.bf16.mxu0 %v1642
  %1759 = vmatmul.mubr.bf16.gmra.mrb[0].mxu0 %v1509
  %v1760 = vpop.f32.mrb[0].mxu0
  %v1761 = vadd.f32 %v1578, %v1760
  %v1762 = vpop.f32.mrb[0].mxu0
  %v1763 = vpop.f32.mrb[0].mxu0
  %v1764 = vadd.f32 %v1578, %v1763
  %v1765 = vpop.f32.mrb[0].mxu0
  %1766 = vmatprep.mubr.bf16.mxu0 %v1645
  %1767 = vmatmul.mubr.bf16.gmra.mrb[0].mxu0 %v1511
  %v1768 = vpop.f32.mrb[0].mxu0
  %v1769 = vadd.f32 %v1578, %v1768
  %v1770 = vpop.f32.mrb[0].mxu0
  %v1771 = vpop.f32.mrb[0].mxu0
  %v1772 = vadd.f32 %v1578, %v1771
  %v1773 = vpop.f32.mrb[0].mxu0
  %1774 = vmatprep.mubr.bf16.mxu0 %v1648
  %1775 = vmatmul.mubr.bf16.gmra.mrb[0].mxu0 %v1513
  %v1776 = vpop.f32.mrb[0].mxu0
  %v1777 = vadd.f32 %v1578, %v1776
  %v1778 = vpop.f32.mrb[0].mxu0
  %v1779 = vpop.f32.mrb[0].mxu0
  %v1780 = vadd.f32 %v1578, %v1779
  %v1781 = vpop.f32.mrb[0].mxu0
  %1782 = vmatprep.mubr.bf16.mxu0 %v1651
  %1783 = vmatmul.mubr.bf16.gmra.mrb[0].mxu0 %v1515
  %v1784 = vpop.f32.mrb[0].mxu0
  %v1785 = vadd.f32 %v1578, %v1784
  %v1786 = vpop.f32.mrb[0].mxu0
  %v1787 = vpop.f32.mrb[0].mxu0
  %v1788 = vadd.f32 %v1578, %v1787
  %v1789 = vpop.f32.mrb[0].mxu0
  %1790 = vmatprep.mubr.bf16.mxu0 %v1654
  %1791 = vmatmul.mubr.bf16.gmra.mrb[0].mxu0 %v1517
  %v1792 = vpop.f32.mrb[0].mxu0
  %v1793 = vadd.f32 %v1578, %v1792
  %v1794 = vpop.f32.mrb[0].mxu0
  %v1795 = vpop.f32.mrb[0].mxu0
  %v1796 = vadd.f32 %v1578, %v1795
  %v1797 = vpop.f32.mrb[0].mxu0
  %1798 = vmatprep.mubr.bf16.mxu0 %v1657
  %1799 = vmatmul.mubr.bf16.gmra.mrb[0].mxu0 %v1519
  %v1800 = vpop.f32.mrb[0].mxu0
  %v1801 = vadd.f32 %v1578, %v1800
  %v1802 = vpop.f32.mrb[0].mxu0
  %v1803 = vpop.f32.mrb[0].mxu0
  %v1804 = vadd.f32 %v1578, %v1803
  %v1805 = vpop.f32.mrb[0].mxu0
  %1806 = vmatprep.mubr.bf16.mxu0 %v1660
  %1807 = vmatmul.mubr.bf16.gmra.mrb[0].mxu0 %v1521
  %v1808 = vpop.f32.mrb[0].mxu0
  %v1809 = vadd.f32 %v1578, %v1808
  %v1810 = vpop.f32.mrb[0].mxu0
  %v1811 = vpop.f32.mrb[0].mxu0
  %v1812 = vadd.f32 %v1578, %v1811
  %v1813 = vpop.f32.mrb[0].mxu0
  %1814 = vmatprep.mubr.bf16.mxu0 %v1663
  %1815 = vmatmul.mubr.bf16.gmra.mrb[0].mxu0 %v1523
  %v1816 = vpop.f32.mrb[0].mxu0
  %v1817 = vadd.f32 %v1578, %v1816
  %v1818 = vpop.f32.mrb[0].mxu0
  %v1819 = vpop.f32.mrb[0].mxu0
  %v1820 = vadd.f32 %v1578, %v1819
  %v1821 = vpop.f32.mrb[0].mxu0
  %1822 = vmatprep.mubr.bf16.mxu0 %v1666
  %1823 = vmatmul.mubr.bf16.gmra.mrb[0].mxu0 %v1525
  %v1824 = vpop.f32.mrb[0].mxu0
  %v1825 = vadd.f32 %v1578, %v1824
  %v1826 = vpop.f32.mrb[0].mxu0
  %v1827 = vpop.f32.mrb[0].mxu0
  %v1828 = vadd.f32 %v1578, %v1827
  %v1829 = vpop.f32.mrb[0].mxu0
  %1830 = vmatprep.mubr.bf16.mxu0 %v1669
  %1831 = vmatmul.mubr.bf16.gmra.mrb[0].mxu0 %v1527
  %v1832 = vpop.f32.mrb[0].mxu0
  %v1833 = vadd.f32 %v1578, %v1832
  %v1834 = vpop.f32.mrb[0].mxu0
  %v1835 = vpop.f32.mrb[0].mxu0
  %v1836 = vadd.f32 %v1578, %v1835
  %v1837 = vpop.f32.mrb[0].mxu0
  %1838 = vmatprep.mubr.bf16.mxu0 %v1672
  %1839 = vmatmul.mubr.bf16.gmra.mrb[0].mxu0 %v1529
  %v1840 = vpop.f32.mrb[0].mxu0
  %v1841 = vadd.f32 %v1578, %v1840
  %v1842 = vpop.f32.mrb[0].mxu0
  %v1843 = vpop.f32.mrb[0].mxu0
  %v1844 = vadd.f32 %v1578, %v1843
  %v1845 = vpop.f32.mrb[0].mxu0
  %1846 = vmatprep.mubr.bf16.mxu0 %v1675
  %1847 = vmatmul.mubr.bf16.gmra.mrb[0].mxu0 %v1531
  %v1848 = vpop.f32.mrb[0].mxu0
  %v1849 = vadd.f32 %v1578, %v1848
  %v1850 = vpop.f32.mrb[0].mxu0
  %v1851 = vpop.f32.mrb[0].mxu0
  %v1852 = vadd.f32 %v1578, %v1851
  %v1853 = vpop.f32.mrb[0].mxu0
  %1854 = vmatprep.mubr.bf16.mxu0 %v1678
  %1855 = vmatmul.mubr.bf16.gmra.mrb[0].mxu0 %v1533
  %v1856 = vpop.f32.mrb[0].mxu0
  %v1857 = vadd.f32 %v1578, %v1856
  %v1858 = vpop.f32.mrb[0].mxu0
  %v1859 = vpop.f32.mrb[0].mxu0
  %v1860 = vadd.f32 %v1578, %v1859
  %v1861 = vpop.f32.mrb[0].mxu0
  %1862 = vmatprep.mubr.bf16.mxu0 %v1681
  %1863 = vmatmul.mubr.bf16.gmra.mrb[0].mxu0 %v1535
  %v1864 = vpop.f32.mrb[0].mxu0
  %v1865 = vadd.f32 %v1578, %v1864
  %v1866 = vpop.f32.mrb[0].mxu0
  %v1867 = vpop.f32.mrb[0].mxu0
  %v1868 = vadd.f32 %v1578, %v1867
  %v1869 = vpop.f32.mrb[0].mxu0
  %1870 = vmatprep.mubr.bf16.mxu0 %v1684
  %1871 = vmatmul.mubr.bf16.gmra.mrb[0].mxu0 %v1537
  %v1872 = vpop.f32.mrb[0].mxu0
  %v1873 = vadd.f32 %v1578, %v1872
  %v1874 = vpop.f32.mrb[0].mxu0
  %v1875 = vpop.f32.mrb[0].mxu0
  %v1876 = vadd.f32 %v1578, %v1875
  %v1877 = vpop.f32.mrb[0].mxu0
  %1878 = vmatprep.mubr.bf16.mxu0 %v1687
  %1879 = vmatmul.mubr.bf16.gmra.mrb[0].mxu0 %v1539
  %v1880 = vpop.f32.mrb[0].mxu0
  %v1881 = vadd.f32 %v1578, %v1880
  %v1882 = vpop.f32.mrb[0].mxu0
  %v1883 = vpop.f32.mrb[0].mxu0
  %v1884 = vadd.f32 %v1578, %v1883
  %v1885 = vpop.f32.mrb[0].mxu0
  %1886 = vmatprep.mubr.bf16.mxu0 %v1690
  %1887 = vmatmul.mubr.bf16.gmra.mrb[0].mxu0 %v1541
  %v1888 = vpop.f32.mrb[0].mxu0
  %v1889 = vadd.f32 %v1578, %v1888
  %v1890 = vpop.f32.mrb[0].mxu0
  %v1891 = vpop.f32.mrb[0].mxu0
  %v1892 = vadd.f32 %v1578, %v1891
  %v1893 = vpop.f32.mrb[0].mxu0
  %1894 = vmatprep.mubr.bf16.mxu0 %v1693
  %1895 = vmatmul.mubr.bf16.gmra.mrb[0].mxu0 %v1543
  %v1896 = vpop.f32.mrb[0].mxu0
  %v1897 = vadd.f32 %v1578, %v1896
  %v1898 = vpop.f32.mrb[0].mxu0
  %v1899 = vpop.f32.mrb[0].mxu0
  %v1900 = vadd.f32 %v1578, %v1899
  %v1901 = vpop.f32.mrb[0].mxu0
  %1902 = vmatprep.mubr.bf16.mxu0 %v1696
  %1903 = vmatmul.mubr.bf16.gmra.mrb[0].mxu0 %v1545
  %v1904 = vpop.f32.mrb[0].mxu0
  %v1905 = vadd.f32 %v1578, %v1904
  %v1906 = vpop.f32.mrb[0].mxu0
  %v1907 = vpop.f32.mrb[0].mxu0
  %v1908 = vadd.f32 %v1578, %v1907
  %v1909 = vpop.f32.mrb[0].mxu0
  %1910 = vmatprep.mubr.bf16.mxu0 %v1699
  %1911 = vmatmul.mubr.bf16.gmra.mrb[0].mxu0 %v1547
  %v1912 = vpop.f32.mrb[0].mxu0
  %v1913 = vadd.f32 %v1578, %v1912
  %v1914 = vpop.f32.mrb[0].mxu0
  %v1915 = vpop.f32.mrb[0].mxu0
  %v1916 = vadd.f32 %v1578, %v1915
  %v1917 = vpop.f32.mrb[0].mxu0
  %1918 = vmatprep.mubr.bf16.mxu0 %v1702
  %1919 = vmatmul.mubr.bf16.gmra.mrb[0].mxu0 %v1549
  %v1920 = vpop.f32.mrb[0].mxu0
  %v1921 = vadd.f32 %v1578, %v1920
  %v1922 = vpop.f32.mrb[0].mxu0
  %v1923 = vpop.f32.mrb[0].mxu0
  %v1924 = vadd.f32 %v1578, %v1923
  %v1925 = vpop.f32.mrb[0].mxu0
  %1926 = vmatprep.mubr.bf16.mxu0 %v1705
  %1927 = vmatmul.mubr.bf16.gmra.mrb[0].mxu0 %v1551
  %v1928 = vpop.f32.mrb[0].mxu0
  %v1929 = vadd.f32 %v1578, %v1928
  %v1930 = vpop.f32.mrb[0].mxu0
  %v1931 = vpop.f32.mrb[0].mxu0
  %v1932 = vadd.f32 %v1578, %v1931
  %v1933 = vpop.f32.mrb[0].mxu0
  %1934 = vmatprep.mubr.bf16.mxu0 %v1708
  %1935 = vmatmul.mubr.bf16.gmra.mrb[0].mxu0 %v1553
  %v1936 = vpop.f32.mrb[0].mxu0
  %v1937 = vadd.f32 %v1578, %v1936
  %v1938 = vpop.f32.mrb[0].mxu0
  %v1939 = vpop.f32.mrb[0].mxu0
  %v1940 = vpop.f32.mrb[0].mxu0
  %1941 = vdwg.mxu0
  %v1942 = vmax.f32 %v1745, 0.0
  %v1943 = vmax.f32 %v1748, 0.0
  %v1944 = vmax.f32 %v1753, 0.0
  %v1945 = vmax.f32 %v1756, 0.0
  %v1946 = vmax.f32 %v1761, 0.0
  %v1947 = vmax.f32 %v1764, 0.0
  %v1948 = vmax.f32 %v1769, 0.0
  %v1949 = vmax.f32 %v1772, 0.0
  %v1950 = vmax.f32 %v1777, 0.0
  %v1951 = vmax.f32 %v1780, 0.0
  %v1952 = vmax.f32 %v1785, 0.0
  %v1953 = vmax.f32 %v1788, 0.0
  %v1954 = vmax.f32 %v1793, 0.0
  %v1955 = vmax.f32 %v1796, 0.0
  %v1956 = vmax.f32 %v1801, 0.0
  %v1957 = vmax.f32 %v1804, 0.0
  %v1958 = vmax.f32 %v1809, 0.0
  %v1959 = vmax.f32 %v1812, 0.0
  %v1960 = vmax.f32 %v1817, 0.0
  %v1961 = vmax.f32 %v1820, 0.0
  %v1962 = vmax.f32 %v1825, 0.0
  %v1963 = vmax.f32 %v1828, 0.0
  %v1964 = vmax.f32 %v1833, 0.0
  %v1965 = vmax.f32 %v1836, 0.0
  %v1966 = vmax.f32 %v1841, 0.0
  %v1967 = vmax.f32 %v1844, 0.0
  %v1968 = vmax.f32 %v1849, 0.0
  %v1969 = vmax.f32 %v1852, 0.0
  %v1970 = vmax.f32 %v1857, 0.0
  %v1971 = vmax.f32 %v1860, 0.0
  %v1972 = vmax.f32 %v1865, 0.0
  %v1973 = vmax.f32 %v1868, 0.0
  %v1974 = vmax.f32 %v1873, 0.0
  %v1975 = vmax.f32 %v1876, 0.0
  %v1976 = vmax.f32 %v1881, 0.0
  %v1977 = vmax.f32 %v1884, 0.0
  %v1978 = vmax.f32 %v1889, 0.0
  %v1979 = vmax.f32 %v1892, 0.0
  %v1980 = vmax.f32 %v1897, 0.0
  %v1981 = vmax.f32 %v1900, 0.0
  %v1982 = vmax.f32 %v1905, 0.0
  %v1983 = vmax.f32 %v1908, 0.0
  %v1984 = vmax.f32 %v1913, 0.0
  %v1985 = vmax.f32 %v1916, 0.0
  %v1986 = vmax.f32 %v1921, 0.0
  %v1987 = vmax.f32 %v1924, 0.0
  %v1988 = vmax.f32 %v1929, 0.0
  %v1989 = vmax.f32 %v1932, 0.0
  %v1990 = vmax.f32 %v1937, 0.0
  %v1991 = vpack.c.bf16 %v1943, %v1942
  %v1992 = vpack.c.bf16 %v1945, %v1944
  %v1993 = vpack.c.bf16 %v1947, %v1946
  %v1994 = vpack.c.bf16 %v1949, %v1948
  %v1995 = vpack.c.bf16 %v1951, %v1950
  %v1996 = vpack.c.bf16 %v1953, %v1952
  %v1997 = vpack.c.bf16 %v1955, %v1954
  %v1998 = vpack.c.bf16 %v1957, %v1956
  %v1999 = vpack.c.bf16 %v1959, %v1958
  %v2000 = vpack.c.bf16 %v1961, %v1960
  %v2001 = vpack.c.bf16 %v1963, %v1962
  %v2002 = vpack.c.bf16 %v1965, %v1964
  %v2003 = vpack.c.bf16 %v1967, %v1966
  %v2004 = vpack.c.bf16 %v1969, %v1968
  %v2005 = vpack.c.bf16 %v1971, %v1970
  %v2006 = vpack.c.bf16 %v1973, %v1972
  %v2007 = vpack.c.bf16 %v1975, %v1974
  %v2008 = vpack.c.bf16 %v1977, %v1976
  %v2009 = vpack.c.bf16 %v1979, %v1978
  %v2010 = vpack.c.bf16 %v1981, %v1980
  %v2011 = vpack.c.bf16 %v1983, %v1982
  %v2012 = vpack.c.bf16 %v1985, %v1984
  %v2013 = vpack.c.bf16 %v1987, %v1986
  %v2014 = vpack.c.bf16 %v1989, %v1988
  %v2015 = vpack.c.bf16 %v1990, %v1990
  %v2016 = vld [vmem:[%s5] sm:$0xff]
  %v2017 = vld [vmem:[%s5 + $0x8] sm:$0xff]
  %v2018 = vld [vmem:[%s5 + $0x10] sm:$0xff]
  %v2019 = vld [vmem:[%s5 + $0x18] sm:$0xff]
  %v2020 = vld [vmem:[%s5 + $0x20] sm:$0xff]
  %v2021 = vld [vmem:[%s5 + $0x28] sm:$0xff]
  %v2022 = vld [vmem:[%s5 + $0x30] sm:$0xff]
  %v2023 = vld [vmem:[%s5 + $0x38] sm:$0xff]
  %v2024 = vld [vmem:[%s5 + $0x40] sm:$0xff]
  %v2025 = vld [vmem:[%s5 + $0x48] sm:$0xff]
  %v2026 = vld [vmem:[%s5 + $0x50] sm:$0xff]
  %v2027 = vld [vmem:[%s5 + $0x58] sm:$0xff]
  %v2028 = vld [vmem:[%s5 + $0x60] sm:$0xff]
  %v2029 = vld [vmem:[%s5 + $0x68] sm:$0xff]
  %v2030 = vld [vmem:[%s5 + $0x70] sm:$0xff]
  %v2031 = vld [vmem:[%s5 + $0x78] sm:$0xff]
  %v2032 = vld [vmem:[%s5 + $0x80] sm:$0xff]
  %v2033 = vld [vmem:[%s5 + $0x88] sm:$0xff]
  %v2052 = vunpack.c.l.b16 %v2016
  %v2053 = vunpack.c.h.b16 %v2016
  %v2054 = vunpack.c.l.b16 %v2017
  %v2055 = vunpack.c.h.b16 %v2017
  %v2056 = vunpack.c.l.b16 %v2018
  %v2057 = vunpack.c.h.b16 %v2018
  %v2058 = vunpack.c.l.b16 %v2019
  %v2059 = vunpack.c.h.b16 %v2019
  %v2060 = vunpack.c.l.b16 %v2020
  %v2061 = vunpack.c.h.b16 %v2020
  %v2062 = vunpack.c.l.b16 %v2021
  %v2063 = vunpack.c.h.b16 %v2021
  %v2064 = vunpack.c.l.b16 %v2022
  %v2065 = vunpack.c.h.b16 %v2022
  %v2066 = vunpack.c.l.b16 %v2023
  %v2067 = vunpack.c.h.b16 %v2023
  %v2068 = vunpack.c.l.b16 %v2024
  %v2069 = vunpack.c.h.b16 %v2024
  %v2070 = vunpack.c.l.b16 %v2025
  %v2071 = vunpack.c.h.b16 %v2025
  %v2072 = vunpack.c.l.b16 %v2026
  %v2073 = vunpack.c.h.b16 %v2026
  %v2074 = vunpack.c.l.b16 %v2027
  %v2075 = vunpack.c.h.b16 %v2027
  %v2076 = vunpack.c.l.b16 %v2028
  %v2077 = vunpack.c.h.b16 %v2028
  %v2078 = vunpack.c.l.b16 %v2029
  %v2079 = vunpack.c.h.b16 %v2029
  %v2080 = vunpack.c.l.b16 %v2030
  %v2081 = vunpack.c.h.b16 %v2030
  %v2082 = vunpack.c.l.b16 %v2031
  %v2083 = vunpack.c.h.b16 %v2031
  %v2084 = vunpack.c.l.b16 %v2032
  %v2085 = vunpack.c.h.b16 %v2032
  %v2086 = vunpack.c.l.b16 %v2033
  %v2087 = vunpack.c.h.b16 %v2033
  %v2088 = vpack.c.b16 %v2056, %v2052
  %v2089 = vpack.c.b16 %v2057, %v2053
  %v2090 = vpack.c.b16 %v2058, %v2054
  %v2091 = vpack.c.b16 %v2059, %v2055
  %v2092 = vpack.c.b16 %v2064, %v2060
  %v2093 = vpack.c.b16 %v2065, %v2061
  %v2094 = vpack.c.b16 %v2066, %v2062
  %v2095 = vpack.c.b16 %v2067, %v2063
  %v2096 = vpack.c.b16 %v2072, %v2068
  %v2097 = vpack.c.b16 %v2073, %v2069
  %v2098 = vpack.c.b16 %v2074, %v2070
  %v2099 = vpack.c.b16 %v2075, %v2071
  %v2100 = vpack.c.b16 %v2080, %v2076
  %v2101 = vpack.c.b16 %v2081, %v2077
  %v2102 = vpack.c.b16 %v2082, %v2078
  %v2103 = vpack.c.b16 %v2083, %v2079
  %v2104 = vpack.c.b16 %v2084, %v2084
  %v2105 = vpack.c.b16 %v2085, %v2085
  %v2106 = vpack.c.b16 %v2086, %v2086
  %v2107 = vpack.c.b16 %v2087, %v2087
  %vm2123 = vcmask 64512
  %v2125 = vsel %vm2123, %v2091, 0
  %v2128 = vsel %vm2123, %v2095, 0
  %v2131 = vsel %vm2123, %v2099, 0
  %v2134 = vsel %vm2123, %v2103, 0
  %v2137 = vsel %vm2123, %v2107, 0
  %vm2139 = vcmask 1043456
  %v2141 = vsel %vm2139, %v2015, 0
  %2143 = vmatprep.subr.bf16.mxu0 0
  %2144 = vmatpush1.bf16.msra.mxu0 %v1991
  %2145 = vmatprep.subr.bf16.mxu0 0
  %2146 = vmatpush1.bf16.msra.mxu0 %v1992
  %2147 = vmatprep.subr.bf16.mxu0 0
  %2148 = vmatpush1.bf16.msra.mxu0 %v1993
  %2149 = vmatprep.subr.bf16.mxu0 0
  %2150 = vmatpush1.bf16.msra.mxu0 %v1994
  %2151 = vmatprep.subr.bf16.mxu0 0
  %2152 = vmatpush1.bf16.msra.mxu0 %v1995
  %2153 = vmatprep.subr.bf16.mxu0 0
  %2154 = vmatpush1.bf16.msra.mxu0 %v1996
  %2155 = vmatprep.subr.bf16.mxu0 0
  %2156 = vmatpush1.bf16.msra.mxu0 %v1997
  %2157 = vmatprep.subr.bf16.mxu0 0
  %2158 = vmatpush1.bf16.msra.mxu0 %v1998
  %2159 = vmatprep.subr.bf16.mxu0 0
  %2160 = vmatpush1.bf16.msra.mxu0 %v1999
  %2161 = vmatprep.subr.bf16.mxu0 0
  %2162 = vmatpush1.bf16.msra.mxu0 %v2000
  %2163 = vmatprep.subr.bf16.mxu0 0
  %2164 = vmatpush1.bf16.msra.mxu0 %v2001
  %2165 = vmatprep.subr.bf16.mxu0 0
  %2166 = vmatpush1.bf16.msra.mxu0 %v2002
  %2167 = vmatprep.subr.bf16.mxu0 0
  %2168 = vmatpush1.bf16.msra.mxu0 %v2003
  %2169 = vmatprep.subr.bf16.mxu0 0
  %2170 = vmatpush1.bf16.msra.mxu0 %v2004
  %2171 = vmatprep.subr.bf16.mxu0 0
  %2172 = vmatpush1.bf16.msra.mxu0 %v2005
  %2173 = vmatprep.subr.bf16.mxu0 0
  %2174 = vmatpush1.bf16.msra.mxu0 %v2006
  %2175 = vmatprep.mubr.bf16.mxu0 %v2089
  %2176 = vmatmul.mubr.bf16.gmra.mrb[0].mxu0 %v2088
  %v2177 = vpop.f32.mrb[0].mxu0
  %v2178 = vadd.f32 0.0, %v2177
  %v2179 = vpop.f32.mrb[0].mxu0
  %v2180 = vpop.f32.mrb[0].mxu0
  %v2181 = vadd.f32 0.0, %v2180
  %v2182 = vpop.f32.mrb[0].mxu0
  %2183 = vmatprep.mubr.bf16.mxu0 %v2093
  %2184 = vmatmul.mubr.bf16.gmra.mrb[0].mxu0 %v2092
  %v2185 = vpop.f32.mrb[0].mxu0
  %v2186 = vadd.f32 0.0, %v2185
  %v2187 = vpop.f32.mrb[0].mxu0
  %v2188 = vpop.f32.mrb[0].mxu0
  %v2189 = vadd.f32 0.0, %v2188
  %v2190 = vpop.f32.mrb[0].mxu0
  %2191 = vmatprep.mubr.bf16.mxu0 %v2097
  %2192 = vmatmul.mubr.bf16.gmra.mrb[0].mxu0 %v2096
  %v2193 = vpop.f32.mrb[0].mxu0
  %v2194 = vadd.f32 0.0, %v2193
  %v2195 = vpop.f32.mrb[0].mxu0
  %v2196 = vpop.f32.mrb[0].mxu0
  %v2197 = vadd.f32 0.0, %v2196
  %v2198 = vpop.f32.mrb[0].mxu0
  %2199 = vmatprep.mubr.bf16.mxu0 %v2101
  %2200 = vmatmul.mubr.bf16.gmra.mrb[0].mxu0 %v2100
  %v2201 = vpop.f32.mrb[0].mxu0
  %v2202 = vadd.f32 0.0, %v2201
  %v2203 = vpop.f32.mrb[0].mxu0
  %v2204 = vpop.f32.mrb[0].mxu0
  %v2205 = vadd.f32 0.0, %v2204
  %v2206 = vpop.f32.mrb[0].mxu0
  %2207 = vmatprep.mubr.bf16.mxu0 %v2105
  %2208 = vmatmul.mubr.bf16.gmra.mrb[0].mxu0 %v2104
  %v2209 = vpop.f32.mrb[0].mxu0
  %v2210 = vadd.f32 0.0, %v2209
  %v2211 = vpop.f32.mrb[0].mxu0
  %v2212 = vpop.f32.mrb[0].mxu0
  %v2213 = vpop.f32.mrb[0].mxu0
  %2214 = vdwg.mxu0
  %2215 = vmatprep.subr.bf16.mxu0 0
  %2216 = vmatpush1.bf16.msra.mxu0 %v2007
  %2217 = vmatprep.subr.bf16.mxu0 0
  %2218 = vmatpush1.bf16.msra.mxu0 %v2008
  %2219 = vmatprep.subr.bf16.mxu0 0
  %2220 = vmatpush1.bf16.msra.mxu0 %v2009
  %2221 = vmatprep.subr.bf16.mxu0 0
  %2222 = vmatpush1.bf16.msra.mxu0 %v2010
  %2223 = vmatprep.subr.bf16.mxu0 0
  %2224 = vmatpush1.bf16.msra.mxu0 %v2011
  %2225 = vmatprep.subr.bf16.mxu0 0
  %2226 = vmatpush1.bf16.msra.mxu0 %v2012
  %2227 = vmatprep.subr.bf16.mxu0 0
  %2228 = vmatpush1.bf16.msra.mxu0 %v2013
  %2229 = vmatprep.subr.bf16.mxu0 0
  %2230 = vmatpush1.bf16.msra.mxu0 %v2014
  %2231 = vmatprep.subr.bf16.mxu0 0
  %2232 = vmatpush1.bf16.msra.mxu0 %v2141
  %2233 = vmatprep.subr.bf16.mxu0 0
  %2234 = vmatpush1.bf16.msra.mxu0 0
  %2235 = vmatprep.subr.bf16.mxu0 0
  %2236 = vmatpush1.bf16.msra.mxu0 0
  %2237 = vmatprep.subr.bf16.mxu0 0
  %2238 = vmatpush1.bf16.msra.mxu0 0
  %2239 = vmatprep.subr.bf16.mxu0 0
  %2240 = vmatpush1.bf16.msra.mxu0 0
  %2241 = vmatprep.subr.bf16.mxu0 0
  %2242 = vmatpush1.bf16.msra.mxu0 0
  %2243 = vmatprep.subr.bf16.mxu0 0
  %2244 = vmatpush1.bf16.msra.mxu0 0
  %2245 = vmatprep.subr.bf16.mxu0 0
  %2246 = vmatpush1.bf16.msra.mxu0 0
  %2247 = vmatprep.mubr.bf16.mxu0 %v2125
  %2248 = vmatmul.mubr.bf16.gmra.mrb[0].mxu0 %v2090
  %v2249 = vpop.f32.mrb[0].mxu0
  %v2250 = vadd.f32 %v2178, %v2249
  %v2251 = vpop.f32.mrb[0].mxu0
  %v2252 = vpop.f32.mrb[0].mxu0
  %v2253 = vadd.f32 %v2181, %v2252
  %v2254 = vpop.f32.mrb[0].mxu0
  %2255 = vmatprep.mubr.bf16.mxu0 %v2128
  %2256 = vmatmul.mubr.bf16.gmra.mrb[0].mxu0 %v2094
  %v2257 = vpop.f32.mrb[0].mxu0
  %v2258 = vadd.f32 %v2186, %v2257
  %v2259 = vpop.f32.mrb[0].mxu0
  %v2260 = vpop.f32.mrb[0].mxu0
  %v2261 = vadd.f32 %v2189, %v2260
  %v2262 = vpop.f32.mrb[0].mxu0
  %2263 = vmatprep.mubr.bf16.mxu0 %v2131
  %2264 = vmatmul.mubr.bf16.gmra.mrb[0].mxu0 %v2098
  %v2265 = vpop.f32.mrb[0].mxu0
  %v2266 = vadd.f32 %v2194, %v2265
  %v2267 = vpop.f32.mrb[0].mxu0
  %v2268 = vpop.f32.mrb[0].mxu0
  %v2269 = vadd.f32 %v2197, %v2268
  %v2270 = vpop.f32.mrb[0].mxu0
  %2271 = vmatprep.mubr.bf16.mxu0 %v2134
  %2272 = vmatmul.mubr.bf16.gmra.mrb[0].mxu0 %v2102
  %v2273 = vpop.f32.mrb[0].mxu0
  %v2274 = vadd.f32 %v2202, %v2273
  %v2275 = vpop.f32.mrb[0].mxu0
  %v2276 = vpop.f32.mrb[0].mxu0
  %v2277 = vadd.f32 %v2205, %v2276
  %v2278 = vpop.f32.mrb[0].mxu0
  %2279 = vmatprep.mubr.bf16.mxu0 %v2137
  %2280 = vmatmul.mubr.bf16.gmra.mrb[0].mxu0 %v2106
  %v2281 = vpop.f32.mrb[0].mxu0
  %v2282 = vadd.f32 %v2210, %v2281
  %v2283 = vpop.f32.mrb[0].mxu0
  %v2284 = vpop.f32.mrb[0].mxu0
  %v2285 = vpop.f32.mrb[0].mxu0
  %2286 = vdwg.mxu0
  %v2287 = vpack.c.bf16 %v2253, %v2250
  %v2288 = vpack.c.bf16 %v2261, %v2258
  %v2289 = vpack.c.bf16 %v2269, %v2266
  %v2290 = vpack.c.bf16 %v2277, %v2274
  %v2291 = vpack.c.bf16 %v2282, %v2282
  %s2292 = scalar_lea.vmem %s5, 144
  %v2293 = vld [vmem:[%s2292] sm:$0xff]
  %v2294 = vld [vmem:[%s2292 + $0x8] sm:$0xff]
  %v2295 = vld [vmem:[%s2292 + $0x10] sm:$0xff]
  %v2296 = vld [vmem:[%s2292 + $0x18] sm:$0xff]
  %v2297 = vld [vmem:[%s2292 + $0x20] sm:$0xff]
  %v2298 = vld [vmem:[%s2292 + $0x28] sm:$0xff]
  %v2299 = vld [vmem:[%s2292 + $0x30] sm:$0xff]
  %v2300 = vld [vmem:[%s2292 + $0x38] sm:$0xff]
  %v2301 = vld [vmem:[%s2292 + $0x40] sm:$0xff]
  %v2302 = vld [vmem:[%s2292 + $0x48] sm:$0xff]
  %v2303 = vld [vmem:[%s2292 + $0x50] sm:$0xff]
  %v2304 = vld [vmem:[%s2292 + $0x58] sm:$0xff]
  %v2305 = vld [vmem:[%s2292 + $0x60] sm:$0xff]
  %v2306 = vld [vmem:[%s2292 + $0x68] sm:$0xff]
  %v2307 = vld [vmem:[%s2292 + $0x70] sm:$0xff]
  %v2308 = vld [vmem:[%s2292 + $0x78] sm:$0xff]
  %v2309 = vld [vmem:[%s2292 + $0x80] sm:$0xff]
  %v2310 = vld [vmem:[%s2292 + $0x88] sm:$0xff]
  %v2329 = vunpack.c.l.b16 %v2293
  %v2330 = vunpack.c.h.b16 %v2293
  %v2331 = vunpack.c.l.b16 %v2294
  %v2332 = vunpack.c.h.b16 %v2294
  %v2333 = vunpack.c.l.b16 %v2295
  %v2334 = vunpack.c.h.b16 %v2295
  %v2335 = vunpack.c.l.b16 %v2296
  %v2336 = vunpack.c.h.b16 %v2296
  %v2337 = vunpack.c.l.b16 %v2297
  %v2338 = vunpack.c.h.b16 %v2297
  %v2339 = vunpack.c.l.b16 %v2298
  %v2340 = vunpack.c.h.b16 %v2298
  %v2341 = vunpack.c.l.b16 %v2299
  %v2342 = vunpack.c.h.b16 %v2299
  %v2343 = vunpack.c.l.b16 %v2300
  %v2344 = vunpack.c.h.b16 %v2300
  %v2345 = vunpack.c.l.b16 %v2301
  %v2346 = vunpack.c.h.b16 %v2301
  %v2347 = vunpack.c.l.b16 %v2302
  %v2348 = vunpack.c.h.b16 %v2302
  %v2349 = vunpack.c.l.b16 %v2303
  %v2350 = vunpack.c.h.b16 %v2303
  %v2351 = vunpack.c.l.b16 %v2304
  %v2352 = vunpack.c.h.b16 %v2304
  %v2353 = vunpack.c.l.b16 %v2305
  %v2354 = vunpack.c.h.b16 %v2305
  %v2355 = vunpack.c.l.b16 %v2306
  %v2356 = vunpack.c.h.b16 %v2306
  %v2357 = vunpack.c.l.b16 %v2307
  %v2358 = vunpack.c.h.b16 %v2307
  %v2359 = vunpack.c.l.b16 %v2308
  %v2360 = vunpack.c.h.b16 %v2308
  %v2361 = vunpack.c.l.b16 %v2309
  %v2362 = vunpack.c.h.b16 %v2309
  %v2363 = vunpack.c.l.b16 %v2310
  %v2364 = vunpack.c.h.b16 %v2310
  %v2365 = vpack.c.b16 %v2333, %v2329
  %v2366 = vpack.c.b16 %v2334, %v2330
  %v2367 = vpack.c.b16 %v2335, %v2331
  %v2368 = vpack.c.b16 %v2336, %v2332
  %v2369 = vpack.c.b16 %v2341, %v2337
  %v2370 = vpack.c.b16 %v2342, %v2338
  %v2371 = vpack.c.b16 %v2343, %v2339
  %v2372 = vpack.c.b16 %v2344, %v2340
  %v2373 = vpack.c.b16 %v2349, %v2345
  %v2374 = vpack.c.b16 %v2350, %v2346
  %v2375 = vpack.c.b16 %v2351, %v2347
  %v2376 = vpack.c.b16 %v2352, %v2348
  %v2377 = vpack.c.b16 %v2357, %v2353
  %v2378 = vpack.c.b16 %v2358, %v2354
  %v2379 = vpack.c.b16 %v2359, %v2355
  %v2380 = vpack.c.b16 %v2360, %v2356
  %v2381 = vpack.c.b16 %v2361, %v2361
  %v2382 = vpack.c.b16 %v2362, %v2362
  %v2383 = vpack.c.b16 %v2363, %v2363
  %v2384 = vpack.c.b16 %v2364, %v2364
  %v2401 = vsel %vm2123, %v2368, 0
  %v2404 = vsel %vm2123, %v2372, 0
  %v2407 = vsel %vm2123, %v2376, 0
  %v2410 = vsel %vm2123, %v2380, 0
  %v2413 = vsel %vm2123, %v2384, 0
  %2415 = vmatprep.subr.bf16.mxu0 0
  %2416 = vmatpush1.bf16.msra.mxu0 %v1991
  %2417 = vmatprep.subr.bf16.mxu0 0
  %2418 = vmatpush1.bf16.msra.mxu0 %v1992
  %2419 = vmatprep.subr.bf16.mxu0 0
  %2420 = vmatpush1.bf16.msra.mxu0 %v1993
  %2421 = vmatprep.subr.bf16.mxu0 0
  %2422 = vmatpush1.bf16.msra.mxu0 %v1994
  %2423 = vmatprep.subr.bf16.mxu0 0
  %2424 = vmatpush1.bf16.msra.mxu0 %v1995
  %2425 = vmatprep.subr.bf16.mxu0 0
  %2426 = vmatpush1.bf16.msra.mxu0 %v1996
  %2427 = vmatprep.subr.bf16.mxu0 0
  %2428 = vmatpush1.bf16.msra.mxu0 %v1997
  %2429 = vmatprep.subr.bf16.mxu0 0
  %2430 = vmatpush1.bf16.msra.mxu0 %v1998
  %2431 = vmatprep.subr.bf16.mxu0 0
  %2432 = vmatpush1.bf16.msra.mxu0 %v1999
  %2433 = vmatprep.subr.bf16.mxu0 0
  %2434 = vmatpush1.bf16.msra.mxu0 %v2000
  %2435 = vmatprep.subr.bf16.mxu0 0
  %2436 = vmatpush1.bf16.msra.mxu0 %v2001
  %2437 = vmatprep.subr.bf16.mxu0 0
  %2438 = vmatpush1.bf16.msra.mxu0 %v2002
  %2439 = vmatprep.subr.bf16.mxu0 0
  %2440 = vmatpush1.bf16.msra.mxu0 %v2003
  %2441 = vmatprep.subr.bf16.mxu0 0
  %2442 = vmatpush1.bf16.msra.mxu0 %v2004
  %2443 = vmatprep.subr.bf16.mxu0 0
  %2444 = vmatpush1.bf16.msra.mxu0 %v2005
  %2445 = vmatprep.subr.bf16.mxu0 0
  %2446 = vmatpush1.bf16.msra.mxu0 %v2006
  %2447 = vmatprep.mubr.bf16.mxu0 %v2366
  %2448 = vmatmul.mubr.bf16.gmra.mrb[0].mxu0 %v2365
  %v2449 = vpop.f32.mrb[0].mxu0
  %v2450 = vadd.f32 0.0, %v2449
  %v2451 = vpop.f32.mrb[0].mxu0
  %v2452 = vpop.f32.mrb[0].mxu0
  %v2453 = vadd.f32 0.0, %v2452
  %v2454 = vpop.f32.mrb[0].mxu0
  %2455 = vmatprep.mubr.bf16.mxu0 %v2370
  %2456 = vmatmul.mubr.bf16.gmra.mrb[0].mxu0 %v2369
  %v2457 = vpop.f32.mrb[0].mxu0
  %v2458 = vadd.f32 0.0, %v2457
  %v2459 = vpop.f32.mrb[0].mxu0
  %v2460 = vpop.f32.mrb[0].mxu0
  %v2461 = vadd.f32 0.0, %v2460
  %v2462 = vpop.f32.mrb[0].mxu0
  %2463 = vmatprep.mubr.bf16.mxu0 %v2374
  %2464 = vmatmul.mubr.bf16.gmra.mrb[0].mxu0 %v2373
  %v2465 = vpop.f32.mrb[0].mxu0
  %v2466 = vadd.f32 0.0, %v2465
  %v2467 = vpop.f32.mrb[0].mxu0
  %v2468 = vpop.f32.mrb[0].mxu0
  %v2469 = vadd.f32 0.0, %v2468
  %v2470 = vpop.f32.mrb[0].mxu0
  %2471 = vmatprep.mubr.bf16.mxu0 %v2378
  %2472 = vmatmul.mubr.bf16.gmra.mrb[0].mxu0 %v2377
  %v2473 = vpop.f32.mrb[0].mxu0
  %v2474 = vadd.f32 0.0, %v2473
  %v2475 = vpop.f32.mrb[0].mxu0
  %v2476 = vpop.f32.mrb[0].mxu0
  %v2477 = vadd.f32 0.0, %v2476
  %v2478 = vpop.f32.mrb[0].mxu0
  %2479 = vmatprep.mubr.bf16.mxu0 %v2382
  %2480 = vmatmul.mubr.bf16.gmra.mrb[0].mxu0 %v2381
  %v2481 = vpop.f32.mrb[0].mxu0
  %v2482 = vadd.f32 0.0, %v2481
  %v2483 = vpop.f32.mrb[0].mxu0
  %v2484 = vpop.f32.mrb[0].mxu0
  %v2485 = vpop.f32.mrb[0].mxu0
  %2486 = vdwg.mxu0
  %2487 = vmatprep.subr.bf16.mxu0 0
  %2488 = vmatpush1.bf16.msra.mxu0 %v2007
  %2489 = vmatprep.subr.bf16.mxu0 0
  %2490 = vmatpush1.bf16.msra.mxu0 %v2008
  %2491 = vmatprep.subr.bf16.mxu0 0
  %2492 = vmatpush1.bf16.msra.mxu0 %v2009
  %2493 = vmatprep.subr.bf16.mxu0 0
  %2494 = vmatpush1.bf16.msra.mxu0 %v2010
  %2495 = vmatprep.subr.bf16.mxu0 0
  %2496 = vmatpush1.bf16.msra.mxu0 %v2011
  %2497 = vmatprep.subr.bf16.mxu0 0
  %2498 = vmatpush1.bf16.msra.mxu0 %v2012
  %2499 = vmatprep.subr.bf16.mxu0 0
  %2500 = vmatpush1.bf16.msra.mxu0 %v2013
  %2501 = vmatprep.subr.bf16.mxu0 0
  %2502 = vmatpush1.bf16.msra.mxu0 %v2014
  %2503 = vmatprep.subr.bf16.mxu0 0
  %2504 = vmatpush1.bf16.msra.mxu0 %v2141
  %2505 = vmatprep.subr.bf16.mxu0 0
  %2506 = vmatpush1.bf16.msra.mxu0 0
  %2507 = vmatprep.subr.bf16.mxu0 0
  %2508 = vmatpush1.bf16.msra.mxu0 0
  %2509 = vmatprep.subr.bf16.mxu0 0
  %2510 = vmatpush1.bf16.msra.mxu0 0
  %2511 = vmatprep.subr.bf16.mxu0 0
  %2512 = vmatpush1.bf16.msra.mxu0 0
  %2513 = vmatprep.subr.bf16.mxu0 0
  %2514 = vmatpush1.bf16.msra.mxu0 0
  %2515 = vmatprep.subr.bf16.mxu0 0
  %2516 = vmatpush1.bf16.msra.mxu0 0
  %2517 = vmatprep.subr.bf16.mxu0 0
  %2518 = vmatpush1.bf16.msra.mxu0 0
  %2519 = vmatprep.mubr.bf16.mxu0 %v2401
  %2520 = vmatmul.mubr.bf16.gmra.mrb[0].mxu0 %v2367
  %v2521 = vpop.f32.mrb[0].mxu0
  %v2522 = vadd.f32 %v2450, %v2521
  %v2523 = vpop.f32.mrb[0].mxu0
  %v2524 = vpop.f32.mrb[0].mxu0
  %v2525 = vadd.f32 %v2453, %v2524
  %v2526 = vpop.f32.mrb[0].mxu0
  %2527 = vmatprep.mubr.bf16.mxu0 %v2404
  %2528 = vmatmul.mubr.bf16.gmra.mrb[0].mxu0 %v2371
  %v2529 = vpop.f32.mrb[0].mxu0
  %v2530 = vadd.f32 %v2458, %v2529
  %v2531 = vpop.f32.mrb[0].mxu0
  %v2532 = vpop.f32.mrb[0].mxu0
  %v2533 = vadd.f32 %v2461, %v2532
  %v2534 = vpop.f32.mrb[0].mxu0
  %2535 = vmatprep.mubr.bf16.mxu0 %v2407
  %2536 = vmatmul.mubr.bf16.gmra.mrb[0].mxu0 %v2375
  %v2537 = vpop.f32.mrb[0].mxu0
  %v2538 = vadd.f32 %v2466, %v2537
  %v2539 = vpop.f32.mrb[0].mxu0
  %v2540 = vpop.f32.mrb[0].mxu0
  %v2541 = vadd.f32 %v2469, %v2540
  %v2542 = vpop.f32.mrb[0].mxu0
  %2543 = vmatprep.mubr.bf16.mxu0 %v2410
  %2544 = vmatmul.mubr.bf16.gmra.mrb[0].mxu0 %v2379
  %v2545 = vpop.f32.mrb[0].mxu0
  %v2546 = vadd.f32 %v2474, %v2545
  %v2547 = vpop.f32.mrb[0].mxu0
  %v2548 = vpop.f32.mrb[0].mxu0
  %v2549 = vadd.f32 %v2477, %v2548
  %v2550 = vpop.f32.mrb[0].mxu0
  %2551 = vmatprep.mubr.bf16.mxu0 %v2413
  %2552 = vmatmul.mubr.bf16.gmra.mrb[0].mxu0 %v2383
  %v2553 = vpop.f32.mrb[0].mxu0
  %v2554 = vadd.f32 %v2482, %v2553
  %v2555 = vpop.f32.mrb[0].mxu0
  %v2556 = vpop.f32.mrb[0].mxu0
  %v2557 = vpop.f32.mrb[0].mxu0
  %2558 = vdwg.mxu0
  %v2559 = vpack.c.bf16 %v2525, %v2522
  %v2560 = vpack.c.bf16 %v2533, %v2530
  %v2561 = vpack.c.bf16 %v2541, %v2538
  %v2562 = vpack.c.bf16 %v2549, %v2546
  %v2563 = vpack.c.bf16 %v2554, %v2554
  %s2564 = scalar_lea.vmem %s5, 288
  %v2565 = vld [vmem:[%s2564] sm:$0xff]
  %v2566 = vld [vmem:[%s2564 + $0x8] sm:$0xff]
  %v2567 = vld [vmem:[%s2564 + $0x10] sm:$0xff]
  %v2568 = vld [vmem:[%s2564 + $0x18] sm:$0xff]
  %v2569 = vld [vmem:[%s2564 + $0x20] sm:$0xff]
  %v2570 = vld [vmem:[%s2564 + $0x28] sm:$0xff]
  %v2571 = vld [vmem:[%s2564 + $0x30] sm:$0xff]
  %v2572 = vld [vmem:[%s2564 + $0x38] sm:$0xff]
  %v2573 = vld [vmem:[%s2564 + $0x40] sm:$0xff]
  %v2574 = vld [vmem:[%s2564 + $0x48] sm:$0xff]
  %v2575 = vld [vmem:[%s2564 + $0x50] sm:$0xff]
  %v2576 = vld [vmem:[%s2564 + $0x58] sm:$0xff]
  %v2577 = vld [vmem:[%s2564 + $0x60] sm:$0xff]
  %v2578 = vld [vmem:[%s2564 + $0x68] sm:$0xff]
  %v2579 = vld [vmem:[%s2564 + $0x70] sm:$0xff]
  %v2580 = vld [vmem:[%s2564 + $0x78] sm:$0xff]
  %v2581 = vld [vmem:[%s2564 + $0x80] sm:$0xff]
  %v2582 = vld [vmem:[%s2564 + $0x88] sm:$0xff]
  %v2601 = vunpack.c.l.b16 %v2565
  %v2602 = vunpack.c.h.b16 %v2565
  %v2603 = vunpack.c.l.b16 %v2566
  %v2604 = vunpack.c.h.b16 %v2566
  %v2605 = vunpack.c.l.b16 %v2567
  %v2606 = vunpack.c.h.b16 %v2567
  %v2607 = vunpack.c.l.b16 %v2568
  %v2608 = vunpack.c.h.b16 %v2568
  %v2609 = vunpack.c.l.b16 %v2569
  %v2610 = vunpack.c.h.b16 %v2569
  %v2611 = vunpack.c.l.b16 %v2570
  %v2612 = vunpack.c.h.b16 %v2570
  %v2613 = vunpack.c.l.b16 %v2571
  %v2614 = vunpack.c.h.b16 %v2571
  %v2615 = vunpack.c.l.b16 %v2572
  %v2616 = vunpack.c.h.b16 %v2572
  %v2617 = vunpack.c.l.b16 %v2573
  %v2618 = vunpack.c.h.b16 %v2573
  %v2619 = vunpack.c.l.b16 %v2574
  %v2620 = vunpack.c.h.b16 %v2574
  %v2621 = vunpack.c.l.b16 %v2575
  %v2622 = vunpack.c.h.b16 %v2575
  %v2623 = vunpack.c.l.b16 %v2576
  %v2624 = vunpack.c.h.b16 %v2576
  %v2625 = vunpack.c.l.b16 %v2577
  %v2626 = vunpack.c.h.b16 %v2577
  %v2627 = vunpack.c.l.b16 %v2578
  %v2628 = vunpack.c.h.b16 %v2578
  %v2629 = vunpack.c.l.b16 %v2579
  %v2630 = vunpack.c.h.b16 %v2579
  %v2631 = vunpack.c.l.b16 %v2580
  %v2632 = vunpack.c.h.b16 %v2580
  %v2633 = vunpack.c.l.b16 %v2581
  %v2634 = vunpack.c.h.b16 %v2581
  %v2635 = vunpack.c.l.b16 %v2582
  %v2636 = vunpack.c.h.b16 %v2582
  %v2637 = vpack.c.b16 %v2605, %v2601
  %v2638 = vpack.c.b16 %v2606, %v2602
  %v2639 = vpack.c.b16 %v2607, %v2603
  %v2640 = vpack.c.b16 %v2608, %v2604
  %v2641 = vpack.c.b16 %v2613, %v2609
  %v2642 = vpack.c.b16 %v2614, %v2610
  %v2643 = vpack.c.b16 %v2615, %v2611
  %v2644 = vpack.c.b16 %v2616, %v2612
  %v2645 = vpack.c.b16 %v2621, %v2617
  %v2646 = vpack.c.b16 %v2622, %v2618
  %v2647 = vpack.c.b16 %v2623, %v2619
  %v2648 = vpack.c.b16 %v2624, %v2620
  %v2649 = vpack.c.b16 %v2629, %v2625
  %v2650 = vpack.c.b16 %v2630, %v2626
  %v2651 = vpack.c.b16 %v2631, %v2627
  %v2652 = vpack.c.b16 %v2632, %v2628
  %v2653 = vpack.c.b16 %v2633, %v2633
  %v2654 = vpack.c.b16 %v2634, %v2634
  %v2655 = vpack.c.b16 %v2635, %v2635
  %v2656 = vpack.c.b16 %v2636, %v2636
  %v2673 = vsel %vm2123, %v2640, 0
  %v2676 = vsel %vm2123, %v2644, 0
  %v2679 = vsel %vm2123, %v2648, 0
  %v2682 = vsel %vm2123, %v2652, 0
  %v2685 = vsel %vm2123, %v2656, 0
  %2687 = vmatprep.subr.bf16.mxu0 0
  %2688 = vmatpush1.bf16.msra.mxu0 %v1991
  %2689 = vmatprep.subr.bf16.mxu0 0
  %2690 = vmatpush1.bf16.msra.mxu0 %v1992
  %2691 = vmatprep.subr.bf16.mxu0 0
  %2692 = vmatpush1.bf16.msra.mxu0 %v1993
  %2693 = vmatprep.subr.bf16.mxu0 0
  %2694 = vmatpush1.bf16.msra.mxu0 %v1994
  %2695 = vmatprep.subr.bf16.mxu0 0
  %2696 = vmatpush1.bf16.msra.mxu0 %v1995
  %2697 = vmatprep.subr.bf16.mxu0 0
  %2698 = vmatpush1.bf16.msra.mxu0 %v1996
  %2699 = vmatprep.subr.bf16.mxu0 0
  %2700 = vmatpush1.bf16.msra.mxu0 %v1997
  %2701 = vmatprep.subr.bf16.mxu0 0
  %2702 = vmatpush1.bf16.msra.mxu0 %v1998
  %2703 = vmatprep.subr.bf16.mxu0 0
  %2704 = vmatpush1.bf16.msra.mxu0 %v1999
  %2705 = vmatprep.subr.bf16.mxu0 0
  %2706 = vmatpush1.bf16.msra.mxu0 %v2000
  %2707 = vmatprep.subr.bf16.mxu0 0
  %2708 = vmatpush1.bf16.msra.mxu0 %v2001
  %2709 = vmatprep.subr.bf16.mxu0 0
  %2710 = vmatpush1.bf16.msra.mxu0 %v2002
  %2711 = vmatprep.subr.bf16.mxu0 0
  %2712 = vmatpush1.bf16.msra.mxu0 %v2003
  %2713 = vmatprep.subr.bf16.mxu0 0
  %2714 = vmatpush1.bf16.msra.mxu0 %v2004
  %2715 = vmatprep.subr.bf16.mxu0 0
  %2716 = vmatpush1.bf16.msra.mxu0 %v2005
  %2717 = vmatprep.subr.bf16.mxu0 0
  %2718 = vmatpush1.bf16.msra.mxu0 %v2006
  %2719 = vmatprep.mubr.bf16.mxu0 %v2638
  %2720 = vmatmul.mubr.bf16.gmra.mrb[0].mxu0 %v2637
  %v2721 = vpop.f32.mrb[0].mxu0
  %v2722 = vadd.f32 0.0, %v2721
  %v2723 = vpop.f32.mrb[0].mxu0
  %v2724 = vpop.f32.mrb[0].mxu0
  %v2725 = vadd.f32 0.0, %v2724
  %v2726 = vpop.f32.mrb[0].mxu0
  %2727 = vmatprep.mubr.bf16.mxu0 %v2642
  %2728 = vmatmul.mubr.bf16.gmra.mrb[0].mxu0 %v2641
  %v2729 = vpop.f32.mrb[0].mxu0
  %v2730 = vadd.f32 0.0, %v2729
  %v2731 = vpop.f32.mrb[0].mxu0
  %v2732 = vpop.f32.mrb[0].mxu0
  %v2733 = vadd.f32 0.0, %v2732
  %v2734 = vpop.f32.mrb[0].mxu0
  %2735 = vmatprep.mubr.bf16.mxu0 %v2646
  %2736 = vmatmul.mubr.bf16.gmra.mrb[0].mxu0 %v2645
  %v2737 = vpop.f32.mrb[0].mxu0
  %v2738 = vadd.f32 0.0, %v2737
  %v2739 = vpop.f32.mrb[0].mxu0
  %v2740 = vpop.f32.mrb[0].mxu0
  %v2741 = vadd.f32 0.0, %v2740
  %v2742 = vpop.f32.mrb[0].mxu0
  %2743 = vmatprep.mubr.bf16.mxu0 %v2650
  %2744 = vmatmul.mubr.bf16.gmra.mrb[0].mxu0 %v2649
  %v2745 = vpop.f32.mrb[0].mxu0
  %v2746 = vadd.f32 0.0, %v2745
  %v2747 = vpop.f32.mrb[0].mxu0
  %v2748 = vpop.f32.mrb[0].mxu0
  %v2749 = vadd.f32 0.0, %v2748
  %v2750 = vpop.f32.mrb[0].mxu0
  %2751 = vmatprep.mubr.bf16.mxu0 %v2654
  %2752 = vmatmul.mubr.bf16.gmra.mrb[0].mxu0 %v2653
  %v2753 = vpop.f32.mrb[0].mxu0
  %v2754 = vadd.f32 0.0, %v2753
  %v2755 = vpop.f32.mrb[0].mxu0
  %v2756 = vpop.f32.mrb[0].mxu0
  %v2757 = vpop.f32.mrb[0].mxu0
  %2758 = vdwg.mxu0
  %2759 = vmatprep.subr.bf16.mxu0 0
  %2760 = vmatpush1.bf16.msra.mxu0 %v2007
  %2761 = vmatprep.subr.bf16.mxu0 0
  %2762 = vmatpush1.bf16.msra.mxu0 %v2008
  %2763 = vmatprep.subr.bf16.mxu0 0
  %2764 = vmatpush1.bf16.msra.mxu0 %v2009
  %2765 = vmatprep.subr.bf16.mxu0 0
  %2766 = vmatpush1.bf16.msra.mxu0 %v2010
  %2767 = vmatprep.subr.bf16.mxu0 0
  %2768 = vmatpush1.bf16.msra.mxu0 %v2011
  %2769 = vmatprep.subr.bf16.mxu0 0
  %2770 = vmatpush1.bf16.msra.mxu0 %v2012
  %2771 = vmatprep.subr.bf16.mxu0 0
  %2772 = vmatpush1.bf16.msra.mxu0 %v2013
  %2773 = vmatprep.subr.bf16.mxu0 0
  %2774 = vmatpush1.bf16.msra.mxu0 %v2014
  %2775 = vmatprep.subr.bf16.mxu0 0
  %2776 = vmatpush1.bf16.msra.mxu0 %v2141
  %2777 = vmatprep.subr.bf16.mxu0 0
  %2778 = vmatpush1.bf16.msra.mxu0 0
  %2779 = vmatprep.subr.bf16.mxu0 0
  %2780 = vmatpush1.bf16.msra.mxu0 0
  %2781 = vmatprep.subr.bf16.mxu0 0
  %2782 = vmatpush1.bf16.msra.mxu0 0
  %2783 = vmatprep.subr.bf16.mxu0 0
  %2784 = vmatpush1.bf16.msra.mxu0 0
  %2785 = vmatprep.subr.bf16.mxu0 0
  %2786 = vmatpush1.bf16.msra.mxu0 0
  %2787 = vmatprep.subr.bf16.mxu0 0
  %2788 = vmatpush1.bf16.msra.mxu0 0
  %2789 = vmatprep.subr.bf16.mxu0 0
  %2790 = vmatpush1.bf16.msra.mxu0 0
  %2791 = vmatprep.mubr.bf16.mxu0 %v2673
  %2792 = vmatmul.mubr.bf16.gmra.mrb[0].mxu0 %v2639
  %v2793 = vpop.f32.mrb[0].mxu0
  %v2794 = vadd.f32 %v2722, %v2793
  %v2795 = vpop.f32.mrb[0].mxu0
  %v2796 = vpop.f32.mrb[0].mxu0
  %v2797 = vadd.f32 %v2725, %v2796
  %v2798 = vpop.f32.mrb[0].mxu0
  %2799 = vmatprep.mubr.bf16.mxu0 %v2676
  %2800 = vmatmul.mubr.bf16.gmra.mrb[0].mxu0 %v2643
  %v2801 = vpop.f32.mrb[0].mxu0
  %v2802 = vadd.f32 %v2730, %v2801
  %v2803 = vpop.f32.mrb[0].mxu0
  %v2804 = vpop.f32.mrb[0].mxu0
  %v2805 = vadd.f32 %v2733, %v2804
  %v2806 = vpop.f32.mrb[0].mxu0
  %2807 = vmatprep.mubr.bf16.mxu0 %v2679
  %2808 = vmatmul.mubr.bf16.gmra.mrb[0].mxu0 %v2647
  %v2809 = vpop.f32.mrb[0].mxu0
  %v2810 = vadd.f32 %v2738, %v2809
  %v2811 = vpop.f32.mrb[0].mxu0
  %v2812 = vpop.f32.mrb[0].mxu0
  %v2813 = vadd.f32 %v2741, %v2812
  %v2814 = vpop.f32.mrb[0].mxu0
  %2815 = vmatprep.mubr.bf16.mxu0 %v2682
  %2816 = vmatmul.mubr.bf16.gmra.mrb[0].mxu0 %v2651
  %v2817 = vpop.f32.mrb[0].mxu0
  %v2818 = vadd.f32 %v2746, %v2817
  %v2819 = vpop.f32.mrb[0].mxu0
  %v2820 = vpop.f32.mrb[0].mxu0
  %v2821 = vadd.f32 %v2749, %v2820
  %v2822 = vpop.f32.mrb[0].mxu0
  %2823 = vmatprep.mubr.bf16.mxu0 %v2685
  %2824 = vmatmul.mubr.bf16.gmra.mrb[0].mxu0 %v2655
  %v2825 = vpop.f32.mrb[0].mxu0
  %v2826 = vadd.f32 %v2754, %v2825
  %v2827 = vpop.f32.mrb[0].mxu0
  %v2828 = vpop.f32.mrb[0].mxu0
  %v2829 = vpop.f32.mrb[0].mxu0
  %2830 = vdwg.mxu0
  %v2831 = vpack.c.bf16 %v2797, %v2794
  %v2832 = vpack.c.bf16 %v2805, %v2802
  %v2833 = vpack.c.bf16 %v2813, %v2810
  %v2834 = vpack.c.bf16 %v2821, %v2818
  %v2835 = vpack.c.bf16 %v2826, %v2826
  %s2836 = scalar_lea.vmem %s5, 432
  %v2837 = vld [vmem:[%s2836] sm:$0xff]
  %v2838 = vld [vmem:[%s2836 + $0x8] sm:$0xff]
  %v2839 = vld [vmem:[%s2836 + $0x10] sm:$0xff]
  %v2840 = vld [vmem:[%s2836 + $0x18] sm:$0xff]
  %v2841 = vld [vmem:[%s2836 + $0x20] sm:$0xff]
  %v2842 = vld [vmem:[%s2836 + $0x28] sm:$0xff]
  %v2843 = vld [vmem:[%s2836 + $0x30] sm:$0xff]
  %v2844 = vld [vmem:[%s2836 + $0x38] sm:$0xff]
  %v2845 = vld [vmem:[%s2836 + $0x40] sm:$0xff]
  %v2846 = vld [vmem:[%s2836 + $0x48] sm:$0xff]
  %v2847 = vld [vmem:[%s2836 + $0x50] sm:$0xff]
  %v2848 = vld [vmem:[%s2836 + $0x58] sm:$0xff]
  %v2849 = vld [vmem:[%s2836 + $0x60] sm:$0xff]
  %v2850 = vld [vmem:[%s2836 + $0x68] sm:$0xff]
  %v2851 = vld [vmem:[%s2836 + $0x70] sm:$0xff]
  %v2852 = vld [vmem:[%s2836 + $0x78] sm:$0xff]
  %v2853 = vld [vmem:[%s2836 + $0x80] sm:$0xff]
  %v2854 = vld [vmem:[%s2836 + $0x88] sm:$0xff]
  %v2873 = vunpack.c.l.b16 %v2837
  %v2874 = vunpack.c.h.b16 %v2837
  %v2875 = vunpack.c.l.b16 %v2838
  %v2876 = vunpack.c.h.b16 %v2838
  %v2877 = vunpack.c.l.b16 %v2839
  %v2878 = vunpack.c.h.b16 %v2839
  %v2879 = vunpack.c.l.b16 %v2840
  %v2880 = vunpack.c.h.b16 %v2840
  %v2881 = vunpack.c.l.b16 %v2841
  %v2882 = vunpack.c.h.b16 %v2841
  %v2883 = vunpack.c.l.b16 %v2842
  %v2884 = vunpack.c.h.b16 %v2842
  %v2885 = vunpack.c.l.b16 %v2843
  %v2886 = vunpack.c.h.b16 %v2843
  %v2887 = vunpack.c.l.b16 %v2844
  %v2888 = vunpack.c.h.b16 %v2844
  %v2889 = vunpack.c.l.b16 %v2845
  %v2890 = vunpack.c.h.b16 %v2845
  %v2891 = vunpack.c.l.b16 %v2846
  %v2892 = vunpack.c.h.b16 %v2846
  %v2893 = vunpack.c.l.b16 %v2847
  %v2894 = vunpack.c.h.b16 %v2847
  %v2895 = vunpack.c.l.b16 %v2848
  %v2896 = vunpack.c.h.b16 %v2848
  %v2897 = vunpack.c.l.b16 %v2849
  %v2898 = vunpack.c.h.b16 %v2849
  %v2899 = vunpack.c.l.b16 %v2850
  %v2900 = vunpack.c.h.b16 %v2850
  %v2901 = vunpack.c.l.b16 %v2851
  %v2902 = vunpack.c.h.b16 %v2851
  %v2903 = vunpack.c.l.b16 %v2852
  %v2904 = vunpack.c.h.b16 %v2852
  %v2905 = vunpack.c.l.b16 %v2853
  %v2906 = vunpack.c.h.b16 %v2853
  %v2907 = vunpack.c.l.b16 %v2854
  %v2908 = vunpack.c.h.b16 %v2854
  %v2909 = vpack.c.b16 %v2877, %v2873
  %v2910 = vpack.c.b16 %v2878, %v2874
  %v2911 = vpack.c.b16 %v2879, %v2875
  %v2912 = vpack.c.b16 %v2880, %v2876
  %v2913 = vpack.c.b16 %v2885, %v2881
  %v2914 = vpack.c.b16 %v2886, %v2882
  %v2915 = vpack.c.b16 %v2887, %v2883
  %v2916 = vpack.c.b16 %v2888, %v2884
  %v2917 = vpack.c.b16 %v2893, %v2889
  %v2918 = vpack.c.b16 %v2894, %v2890
  %v2919 = vpack.c.b16 %v2895, %v2891
  %v2920 = vpack.c.b16 %v2896, %v2892
  %v2921 = vpack.c.b16 %v2901, %v2897
  %v2922 = vpack.c.b16 %v2902, %v2898
  %v2923 = vpack.c.b16 %v2903, %v2899
  %v2924 = vpack.c.b16 %v2904, %v2900
  %v2925 = vpack.c.b16 %v2905, %v2905
  %v2926 = vpack.c.b16 %v2906, %v2906
  %v2927 = vpack.c.b16 %v2907, %v2907
  %v2928 = vpack.c.b16 %v2908, %v2908
  %v2945 = vsel %vm2123, %v2912, 0
  %v2948 = vsel %vm2123, %v2916, 0
  %v2951 = vsel %vm2123, %v2920, 0
  %v2954 = vsel %vm2123, %v2924, 0
  %v2957 = vsel %vm2123, %v2928, 0
  %2959 = vmatprep.subr.bf16.mxu0 0
  %2960 = vmatpush1.bf16.msra.mxu0 %v1991
  %2961 = vmatprep.subr.bf16.mxu0 0
  %2962 = vmatpush1.bf16.msra.mxu0 %v1992
  %2963 = vmatprep.subr.bf16.mxu0 0
  %2964 = vmatpush1.bf16.msra.mxu0 %v1993
  %2965 = vmatprep.subr.bf16.mxu0 0
  %2966 = vmatpush1.bf16.msra.mxu0 %v1994
  %2967 = vmatprep.subr.bf16.mxu0 0
  %2968 = vmatpush1.bf16.msra.mxu0 %v1995
  %2969 = vmatprep.subr.bf16.mxu0 0
  %2970 = vmatpush1.bf16.msra.mxu0 %v1996
  %2971 = vmatprep.subr.bf16.mxu0 0
  %2972 = vmatpush1.bf16.msra.mxu0 %v1997
  %2973 = vmatprep.subr.bf16.mxu0 0
  %2974 = vmatpush1.bf16.msra.mxu0 %v1998
  %2975 = vmatprep.subr.bf16.mxu0 0
  %2976 = vmatpush1.bf16.msra.mxu0 %v1999
  %2977 = vmatprep.subr.bf16.mxu0 0
  %2978 = vmatpush1.bf16.msra.mxu0 %v2000
  %2979 = vmatprep.subr.bf16.mxu0 0
  %2980 = vmatpush1.bf16.msra.mxu0 %v2001
  %2981 = vmatprep.subr.bf16.mxu0 0
  %2982 = vmatpush1.bf16.msra.mxu0 %v2002
  %2983 = vmatprep.subr.bf16.mxu0 0
  %2984 = vmatpush1.bf16.msra.mxu0 %v2003
  %2985 = vmatprep.subr.bf16.mxu0 0
  %2986 = vmatpush1.bf16.msra.mxu0 %v2004
  %2987 = vmatprep.subr.bf16.mxu0 0
  %2988 = vmatpush1.bf16.msra.mxu0 %v2005
  %2989 = vmatprep.subr.bf16.mxu0 0
  %2990 = vmatpush1.bf16.msra.mxu0 %v2006
  %2991 = vmatprep.mubr.bf16.mxu0 %v2910
  %2992 = vmatmul.mubr.bf16.gmra.mrb[0].mxu0 %v2909
  %v2993 = vpop.f32.mrb[0].mxu0
  %v2994 = vadd.f32 0.0, %v2993
  %v2995 = vpop.f32.mrb[0].mxu0
  %v2996 = vpop.f32.mrb[0].mxu0
  %v2997 = vadd.f32 0.0, %v2996
  %v2998 = vpop.f32.mrb[0].mxu0
  %2999 = vmatprep.mubr.bf16.mxu0 %v2914
  %3000 = vmatmul.mubr.bf16.gmra.mrb[0].mxu0 %v2913
  %v3001 = vpop.f32.mrb[0].mxu0
  %v3002 = vadd.f32 0.0, %v3001
  %v3003 = vpop.f32.mrb[0].mxu0
  %v3004 = vpop.f32.mrb[0].mxu0
  %v3005 = vadd.f32 0.0, %v3004
  %v3006 = vpop.f32.mrb[0].mxu0
  %3007 = vmatprep.mubr.bf16.mxu0 %v2918
  %3008 = vmatmul.mubr.bf16.gmra.mrb[0].mxu0 %v2917
  %v3009 = vpop.f32.mrb[0].mxu0
  %v3010 = vadd.f32 0.0, %v3009
  %v3011 = vpop.f32.mrb[0].mxu0
  %v3012 = vpop.f32.mrb[0].mxu0
  %v3013 = vadd.f32 0.0, %v3012
  %v3014 = vpop.f32.mrb[0].mxu0
  %3015 = vmatprep.mubr.bf16.mxu0 %v2922
  %3016 = vmatmul.mubr.bf16.gmra.mrb[0].mxu0 %v2921
  %v3017 = vpop.f32.mrb[0].mxu0
  %v3018 = vadd.f32 0.0, %v3017
  %v3019 = vpop.f32.mrb[0].mxu0
  %v3020 = vpop.f32.mrb[0].mxu0
  %v3021 = vadd.f32 0.0, %v3020
  %v3022 = vpop.f32.mrb[0].mxu0
  %3023 = vmatprep.mubr.bf16.mxu0 %v2926
  %3024 = vmatmul.mubr.bf16.gmra.mrb[0].mxu0 %v2925
  %v3025 = vpop.f32.mrb[0].mxu0
  %v3026 = vadd.f32 0.0, %v3025
  %v3027 = vpop.f32.mrb[0].mxu0
  %v3028 = vpop.f32.mrb[0].mxu0
  %v3029 = vpop.f32.mrb[0].mxu0
  %3030 = vdwg.mxu0
  %3031 = vmatprep.subr.bf16.mxu0 0
  %3032 = vmatpush1.bf16.msra.mxu0 %v2007
  %3033 = vmatprep.subr.bf16.mxu0 0
  %3034 = vmatpush1.bf16.msra.mxu0 %v2008
  %3035 = vmatprep.subr.bf16.mxu0 0
  %3036 = vmatpush1.bf16.msra.mxu0 %v2009
  %3037 = vmatprep.subr.bf16.mxu0 0
  %3038 = vmatpush1.bf16.msra.mxu0 %v2010
  %3039 = vmatprep.subr.bf16.mxu0 0
  %3040 = vmatpush1.bf16.msra.mxu0 %v2011
  %3041 = vmatprep.subr.bf16.mxu0 0
  %3042 = vmatpush1.bf16.msra.mxu0 %v2012
  %3043 = vmatprep.subr.bf16.mxu0 0
  %3044 = vmatpush1.bf16.msra.mxu0 %v2013
  %3045 = vmatprep.subr.bf16.mxu0 0
  %3046 = vmatpush1.bf16.msra.mxu0 %v2014
  %3047 = vmatprep.subr.bf16.mxu0 0
  %3048 = vmatpush1.bf16.msra.mxu0 %v2141
  %3049 = vmatprep.subr.bf16.mxu0 0
  %3050 = vmatpush1.bf16.msra.mxu0 0
  %3051 = vmatprep.subr.bf16.mxu0 0
  %3052 = vmatpush1.bf16.msra.mxu0 0
  %3053 = vmatprep.subr.bf16.mxu0 0
  %3054 = vmatpush1.bf16.msra.mxu0 0
  %3055 = vmatprep.subr.bf16.mxu0 0
  %3056 = vmatpush1.bf16.msra.mxu0 0
  %3057 = vmatprep.subr.bf16.mxu0 0
  %3058 = vmatpush1.bf16.msra.mxu0 0
  %3059 = vmatprep.subr.bf16.mxu0 0
  %3060 = vmatpush1.bf16.msra.mxu0 0
  %3061 = vmatprep.subr.bf16.mxu0 0
  %3062 = vmatpush1.bf16.msra.mxu0 0
  %3063 = vmatprep.mubr.bf16.mxu0 %v2945
  %3064 = vmatmul.mubr.bf16.gmra.mrb[0].mxu0 %v2911
  %v3065 = vpop.f32.mrb[0].mxu0
  %v3066 = vadd.f32 %v2994, %v3065
  %v3067 = vpop.f32.mrb[0].mxu0
  %v3068 = vpop.f32.mrb[0].mxu0
  %v3069 = vadd.f32 %v2997, %v3068
  %v3070 = vpop.f32.mrb[0].mxu0
  %3071 = vmatprep.mubr.bf16.mxu0 %v2948
  %3072 = vmatmul.mubr.bf16.gmra.mrb[0].mxu0 %v2915
  %v3073 = vpop.f32.mrb[0].mxu0
  %v3074 = vadd.f32 %v3002, %v3073
  %v3075 = vpop.f32.mrb[0].mxu0
  %v3076 = vpop.f32.mrb[0].mxu0
  %v3077 = vadd.f32 %v3005, %v3076
  %v3078 = vpop.f32.mrb[0].mxu0
  %3079 = vmatprep.mubr.bf16.mxu0 %v2951
  %3080 = vmatmul.mubr.bf16.gmra.mrb[0].mxu0 %v2919
  %v3081 = vpop.f32.mrb[0].mxu0
  %v3082 = vadd.f32 %v3010, %v3081
  %v3083 = vpop.f32.mrb[0].mxu0
  %v3084 = vpop.f32.mrb[0].mxu0
  %v3085 = vadd.f32 %v3013, %v3084
  %v3086 = vpop.f32.mrb[0].mxu0
  %3087 = vmatprep.mubr.bf16.mxu0 %v2954
  %3088 = vmatmul.mubr.bf16.gmra.mrb[0].mxu0 %v2923
  %v3089 = vpop.f32.mrb[0].mxu0
  %v3090 = vadd.f32 %v3018, %v3089
  %v3091 = vpop.f32.mrb[0].mxu0
  %v3092 = vpop.f32.mrb[0].mxu0
  %v3093 = vadd.f32 %v3021, %v3092
  %v3094 = vpop.f32.mrb[0].mxu0
  %3095 = vmatprep.mubr.bf16.mxu0 %v2957
  %3096 = vmatmul.mubr.bf16.gmra.mrb[0].mxu0 %v2927
  %v3097 = vpop.f32.mrb[0].mxu0
  %v3098 = vadd.f32 %v3026, %v3097
  %v3099 = vpop.f32.mrb[0].mxu0
  %v3100 = vpop.f32.mrb[0].mxu0
  %v3101 = vpop.f32.mrb[0].mxu0
  %3102 = vdwg.mxu0
  %v3103 = vpack.c.bf16 %v3069, %v3066
  %v3104 = vpack.c.bf16 %v3077, %v3074
  %v3105 = vpack.c.bf16 %v3085, %v3082
  %v3106 = vpack.c.bf16 %v3093, %v3090
  %v3107 = vpack.c.bf16 %v3098, %v3098
  %s3108 = scalar_lea.vmem %s5, 576
  %v3109 = vld [vmem:[%s3108] sm:$0xff]
  %v3110 = vld [vmem:[%s3108 + $0x8] sm:$0xff]
  %v3111 = vld [vmem:[%s3108 + $0x10] sm:$0xff]
  %v3112 = vld [vmem:[%s3108 + $0x18] sm:$0xff]
  %v3113 = vld [vmem:[%s3108 + $0x20] sm:$0xff]
  %v3114 = vld [vmem:[%s3108 + $0x28] sm:$0xff]
  %v3115 = vld [vmem:[%s3108 + $0x30] sm:$0xff]
  %v3116 = vld [vmem:[%s3108 + $0x38] sm:$0xff]
  %v3117 = vld [vmem:[%s3108 + $0x40] sm:$0xff]
  %v3118 = vld [vmem:[%s3108 + $0x48] sm:$0xff]
  %v3119 = vld [vmem:[%s3108 + $0x50] sm:$0xff]
  %v3120 = vld [vmem:[%s3108 + $0x58] sm:$0xff]
  %v3121 = vld [vmem:[%s3108 + $0x60] sm:$0xff]
  %v3122 = vld [vmem:[%s3108 + $0x68] sm:$0xff]
  %v3123 = vld [vmem:[%s3108 + $0x70] sm:$0xff]
  %v3124 = vld [vmem:[%s3108 + $0x78] sm:$0xff]
  %v3125 = vld [vmem:[%s3108 + $0x80] sm:$0xff]
  %v3126 = vld [vmem:[%s3108 + $0x88] sm:$0xff]
  %v3145 = vunpack.c.l.b16 %v3109
  %v3146 = vunpack.c.h.b16 %v3109
  %v3147 = vunpack.c.l.b16 %v3110
  %v3148 = vunpack.c.h.b16 %v3110
  %v3149 = vunpack.c.l.b16 %v3111
  %v3150 = vunpack.c.h.b16 %v3111
  %v3151 = vunpack.c.l.b16 %v3112
  %v3152 = vunpack.c.h.b16 %v3112
  %v3153 = vunpack.c.l.b16 %v3113
  %v3154 = vunpack.c.h.b16 %v3113
  %v3155 = vunpack.c.l.b16 %v3114
  %v3156 = vunpack.c.h.b16 %v3114
  %v3157 = vunpack.c.l.b16 %v3115
  %v3158 = vunpack.c.h.b16 %v3115
  %v3159 = vunpack.c.l.b16 %v3116
  %v3160 = vunpack.c.h.b16 %v3116
  %v3161 = vunpack.c.l.b16 %v3117
  %v3162 = vunpack.c.h.b16 %v3117
  %v3163 = vunpack.c.l.b16 %v3118
  %v3164 = vunpack.c.h.b16 %v3118
  %v3165 = vunpack.c.l.b16 %v3119
  %v3166 = vunpack.c.h.b16 %v3119
  %v3167 = vunpack.c.l.b16 %v3120
  %v3168 = vunpack.c.h.b16 %v3120
  %v3169 = vunpack.c.l.b16 %v3121
  %v3170 = vunpack.c.h.b16 %v3121
  %v3171 = vunpack.c.l.b16 %v3122
  %v3172 = vunpack.c.h.b16 %v3122
  %v3173 = vunpack.c.l.b16 %v3123
  %v3174 = vunpack.c.h.b16 %v3123
  %v3175 = vunpack.c.l.b16 %v3124
  %v3176 = vunpack.c.h.b16 %v3124
  %v3177 = vunpack.c.l.b16 %v3125
  %v3178 = vunpack.c.h.b16 %v3125
  %v3179 = vunpack.c.l.b16 %v3126
  %v3180 = vunpack.c.h.b16 %v3126
  %v3181 = vpack.c.b16 %v3149, %v3145
  %v3182 = vpack.c.b16 %v3150, %v3146
  %v3183 = vpack.c.b16 %v3151, %v3147
  %v3184 = vpack.c.b16 %v3152, %v3148
  %v3185 = vpack.c.b16 %v3157, %v3153
  %v3186 = vpack.c.b16 %v3158, %v3154
  %v3187 = vpack.c.b16 %v3159, %v3155
  %v3188 = vpack.c.b16 %v3160, %v3156
  %v3189 = vpack.c.b16 %v3165, %v3161
  %v3190 = vpack.c.b16 %v3166, %v3162
  %v3191 = vpack.c.b16 %v3167, %v3163
  %v3192 = vpack.c.b16 %v3168, %v3164
  %v3193 = vpack.c.b16 %v3173, %v3169
  %v3194 = vpack.c.b16 %v3174, %v3170
  %v3195 = vpack.c.b16 %v3175, %v3171
  %v3196 = vpack.c.b16 %v3176, %v3172
  %v3197 = vpack.c.b16 %v3177, %v3177
  %v3198 = vpack.c.b16 %v3178, %v3178
  %v3199 = vpack.c.b16 %v3179, %v3179
  %v3200 = vpack.c.b16 %v3180, %v3180
  %v3217 = vsel %vm2123, %v3184, 0
  %v3220 = vsel %vm2123, %v3188, 0
  %v3223 = vsel %vm2123, %v3192, 0
  %v3226 = vsel %vm2123, %v3196, 0
  %v3229 = vsel %vm2123, %v3200, 0
  %3231 = vmatprep.subr.bf16.mxu0 0
  %3232 = vmatpush1.bf16.msra.mxu0 %v1991
  %3233 = vmatprep.subr.bf16.mxu0 0
  %3234 = vmatpush1.bf16.msra.mxu0 %v1992
  %3235 = vmatprep.subr.bf16.mxu0 0
  %3236 = vmatpush1.bf16.msra.mxu0 %v1993
  %3237 = vmatprep.subr.bf16.mxu0 0
  %3238 = vmatpush1.bf16.msra.mxu0 %v1994
  %3239 = vmatprep.subr.bf16.mxu0 0
  %3240 = vmatpush1.bf16.msra.mxu0 %v1995
  %3241 = vmatprep.subr.bf16.mxu0 0
  %3242 = vmatpush1.bf16.msra.mxu0 %v1996
  %3243 = vmatprep.subr.bf16.mxu0 0
  %3244 = vmatpush1.bf16.msra.mxu0 %v1997
  %3245 = vmatprep.subr.bf16.mxu0 0
  %3246 = vmatpush1.bf16.msra.mxu0 %v1998
  %3247 = vmatprep.subr.bf16.mxu0 0
  %3248 = vmatpush1.bf16.msra.mxu0 %v1999
  %3249 = vmatprep.subr.bf16.mxu0 0
  %3250 = vmatpush1.bf16.msra.mxu0 %v2000
  %3251 = vmatprep.subr.bf16.mxu0 0
  %3252 = vmatpush1.bf16.msra.mxu0 %v2001
  %3253 = vmatprep.subr.bf16.mxu0 0
  %3254 = vmatpush1.bf16.msra.mxu0 %v2002
  %3255 = vmatprep.subr.bf16.mxu0 0
  %3256 = vmatpush1.bf16.msra.mxu0 %v2003
  %3257 = vmatprep.subr.bf16.mxu0 0
  %3258 = vmatpush1.bf16.msra.mxu0 %v2004
  %3259 = vmatprep.subr.bf16.mxu0 0
  %3260 = vmatpush1.bf16.msra.mxu0 %v2005
  %3261 = vmatprep.subr.bf16.mxu0 0
  %3262 = vmatpush1.bf16.msra.mxu0 %v2006
  %3263 = vmatprep.mubr.bf16.mxu0 %v3182
  %3264 = vmatmul.mubr.bf16.gmra.mrb[0].mxu0 %v3181
  %v3265 = vpop.f32.mrb[0].mxu0
  %v3266 = vadd.f32 0.0, %v3265
  %v3267 = vpop.f32.mrb[0].mxu0
  %v3268 = vpop.f32.mrb[0].mxu0
  %v3269 = vadd.f32 0.0, %v3268
  %v3270 = vpop.f32.mrb[0].mxu0
  %3271 = vmatprep.mubr.bf16.mxu0 %v3186
  %3272 = vmatmul.mubr.bf16.gmra.mrb[0].mxu0 %v3185
  %v3273 = vpop.f32.mrb[0].mxu0
  %v3274 = vadd.f32 0.0, %v3273
  %v3275 = vpop.f32.mrb[0].mxu0
  %v3276 = vpop.f32.mrb[0].mxu0
  %v3277 = vadd.f32 0.0, %v3276
  %v3278 = vpop.f32.mrb[0].mxu0
  %3279 = vmatprep.mubr.bf16.mxu0 %v3190
  %3280 = vmatmul.mubr.bf16.gmra.mrb[0].mxu0 %v3189
  %v3281 = vpop.f32.mrb[0].mxu0
  %v3282 = vadd.f32 0.0, %v3281
  %v3283 = vpop.f32.mrb[0].mxu0
  %v3284 = vpop.f32.mrb[0].mxu0
  %v3285 = vadd.f32 0.0, %v3284
  %v3286 = vpop.f32.mrb[0].mxu0
  %3287 = vmatprep.mubr.bf16.mxu0 %v3194
  %3288 = vmatmul.mubr.bf16.gmra.mrb[0].mxu0 %v3193
  %v3289 = vpop.f32.mrb[0].mxu0
  %v3290 = vadd.f32 0.0, %v3289
  %v3291 = vpop.f32.mrb[0].mxu0
  %v3292 = vpop.f32.mrb[0].mxu0
  %v3293 = vadd.f32 0.0, %v3292
  %v3294 = vpop.f32.mrb[0].mxu0
  %3295 = vmatprep.mubr.bf16.mxu0 %v3198
  %3296 = vmatmul.mubr.bf16.gmra.mrb[0].mxu0 %v3197
  %v3297 = vpop.f32.mrb[0].mxu0
  %v3298 = vadd.f32 0.0, %v3297
  %v3299 = vpop.f32.mrb[0].mxu0
  %v3300 = vpop.f32.mrb[0].mxu0
  %v3301 = vpop.f32.mrb[0].mxu0
  %3302 = vdwg.mxu0
  %3303 = vmatprep.subr.bf16.mxu0 0
  %3304 = vmatpush1.bf16.msra.mxu0 %v2007
  %3305 = vmatprep.subr.bf16.mxu0 0
  %3306 = vmatpush1.bf16.msra.mxu0 %v2008
  %3307 = vmatprep.subr.bf16.mxu0 0
  %3308 = vmatpush1.bf16.msra.mxu0 %v2009
  %3309 = vmatprep.subr.bf16.mxu0 0
  %3310 = vmatpush1.bf16.msra.mxu0 %v2010
  %3311 = vmatprep.subr.bf16.mxu0 0
  %3312 = vmatpush1.bf16.msra.mxu0 %v2011
  %3313 = vmatprep.subr.bf16.mxu0 0
  %3314 = vmatpush1.bf16.msra.mxu0 %v2012
  %3315 = vmatprep.subr.bf16.mxu0 0
  %3316 = vmatpush1.bf16.msra.mxu0 %v2013
  %3317 = vmatprep.subr.bf16.mxu0 0
  %3318 = vmatpush1.bf16.msra.mxu0 %v2014
  %3319 = vmatprep.subr.bf16.mxu0 0
  %3320 = vmatpush1.bf16.msra.mxu0 %v2141
  %3321 = vmatprep.subr.bf16.mxu0 0
  %3322 = vmatpush1.bf16.msra.mxu0 0
  %3323 = vmatprep.subr.bf16.mxu0 0
  %3324 = vmatpush1.bf16.msra.mxu0 0
  %3325 = vmatprep.subr.bf16.mxu0 0
  %3326 = vmatpush1.bf16.msra.mxu0 0
  %3327 = vmatprep.subr.bf16.mxu0 0
  %3328 = vmatpush1.bf16.msra.mxu0 0
  %3329 = vmatprep.subr.bf16.mxu0 0
  %3330 = vmatpush1.bf16.msra.mxu0 0
  %3331 = vmatprep.subr.bf16.mxu0 0
  %3332 = vmatpush1.bf16.msra.mxu0 0
  %3333 = vmatprep.subr.bf16.mxu0 0
  %3334 = vmatpush1.bf16.msra.mxu0 0
  %3335 = vmatprep.mubr.bf16.mxu0 %v3217
  %3336 = vmatmul.mubr.bf16.gmra.mrb[0].mxu0 %v3183
  %v3337 = vpop.f32.mrb[0].mxu0
  %v3338 = vadd.f32 %v3266, %v3337
  %v3339 = vpop.f32.mrb[0].mxu0
  %v3340 = vpop.f32.mrb[0].mxu0
  %v3341 = vadd.f32 %v3269, %v3340
  %v3342 = vpop.f32.mrb[0].mxu0
  %3343 = vmatprep.mubr.bf16.mxu0 %v3220
  %3344 = vmatmul.mubr.bf16.gmra.mrb[0].mxu0 %v3187
  %v3345 = vpop.f32.mrb[0].mxu0
  %v3346 = vadd.f32 %v3274, %v3345
  %v3347 = vpop.f32.mrb[0].mxu0
  %v3348 = vpop.f32.mrb[0].mxu0
  %v3349 = vadd.f32 %v3277, %v3348
  %v3350 = vpop.f32.mrb[0].mxu0
  %3351 = vmatprep.mubr.bf16.mxu0 %v3223
  %3352 = vmatmul.mubr.bf16.gmra.mrb[0].mxu0 %v3191
  %v3353 = vpop.f32.mrb[0].mxu0
  %v3354 = vadd.f32 %v3282, %v3353
  %v3355 = vpop.f32.mrb[0].mxu0
  %v3356 = vpop.f32.mrb[0].mxu0
  %v3357 = vadd.f32 %v3285, %v3356
  %v3358 = vpop.f32.mrb[0].mxu0
  %3359 = vmatprep.mubr.bf16.mxu0 %v3226
  %3360 = vmatmul.mubr.bf16.gmra.mrb[0].mxu0 %v3195
  %v3361 = vpop.f32.mrb[0].mxu0
  %v3362 = vadd.f32 %v3290, %v3361
  %v3363 = vpop.f32.mrb[0].mxu0
  %v3364 = vpop.f32.mrb[0].mxu0
  %v3365 = vadd.f32 %v3293, %v3364
  %v3366 = vpop.f32.mrb[0].mxu0
  %3367 = vmatprep.mubr.bf16.mxu0 %v3229
  %3368 = vmatmul.mubr.bf16.gmra.mrb[0].mxu0 %v3199
  %v3369 = vpop.f32.mrb[0].mxu0
  %v3370 = vadd.f32 %v3298, %v3369
  %v3371 = vpop.f32.mrb[0].mxu0
  %v3372 = vpop.f32.mrb[0].mxu0
  %v3373 = vpop.f32.mrb[0].mxu0
  %3374 = vdwg.mxu0
  %v3375 = vpack.c.bf16 %v3341, %v3338
  %v3376 = vpack.c.bf16 %v3349, %v3346
  %v3377 = vpack.c.bf16 %v3357, %v3354
  %v3378 = vpack.c.bf16 %v3365, %v3362
  %v3379 = vpack.c.bf16 %v3370, %v3370
  %s3380 = scalar_lea.vmem %s5, 720
  %v3381 = vld [vmem:[%s3380] sm:$0xff]
  %v3382 = vld [vmem:[%s3380 + $0x8] sm:$0xff]
  %v3383 = vld [vmem:[%s3380 + $0x10] sm:$0xff]
  %v3384 = vld [vmem:[%s3380 + $0x18] sm:$0xff]
  %v3385 = vld [vmem:[%s3380 + $0x20] sm:$0xff]
  %v3386 = vld [vmem:[%s3380 + $0x28] sm:$0xff]
  %v3387 = vld [vmem:[%s3380 + $0x30] sm:$0xff]
  %v3388 = vld [vmem:[%s3380 + $0x38] sm:$0xff]
  %v3389 = vld [vmem:[%s3380 + $0x40] sm:$0xff]
  %v3390 = vld [vmem:[%s3380 + $0x48] sm:$0xff]
  %v3391 = vld [vmem:[%s3380 + $0x50] sm:$0xff]
  %v3392 = vld [vmem:[%s3380 + $0x58] sm:$0xff]
  %v3393 = vld [vmem:[%s3380 + $0x60] sm:$0xff]
  %v3394 = vld [vmem:[%s3380 + $0x68] sm:$0xff]
  %v3395 = vld [vmem:[%s3380 + $0x70] sm:$0xff]
  %v3396 = vld [vmem:[%s3380 + $0x78] sm:$0xff]
  %v3397 = vld [vmem:[%s3380 + $0x80] sm:$0xff]
  %v3398 = vld [vmem:[%s3380 + $0x88] sm:$0xff]
  %v3417 = vunpack.c.l.b16 %v3381
  %v3418 = vunpack.c.h.b16 %v3381
  %v3419 = vunpack.c.l.b16 %v3382
  %v3420 = vunpack.c.h.b16 %v3382
  %v3421 = vunpack.c.l.b16 %v3383
  %v3422 = vunpack.c.h.b16 %v3383
  %v3423 = vunpack.c.l.b16 %v3384
  %v3424 = vunpack.c.h.b16 %v3384
  %v3425 = vunpack.c.l.b16 %v3385
  %v3426 = vunpack.c.h.b16 %v3385
  %v3427 = vunpack.c.l.b16 %v3386
  %v3428 = vunpack.c.h.b16 %v3386
  %v3429 = vunpack.c.l.b16 %v3387
  %v3430 = vunpack.c.h.b16 %v3387
  %v3431 = vunpack.c.l.b16 %v3388
  %v3432 = vunpack.c.h.b16 %v3388
  %v3433 = vunpack.c.l.b16 %v3389
  %v3434 = vunpack.c.h.b16 %v3389
  %v3435 = vunpack.c.l.b16 %v3390
  %v3436 = vunpack.c.h.b16 %v3390
  %v3437 = vunpack.c.l.b16 %v3391
  %v3438 = vunpack.c.h.b16 %v3391
  %v3439 = vunpack.c.l.b16 %v3392
  %v3440 = vunpack.c.h.b16 %v3392
  %v3441 = vunpack.c.l.b16 %v3393
  %v3442 = vunpack.c.h.b16 %v3393
  %v3443 = vunpack.c.l.b16 %v3394
  %v3444 = vunpack.c.h.b16 %v3394
  %v3445 = vunpack.c.l.b16 %v3395
  %v3446 = vunpack.c.h.b16 %v3395
  %v3447 = vunpack.c.l.b16 %v3396
  %v3448 = vunpack.c.h.b16 %v3396
  %v3449 = vunpack.c.l.b16 %v3397
  %v3450 = vunpack.c.h.b16 %v3397
  %v3451 = vunpack.c.l.b16 %v3398
  %v3452 = vunpack.c.h.b16 %v3398
  %v3453 = vpack.c.b16 %v3421, %v3417
  %v3454 = vpack.c.b16 %v3422, %v3418
  %v3455 = vpack.c.b16 %v3423, %v3419
  %v3456 = vpack.c.b16 %v3424, %v3420
  %v3457 = vpack.c.b16 %v3429, %v3425
  %v3458 = vpack.c.b16 %v3430, %v3426
  %v3459 = vpack.c.b16 %v3431, %v3427
  %v3460 = vpack.c.b16 %v3432, %v3428
  %v3461 = vpack.c.b16 %v3437, %v3433
  %v3462 = vpack.c.b16 %v3438, %v3434
  %v3463 = vpack.c.b16 %v3439, %v3435
  %v3464 = vpack.c.b16 %v3440, %v3436
  %v3465 = vpack.c.b16 %v3445, %v3441
  %v3466 = vpack.c.b16 %v3446, %v3442
  %v3467 = vpack.c.b16 %v3447, %v3443
  %v3468 = vpack.c.b16 %v3448, %v3444
  %v3469 = vpack.c.b16 %v3449, %v3449
  %v3470 = vpack.c.b16 %v3450, %v3450
  %v3471 = vpack.c.b16 %v3451, %v3451
  %v3472 = vpack.c.b16 %v3452, %v3452
  %v3489 = vsel %vm2123, %v3456, 0
  %v3492 = vsel %vm2123, %v3460, 0
  %v3495 = vsel %vm2123, %v3464, 0
  %v3498 = vsel %vm2123, %v3468, 0
  %v3501 = vsel %vm2123, %v3472, 0
  %3503 = vmatprep.subr.bf16.mxu0 0
  %3504 = vmatpush1.bf16.msra.mxu0 %v1991
  %3505 = vmatprep.subr.bf16.mxu0 0
  %3506 = vmatpush1.bf16.msra.mxu0 %v1992
  %3507 = vmatprep.subr.bf16.mxu0 0
  %3508 = vmatpush1.bf16.msra.mxu0 %v1993
  %3509 = vmatprep.subr.bf16.mxu0 0
  %3510 = vmatpush1.bf16.msra.mxu0 %v1994
  %3511 = vmatprep.subr.bf16.mxu0 0
  %3512 = vmatpush1.bf16.msra.mxu0 %v1995
  %3513 = vmatprep.subr.bf16.mxu0 0
  %3514 = vmatpush1.bf16.msra.mxu0 %v1996
  %3515 = vmatprep.subr.bf16.mxu0 0
  %3516 = vmatpush1.bf16.msra.mxu0 %v1997
  %3517 = vmatprep.subr.bf16.mxu0 0
  %3518 = vmatpush1.bf16.msra.mxu0 %v1998
  %3519 = vmatprep.subr.bf16.mxu0 0
  %3520 = vmatpush1.bf16.msra.mxu0 %v1999
  %3521 = vmatprep.subr.bf16.mxu0 0
  %3522 = vmatpush1.bf16.msra.mxu0 %v2000
  %3523 = vmatprep.subr.bf16.mxu0 0
  %3524 = vmatpush1.bf16.msra.mxu0 %v2001
  %3525 = vmatprep.subr.bf16.mxu0 0
  %3526 = vmatpush1.bf16.msra.mxu0 %v2002
  %3527 = vmatprep.subr.bf16.mxu0 0
  %3528 = vmatpush1.bf16.msra.mxu0 %v2003
  %3529 = vmatprep.subr.bf16.mxu0 0
  %3530 = vmatpush1.bf16.msra.mxu0 %v2004
  %3531 = vmatprep.subr.bf16.mxu0 0
  %3532 = vmatpush1.bf16.msra.mxu0 %v2005
  %3533 = vmatprep.subr.bf16.mxu0 0
  %3534 = vmatpush1.bf16.msra.mxu0 %v2006
  %3535 = vmatprep.mubr.bf16.mxu0 %v3454
  %3536 = vmatmul.mubr.bf16.gmra.mrb[0].mxu0 %v3453
  %v3537 = vpop.f32.mrb[0].mxu0
  %v3538 = vadd.f32 0.0, %v3537
  %v3539 = vpop.f32.mrb[0].mxu0
  %v3540 = vpop.f32.mrb[0].mxu0
  %v3541 = vadd.f32 0.0, %v3540
  %v3542 = vpop.f32.mrb[0].mxu0
  %3543 = vmatprep.mubr.bf16.mxu0 %v3458
  %3544 = vmatmul.mubr.bf16.gmra.mrb[0].mxu0 %v3457
  %v3545 = vpop.f32.mrb[0].mxu0
  %v3546 = vadd.f32 0.0, %v3545
  %v3547 = vpop.f32.mrb[0].mxu0
  %v3548 = vpop.f32.mrb[0].mxu0
  %v3549 = vadd.f32 0.0, %v3548
  %v3550 = vpop.f32.mrb[0].mxu0
  %3551 = vmatprep.mubr.bf16.mxu0 %v3462
  %3552 = vmatmul.mubr.bf16.gmra.mrb[0].mxu0 %v3461
  %v3553 = vpop.f32.mrb[0].mxu0
  %v3554 = vadd.f32 0.0, %v3553
  %v3555 = vpop.f32.mrb[0].mxu0
  %v3556 = vpop.f32.mrb[0].mxu0
  %v3557 = vadd.f32 0.0, %v3556
  %v3558 = vpop.f32.mrb[0].mxu0
  %3559 = vmatprep.mubr.bf16.mxu0 %v3466
  %3560 = vmatmul.mubr.bf16.gmra.mrb[0].mxu0 %v3465
  %v3561 = vpop.f32.mrb[0].mxu0
  %v3562 = vadd.f32 0.0, %v3561
  %v3563 = vpop.f32.mrb[0].mxu0
  %v3564 = vpop.f32.mrb[0].mxu0
  %v3565 = vadd.f32 0.0, %v3564
  %v3566 = vpop.f32.mrb[0].mxu0
  %3567 = vmatprep.mubr.bf16.mxu0 %v3470
  %3568 = vmatmul.mubr.bf16.gmra.mrb[0].mxu0 %v3469
  %v3569 = vpop.f32.mrb[0].mxu0
  %v3570 = vadd.f32 0.0, %v3569
  %v3571 = vpop.f32.mrb[0].mxu0
  %v3572 = vpop.f32.mrb[0].mxu0
  %v3573 = vpop.f32.mrb[0].mxu0
  %3574 = vdwg.mxu0
  %3575 = vmatprep.subr.bf16.mxu0 0
  %3576 = vmatpush1.bf16.msra.mxu0 %v2007
  %3577 = vmatprep.subr.bf16.mxu0 0
  %3578 = vmatpush1.bf16.msra.mxu0 %v2008
  %3579 = vmatprep.subr.bf16.mxu0 0
  %3580 = vmatpush1.bf16.msra.mxu0 %v2009
  %3581 = vmatprep.subr.bf16.mxu0 0
  %3582 = vmatpush1.bf16.msra.mxu0 %v2010
  %3583 = vmatprep.subr.bf16.mxu0 0
  %3584 = vmatpush1.bf16.msra.mxu0 %v2011
  %3585 = vmatprep.subr.bf16.mxu0 0
  %3586 = vmatpush1.bf16.msra.mxu0 %v2012
  %3587 = vmatprep.subr.bf16.mxu0 0
  %3588 = vmatpush1.bf16.msra.mxu0 %v2013
  %3589 = vmatprep.subr.bf16.mxu0 0
  %3590 = vmatpush1.bf16.msra.mxu0 %v2014
  %3591 = vmatprep.subr.bf16.mxu0 0
  %3592 = vmatpush1.bf16.msra.mxu0 %v2141
  %3593 = vmatprep.subr.bf16.mxu0 0
  %3594 = vmatpush1.bf16.msra.mxu0 0
  %3595 = vmatprep.subr.bf16.mxu0 0
  %3596 = vmatpush1.bf16.msra.mxu0 0
  %3597 = vmatprep.subr.bf16.mxu0 0
  %3598 = vmatpush1.bf16.msra.mxu0 0
  %3599 = vmatprep.subr.bf16.mxu0 0
  %3600 = vmatpush1.bf16.msra.mxu0 0
  %3601 = vmatprep.subr.bf16.mxu0 0
  %3602 = vmatpush1.bf16.msra.mxu0 0
  %3603 = vmatprep.subr.bf16.mxu0 0
  %3604 = vmatpush1.bf16.msra.mxu0 0
  %3605 = vmatprep.subr.bf16.mxu0 0
  %3606 = vmatpush1.bf16.msra.mxu0 0
  %3607 = vmatprep.mubr.bf16.mxu0 %v3489
  %3608 = vmatmul.mubr.bf16.gmra.mrb[0].mxu0 %v3455
  %v3609 = vpop.f32.mrb[0].mxu0
  %v3610 = vadd.f32 %v3538, %v3609
  %v3611 = vpop.f32.mrb[0].mxu0
  %v3612 = vpop.f32.mrb[0].mxu0
  %v3613 = vadd.f32 %v3541, %v3612
  %v3614 = vpop.f32.mrb[0].mxu0
  %3615 = vmatprep.mubr.bf16.mxu0 %v3492
  %3616 = vmatmul.mubr.bf16.gmra.mrb[0].mxu0 %v3459
  %v3617 = vpop.f32.mrb[0].mxu0
  %v3618 = vadd.f32 %v3546, %v3617
  %v3619 = vpop.f32.mrb[0].mxu0
  %v3620 = vpop.f32.mrb[0].mxu0
  %v3621 = vadd.f32 %v3549, %v3620
  %v3622 = vpop.f32.mrb[0].mxu0
  %3623 = vmatprep.mubr.bf16.mxu0 %v3495
  %3624 = vmatmul.mubr.bf16.gmra.mrb[0].mxu0 %v3463
  %v3625 = vpop.f32.mrb[0].mxu0
  %v3626 = vadd.f32 %v3554, %v3625
  %v3627 = vpop.f32.mrb[0].mxu0
  %v3628 = vpop.f32.mrb[0].mxu0
  %v3629 = vadd.f32 %v3557, %v3628
  %v3630 = vpop.f32.mrb[0].mxu0
  %3631 = vmatprep.mubr.bf16.mxu0 %v3498
  %3632 = vmatmul.mubr.bf16.gmra.mrb[0].mxu0 %v3467
  %v3633 = vpop.f32.mrb[0].mxu0
  %v3634 = vadd.f32 %v3562, %v3633
  %v3635 = vpop.f32.mrb[0].mxu0
  %v3636 = vpop.f32.mrb[0].mxu0
  %v3637 = vadd.f32 %v3565, %v3636
  %v3638 = vpop.f32.mrb[0].mxu0
  %3639 = vmatprep.mubr.bf16.mxu0 %v3501
  %3640 = vmatmul.mubr.bf16.gmra.mrb[0].mxu0 %v3471
  %v3641 = vpop.f32.mrb[0].mxu0
  %v3642 = vadd.f32 %v3570, %v3641
  %v3643 = vpop.f32.mrb[0].mxu0
  %v3644 = vpop.f32.mrb[0].mxu0
  %v3645 = vpop.f32.mrb[0].mxu0
  %3646 = vdwg.mxu0
  %v3647 = vpack.c.bf16 %v3613, %v3610
  %v3648 = vpack.c.bf16 %v3621, %v3618
  %v3649 = vpack.c.bf16 %v3629, %v3626
  %v3650 = vpack.c.bf16 %v3637, %v3634
  %v3651 = vpack.c.bf16 %v3642, %v3642
  %s3652 = scalar_lea.vmem %s5, 864
  %v3653 = vld [vmem:[%s3652] sm:$0xff]
  %v3654 = vld [vmem:[%s3652 + $0x8] sm:$0xff]
  %v3655 = vld [vmem:[%s3652 + $0x10] sm:$0xff]
  %v3656 = vld [vmem:[%s3652 + $0x18] sm:$0xff]
  %v3657 = vld [vmem:[%s3652 + $0x20] sm:$0xff]
  %v3658 = vld [vmem:[%s3652 + $0x28] sm:$0xff]
  %v3659 = vld [vmem:[%s3652 + $0x30] sm:$0xff]
  %v3660 = vld [vmem:[%s3652 + $0x38] sm:$0xff]
  %v3661 = vld [vmem:[%s3652 + $0x40] sm:$0xff]
  %v3662 = vld [vmem:[%s3652 + $0x48] sm:$0xff]
  %v3663 = vld [vmem:[%s3652 + $0x50] sm:$0xff]
  %v3664 = vld [vmem:[%s3652 + $0x58] sm:$0xff]
  %v3665 = vld [vmem:[%s3652 + $0x60] sm:$0xff]
  %v3666 = vld [vmem:[%s3652 + $0x68] sm:$0xff]
  %v3667 = vld [vmem:[%s3652 + $0x70] sm:$0xff]
  %v3668 = vld [vmem:[%s3652 + $0x78] sm:$0xff]
  %v3669 = vld [vmem:[%s3652 + $0x80] sm:$0xff]
  %v3670 = vld [vmem:[%s3652 + $0x88] sm:$0xff]
  %v3689 = vunpack.c.l.b16 %v3653
  %v3690 = vunpack.c.h.b16 %v3653
  %v3691 = vunpack.c.l.b16 %v3654
  %v3692 = vunpack.c.h.b16 %v3654
  %v3693 = vunpack.c.l.b16 %v3655
  %v3694 = vunpack.c.h.b16 %v3655
  %v3695 = vunpack.c.l.b16 %v3656
  %v3696 = vunpack.c.h.b16 %v3656
  %v3697 = vunpack.c.l.b16 %v3657
  %v3698 = vunpack.c.h.b16 %v3657
  %v3699 = vunpack.c.l.b16 %v3658
  %v3700 = vunpack.c.h.b16 %v3658
  %v3701 = vunpack.c.l.b16 %v3659
  %v3702 = vunpack.c.h.b16 %v3659
  %v3703 = vunpack.c.l.b16 %v3660
  %v3704 = vunpack.c.h.b16 %v3660
  %v3705 = vunpack.c.l.b16 %v3661
  %v3706 = vunpack.c.h.b16 %v3661
  %v3707 = vunpack.c.l.b16 %v3662
  %v3708 = vunpack.c.h.b16 %v3662
  %v3709 = vunpack.c.l.b16 %v3663
  %v3710 = vunpack.c.h.b16 %v3663
  %v3711 = vunpack.c.l.b16 %v3664
  %v3712 = vunpack.c.h.b16 %v3664
  %v3713 = vunpack.c.l.b16 %v3665
  %v3714 = vunpack.c.h.b16 %v3665
  %v3715 = vunpack.c.l.b16 %v3666
  %v3716 = vunpack.c.h.b16 %v3666
  %v3717 = vunpack.c.l.b16 %v3667
  %v3718 = vunpack.c.h.b16 %v3667
  %v3719 = vunpack.c.l.b16 %v3668
  %v3720 = vunpack.c.h.b16 %v3668
  %v3721 = vunpack.c.l.b16 %v3669
  %v3722 = vunpack.c.h.b16 %v3669
  %v3723 = vunpack.c.l.b16 %v3670
  %v3724 = vunpack.c.h.b16 %v3670
  %v3725 = vpack.c.b16 %v3693, %v3689
  %v3726 = vpack.c.b16 %v3694, %v3690
  %v3727 = vpack.c.b16 %v3695, %v3691
  %v3728 = vpack.c.b16 %v3696, %v3692
  %v3729 = vpack.c.b16 %v3701, %v3697
  %v3730 = vpack.c.b16 %v3702, %v3698
  %v3731 = vpack.c.b16 %v3703, %v3699
  %v3732 = vpack.c.b16 %v3704, %v3700
  %v3733 = vpack.c.b16 %v3709, %v3705
  %v3734 = vpack.c.b16 %v3710, %v3706
  %v3735 = vpack.c.b16 %v3711, %v3707
  %v3736 = vpack.c.b16 %v3712, %v3708
  %v3737 = vpack.c.b16 %v3717, %v3713
  %v3738 = vpack.c.b16 %v3718, %v3714
  %v3739 = vpack.c.b16 %v3719, %v3715
  %v3740 = vpack.c.b16 %v3720, %v3716
  %v3741 = vpack.c.b16 %v3721, %v3721
  %v3742 = vpack.c.b16 %v3722, %v3722
  %v3743 = vpack.c.b16 %v3723, %v3723
  %v3744 = vpack.c.b16 %v3724, %v3724
  %v3761 = vsel %vm2123, %v3728, 0
  %v3764 = vsel %vm2123, %v3732, 0
  %v3767 = vsel %vm2123, %v3736, 0
  %v3770 = vsel %vm2123, %v3740, 0
  %v3773 = vsel %vm2123, %v3744, 0
  %3775 = vmatprep.subr.bf16.mxu0 0
  %3776 = vmatpush1.bf16.msra.mxu0 %v1991
  %3777 = vmatprep.subr.bf16.mxu0 0
  %3778 = vmatpush1.bf16.msra.mxu0 %v1992
  %3779 = vmatprep.subr.bf16.mxu0 0
  %3780 = vmatpush1.bf16.msra.mxu0 %v1993
  %3781 = vmatprep.subr.bf16.mxu0 0
  %3782 = vmatpush1.bf16.msra.mxu0 %v1994
  %3783 = vmatprep.subr.bf16.mxu0 0
  %3784 = vmatpush1.bf16.msra.mxu0 %v1995
  %3785 = vmatprep.subr.bf16.mxu0 0
  %3786 = vmatpush1.bf16.msra.mxu0 %v1996
  %3787 = vmatprep.subr.bf16.mxu0 0
  %3788 = vmatpush1.bf16.msra.mxu0 %v1997
  %3789 = vmatprep.subr.bf16.mxu0 0
  %3790 = vmatpush1.bf16.msra.mxu0 %v1998
  %3791 = vmatprep.subr.bf16.mxu0 0
  %3792 = vmatpush1.bf16.msra.mxu0 %v1999
  %3793 = vmatprep.subr.bf16.mxu0 0
  %3794 = vmatpush1.bf16.msra.mxu0 %v2000
  %3795 = vmatprep.subr.bf16.mxu0 0
  %3796 = vmatpush1.bf16.msra.mxu0 %v2001
  %3797 = vmatprep.subr.bf16.mxu0 0
  %3798 = vmatpush1.bf16.msra.mxu0 %v2002
  %3799 = vmatprep.subr.bf16.mxu0 0
  %3800 = vmatpush1.bf16.msra.mxu0 %v2003
  %3801 = vmatprep.subr.bf16.mxu0 0
  %3802 = vmatpush1.bf16.msra.mxu0 %v2004
  %3803 = vmatprep.subr.bf16.mxu0 0
  %3804 = vmatpush1.bf16.msra.mxu0 %v2005
  %3805 = vmatprep.subr.bf16.mxu0 0
  %3806 = vmatpush1.bf16.msra.mxu0 %v2006
  %3807 = vmatprep.mubr.bf16.mxu0 %v3726
  %3808 = vmatmul.mubr.bf16.gmra.mrb[0].mxu0 %v3725
  %v3809 = vpop.f32.mrb[0].mxu0
  %v3810 = vadd.f32 0.0, %v3809
  %v3811 = vpop.f32.mrb[0].mxu0
  %v3812 = vpop.f32.mrb[0].mxu0
  %v3813 = vadd.f32 0.0, %v3812
  %v3814 = vpop.f32.mrb[0].mxu0
  %3815 = vmatprep.mubr.bf16.mxu0 %v3730
  %3816 = vmatmul.mubr.bf16.gmra.mrb[0].mxu0 %v3729
  %v3817 = vpop.f32.mrb[0].mxu0
  %v3818 = vadd.f32 0.0, %v3817
  %v3819 = vpop.f32.mrb[0].mxu0
  %v3820 = vpop.f32.mrb[0].mxu0
  %v3821 = vadd.f32 0.0, %v3820
  %v3822 = vpop.f32.mrb[0].mxu0
  %3823 = vmatprep.mubr.bf16.mxu0 %v3734
  %3824 = vmatmul.mubr.bf16.gmra.mrb[0].mxu0 %v3733
  %v3825 = vpop.f32.mrb[0].mxu0
  %v3826 = vadd.f32 0.0, %v3825
  %v3827 = vpop.f32.mrb[0].mxu0
  %v3828 = vpop.f32.mrb[0].mxu0
  %v3829 = vadd.f32 0.0, %v3828
  %v3830 = vpop.f32.mrb[0].mxu0
  %3831 = vmatprep.mubr.bf16.mxu0 %v3738
  %3832 = vmatmul.mubr.bf16.gmra.mrb[0].mxu0 %v3737
  %v3833 = vpop.f32.mrb[0].mxu0
  %v3834 = vadd.f32 0.0, %v3833
  %v3835 = vpop.f32.mrb[0].mxu0
  %v3836 = vpop.f32.mrb[0].mxu0
  %v3837 = vadd.f32 0.0, %v3836
  %v3838 = vpop.f32.mrb[0].mxu0
  %3839 = vmatprep.mubr.bf16.mxu0 %v3742
  %3840 = vmatmul.mubr.bf16.gmra.mrb[0].mxu0 %v3741
  %v3841 = vpop.f32.mrb[0].mxu0
  %v3842 = vadd.f32 0.0, %v3841
  %v3843 = vpop.f32.mrb[0].mxu0
  %v3844 = vpop.f32.mrb[0].mxu0
  %v3845 = vpop.f32.mrb[0].mxu0
  %3846 = vdwg.mxu0
  %3847 = vmatprep.subr.bf16.mxu0 0
  %3848 = vmatpush1.bf16.msra.mxu0 %v2007
  %3849 = vmatprep.subr.bf16.mxu0 0
  %3850 = vmatpush1.bf16.msra.mxu0 %v2008
  %3851 = vmatprep.subr.bf16.mxu0 0
  %3852 = vmatpush1.bf16.msra.mxu0 %v2009
  %3853 = vmatprep.subr.bf16.mxu0 0
  %3854 = vmatpush1.bf16.msra.mxu0 %v2010
  %3855 = vmatprep.subr.bf16.mxu0 0
  %3856 = vmatpush1.bf16.msra.mxu0 %v2011
  %3857 = vmatprep.subr.bf16.mxu0 0
  %3858 = vmatpush1.bf16.msra.mxu0 %v2012
  %3859 = vmatprep.subr.bf16.mxu0 0
  %3860 = vmatpush1.bf16.msra.mxu0 %v2013
  %3861 = vmatprep.subr.bf16.mxu0 0
  %3862 = vmatpush1.bf16.msra.mxu0 %v2014
  %3863 = vmatprep.subr.bf16.mxu0 0
  %3864 = vmatpush1.bf16.msra.mxu0 %v2141
  %3865 = vmatprep.subr.bf16.mxu0 0
  %3866 = vmatpush1.bf16.msra.mxu0 0
  %3867 = vmatprep.subr.bf16.mxu0 0
  %3868 = vmatpush1.bf16.msra.mxu0 0
  %3869 = vmatprep.subr.bf16.mxu0 0
  %3870 = vmatpush1.bf16.msra.mxu0 0
  %3871 = vmatprep.subr.bf16.mxu0 0
  %3872 = vmatpush1.bf16.msra.mxu0 0
  %3873 = vmatprep.subr.bf16.mxu0 0
  %3874 = vmatpush1.bf16.msra.mxu0 0
  %3875 = vmatprep.subr.bf16.mxu0 0
  %3876 = vmatpush1.bf16.msra.mxu0 0
  %3877 = vmatprep.subr.bf16.mxu0 0
  %3878 = vmatpush1.bf16.msra.mxu0 0
  %3879 = vmatprep.mubr.bf16.mxu0 %v3761
  %3880 = vmatmul.mubr.bf16.gmra.mrb[0].mxu0 %v3727
  %v3881 = vpop.f32.mrb[0].mxu0
  %v3882 = vadd.f32 %v3810, %v3881
  %v3883 = vpop.f32.mrb[0].mxu0
  %v3884 = vpop.f32.mrb[0].mxu0
  %v3885 = vadd.f32 %v3813, %v3884
  %v3886 = vpop.f32.mrb[0].mxu0
  %3887 = vmatprep.mubr.bf16.mxu0 %v3764
  %3888 = vmatmul.mubr.bf16.gmra.mrb[0].mxu0 %v3731
  %v3889 = vpop.f32.mrb[0].mxu0
  %v3890 = vadd.f32 %v3818, %v3889
  %v3891 = vpop.f32.mrb[0].mxu0
  %v3892 = vpop.f32.mrb[0].mxu0
  %v3893 = vadd.f32 %v3821, %v3892
  %v3894 = vpop.f32.mrb[0].mxu0
  %3895 = vmatprep.mubr.bf16.mxu0 %v3767
  %3896 = vmatmul.mubr.bf16.gmra.mrb[0].mxu0 %v3735
  %v3897 = vpop.f32.mrb[0].mxu0
  %v3898 = vadd.f32 %v3826, %v3897
  %v3899 = vpop.f32.mrb[0].mxu0
  %v3900 = vpop.f32.mrb[0].mxu0
  %v3901 = vadd.f32 %v3829, %v3900
  %v3902 = vpop.f32.mrb[0].mxu0
  %3903 = vmatprep.mubr.bf16.mxu0 %v3770
  %3904 = vmatmul.mubr.bf16.gmra.mrb[0].mxu0 %v3739
  %v3905 = vpop.f32.mrb[0].mxu0
  %v3906 = vadd.f32 %v3834, %v3905
  %v3907 = vpop.f32.mrb[0].mxu0
  %v3908 = vpop.f32.mrb[0].mxu0
  %v3909 = vadd.f32 %v3837, %v3908
  %v3910 = vpop.f32.mrb[0].mxu0
  %3911 = vmatprep.mubr.bf16.mxu0 %v3773
  %3912 = vmatmul.mubr.bf16.gmra.mrb[0].mxu0 %v3743
  %v3913 = vpop.f32.mrb[0].mxu0
  %v3914 = vadd.f32 %v3842, %v3913
  %v3915 = vpop.f32.mrb[0].mxu0
  %v3916 = vpop.f32.mrb[0].mxu0
  %v3917 = vpop.f32.mrb[0].mxu0
  %3918 = vdwg.mxu0
  %v3919 = vpack.c.bf16 %v3885, %v3882
  %v3920 = vpack.c.bf16 %v3893, %v3890
  %v3921 = vpack.c.bf16 %v3901, %v3898
  %v3922 = vpack.c.bf16 %v3909, %v3906
  %v3923 = vpack.c.bf16 %v3914, %v3914
  %s3924 = scalar_lea.vmem %s5, 1008
  %v3925 = vld [vmem:[%s3924] sm:$0xff]
  %v3926 = vld [vmem:[%s3924 + $0x8] sm:$0xff]
  %v3927 = vld [vmem:[%s3924 + $0x10] sm:$0xff]
  %v3928 = vld [vmem:[%s3924 + $0x18] sm:$0xff]
  %v3929 = vld [vmem:[%s3924 + $0x20] sm:$0xff]
  %v3930 = vld [vmem:[%s3924 + $0x28] sm:$0xff]
  %v3931 = vld [vmem:[%s3924 + $0x30] sm:$0xff]
  %v3932 = vld [vmem:[%s3924 + $0x38] sm:$0xff]
  %v3933 = vld [vmem:[%s3924 + $0x40] sm:$0xff]
  %v3934 = vld [vmem:[%s3924 + $0x48] sm:$0xff]
  %v3935 = vld [vmem:[%s3924 + $0x50] sm:$0xff]
  %v3936 = vld [vmem:[%s3924 + $0x58] sm:$0xff]
  %v3937 = vld [vmem:[%s3924 + $0x60] sm:$0xff]
  %v3938 = vld [vmem:[%s3924 + $0x68] sm:$0xff]
  %v3939 = vld [vmem:[%s3924 + $0x70] sm:$0xff]
  %v3940 = vld [vmem:[%s3924 + $0x78] sm:$0xff]
  %v3941 = vld [vmem:[%s3924 + $0x80] sm:$0xff]
  %v3942 = vld [vmem:[%s3924 + $0x88] sm:$0xff]
  %v3961 = vunpack.c.l.b16 %v3925
  %v3962 = vunpack.c.h.b16 %v3925
  %v3963 = vunpack.c.l.b16 %v3926
  %v3964 = vunpack.c.h.b16 %v3926
  %v3965 = vunpack.c.l.b16 %v3927
  %v3966 = vunpack.c.h.b16 %v3927
  %v3967 = vunpack.c.l.b16 %v3928
  %v3968 = vunpack.c.h.b16 %v3928
  %v3969 = vunpack.c.l.b16 %v3929
  %v3970 = vunpack.c.h.b16 %v3929
  %v3971 = vunpack.c.l.b16 %v3930
  %v3972 = vunpack.c.h.b16 %v3930
  %v3973 = vunpack.c.l.b16 %v3931
  %v3974 = vunpack.c.h.b16 %v3931
  %v3975 = vunpack.c.l.b16 %v3932
  %v3976 = vunpack.c.h.b16 %v3932
  %v3977 = vunpack.c.l.b16 %v3933
  %v3978 = vunpack.c.h.b16 %v3933
  %v3979 = vunpack.c.l.b16 %v3934
  %v3980 = vunpack.c.h.b16 %v3934
  %v3981 = vunpack.c.l.b16 %v3935
  %v3982 = vunpack.c.h.b16 %v3935
  %v3983 = vunpack.c.l.b16 %v3936
  %v3984 = vunpack.c.h.b16 %v3936
  %v3985 = vunpack.c.l.b16 %v3937
  %v3986 = vunpack.c.h.b16 %v3937
  %v3987 = vunpack.c.l.b16 %v3938
  %v3988 = vunpack.c.h.b16 %v3938
  %v3989 = vunpack.c.l.b16 %v3939
  %v3990 = vunpack.c.h.b16 %v3939
  %v3991 = vunpack.c.l.b16 %v3940
  %v3992 = vunpack.c.h.b16 %v3940
  %v3993 = vunpack.c.l.b16 %v3941
  %v3994 = vunpack.c.h.b16 %v3941
  %v3995 = vunpack.c.l.b16 %v3942
  %v3996 = vunpack.c.h.b16 %v3942
  %v3997 = vpack.c.b16 %v3965, %v3961
  %v3998 = vpack.c.b16 %v3966, %v3962
  %v3999 = vpack.c.b16 %v3967, %v3963
  %v4000 = vpack.c.b16 %v3968, %v3964
  %v4001 = vpack.c.b16 %v3973, %v3969
  %v4002 = vpack.c.b16 %v3974, %v3970
  %v4003 = vpack.c.b16 %v3975, %v3971
  %v4004 = vpack.c.b16 %v3976, %v3972
  %v4005 = vpack.c.b16 %v3981, %v3977
  %v4006 = vpack.c.b16 %v3982, %v3978
  %v4007 = vpack.c.b16 %v3983, %v3979
  %v4008 = vpack.c.b16 %v3984, %v3980
  %v4009 = vpack.c.b16 %v3989, %v3985
  %v4010 = vpack.c.b16 %v3990, %v3986
  %v4011 = vpack.c.b16 %v3991, %v3987
  %v4012 = vpack.c.b16 %v3992, %v3988
  %v4013 = vpack.c.b16 %v3993, %v3993
  %v4014 = vpack.c.b16 %v3994, %v3994
  %v4015 = vpack.c.b16 %v3995, %v3995
  %v4016 = vpack.c.b16 %v3996, %v3996
  %v4033 = vsel %vm2123, %v4000, 0
  %v4036 = vsel %vm2123, %v4004, 0
  %v4039 = vsel %vm2123, %v4008, 0
  %v4042 = vsel %vm2123, %v4012, 0
  %v4045 = vsel %vm2123, %v4016, 0
  %4047 = vmatprep.subr.bf16.mxu0 0
  %4048 = vmatpush1.bf16.msra.mxu0 %v1991
  %4049 = vmatprep.subr.bf16.mxu0 0
  %4050 = vmatpush1.bf16.msra.mxu0 %v1992
  %4051 = vmatprep.subr.bf16.mxu0 0
  %4052 = vmatpush1.bf16.msra.mxu0 %v1993
  %4053 = vmatprep.subr.bf16.mxu0 0
  %4054 = vmatpush1.bf16.msra.mxu0 %v1994
  %4055 = vmatprep.subr.bf16.mxu0 0
  %4056 = vmatpush1.bf16.msra.mxu0 %v1995
  %4057 = vmatprep.subr.bf16.mxu0 0
  %4058 = vmatpush1.bf16.msra.mxu0 %v1996
  %4059 = vmatprep.subr.bf16.mxu0 0
  %4060 = vmatpush1.bf16.msra.mxu0 %v1997
  %4061 = vmatprep.subr.bf16.mxu0 0
  %4062 = vmatpush1.bf16.msra.mxu0 %v1998
  %4063 = vmatprep.subr.bf16.mxu0 0
  %4064 = vmatpush1.bf16.msra.mxu0 %v1999
  %4065 = vmatprep.subr.bf16.mxu0 0
  %4066 = vmatpush1.bf16.msra.mxu0 %v2000
  %4067 = vmatprep.subr.bf16.mxu0 0
  %4068 = vmatpush1.bf16.msra.mxu0 %v2001
  %4069 = vmatprep.subr.bf16.mxu0 0
  %4070 = vmatpush1.bf16.msra.mxu0 %v2002
  %4071 = vmatprep.subr.bf16.mxu0 0
  %4072 = vmatpush1.bf16.msra.mxu0 %v2003
  %4073 = vmatprep.subr.bf16.mxu0 0
  %4074 = vmatpush1.bf16.msra.mxu0 %v2004
  %4075 = vmatprep.subr.bf16.mxu0 0
  %4076 = vmatpush1.bf16.msra.mxu0 %v2005
  %4077 = vmatprep.subr.bf16.mxu0 0
  %4078 = vmatpush1.bf16.msra.mxu0 %v2006
  %4079 = vmatprep.mubr.bf16.mxu0 %v3998
  %4080 = vmatmul.mubr.bf16.gmra.mrb[0].mxu0 %v3997
  %v4081 = vpop.f32.mrb[0].mxu0
  %v4082 = vadd.f32 0.0, %v4081
  %v4083 = vpop.f32.mrb[0].mxu0
  %v4084 = vpop.f32.mrb[0].mxu0
  %v4085 = vadd.f32 0.0, %v4084
  %v4086 = vpop.f32.mrb[0].mxu0
  %4087 = vmatprep.mubr.bf16.mxu0 %v4002
  %4088 = vmatmul.mubr.bf16.gmra.mrb[0].mxu0 %v4001
  %v4089 = vpop.f32.mrb[0].mxu0
  %v4090 = vadd.f32 0.0, %v4089
  %v4091 = vpop.f32.mrb[0].mxu0
  %v4092 = vpop.f32.mrb[0].mxu0
  %v4093 = vadd.f32 0.0, %v4092
  %v4094 = vpop.f32.mrb[0].mxu0
  %4095 = vmatprep.mubr.bf16.mxu0 %v4006
  %4096 = vmatmul.mubr.bf16.gmra.mrb[0].mxu0 %v4005
  %v4097 = vpop.f32.mrb[0].mxu0
  %v4098 = vadd.f32 0.0, %v4097
  %v4099 = vpop.f32.mrb[0].mxu0
  %v4100 = vpop.f32.mrb[0].mxu0
  %v4101 = vadd.f32 0.0, %v4100
  %v4102 = vpop.f32.mrb[0].mxu0
  %4103 = vmatprep.mubr.bf16.mxu0 %v4010
  %4104 = vmatmul.mubr.bf16.gmra.mrb[0].mxu0 %v4009
  %v4105 = vpop.f32.mrb[0].mxu0
  %v4106 = vadd.f32 0.0, %v4105
  %v4107 = vpop.f32.mrb[0].mxu0
  %v4108 = vpop.f32.mrb[0].mxu0
  %v4109 = vadd.f32 0.0, %v4108
  %v4110 = vpop.f32.mrb[0].mxu0
  %4111 = vmatprep.mubr.bf16.mxu0 %v4014
  %4112 = vmatmul.mubr.bf16.gmra.mrb[0].mxu0 %v4013
  %v4113 = vpop.f32.mrb[0].mxu0
  %v4114 = vadd.f32 0.0, %v4113
  %v4115 = vpop.f32.mrb[0].mxu0
  %v4116 = vpop.f32.mrb[0].mxu0
  %v4117 = vpop.f32.mrb[0].mxu0
  %4118 = vdwg.mxu0
  %4119 = vmatprep.subr.bf16.mxu0 0
  %4120 = vmatpush1.bf16.msra.mxu0 %v2007
  %4121 = vmatprep.subr.bf16.mxu0 0
  %4122 = vmatpush1.bf16.msra.mxu0 %v2008
  %4123 = vmatprep.subr.bf16.mxu0 0
  %4124 = vmatpush1.bf16.msra.mxu0 %v2009
  %4125 = vmatprep.subr.bf16.mxu0 0
  %4126 = vmatpush1.bf16.msra.mxu0 %v2010
  %4127 = vmatprep.subr.bf16.mxu0 0
  %4128 = vmatpush1.bf16.msra.mxu0 %v2011
  %4129 = vmatprep.subr.bf16.mxu0 0
  %4130 = vmatpush1.bf16.msra.mxu0 %v2012
  %4131 = vmatprep.subr.bf16.mxu0 0
  %4132 = vmatpush1.bf16.msra.mxu0 %v2013
  %4133 = vmatprep.subr.bf16.mxu0 0
  %4134 = vmatpush1.bf16.msra.mxu0 %v2014
  %4135 = vmatprep.subr.bf16.mxu0 0
  %4136 = vmatpush1.bf16.msra.mxu0 %v2141
  %4137 = vmatprep.subr.bf16.mxu0 0
  %4138 = vmatpush1.bf16.msra.mxu0 0
  %4139 = vmatprep.subr.bf16.mxu0 0
  %4140 = vmatpush1.bf16.msra.mxu0 0
  %4141 = vmatprep.subr.bf16.mxu0 0
  %4142 = vmatpush1.bf16.msra.mxu0 0
  %4143 = vmatprep.subr.bf16.mxu0 0
  %4144 = vmatpush1.bf16.msra.mxu0 0
  %4145 = vmatprep.subr.bf16.mxu0 0
  %4146 = vmatpush1.bf16.msra.mxu0 0
  %4147 = vmatprep.subr.bf16.mxu0 0
  %4148 = vmatpush1.bf16.msra.mxu0 0
  %4149 = vmatprep.subr.bf16.mxu0 0
  %4150 = vmatpush1.bf16.msra.mxu0 0
  %4151 = vmatprep.mubr.bf16.mxu0 %v4033
  %4152 = vmatmul.mubr.bf16.gmra.mrb[0].mxu0 %v3999
  %v4153 = vpop.f32.mrb[0].mxu0
  %v4154 = vadd.f32 %v4082, %v4153
  %v4155 = vpop.f32.mrb[0].mxu0
  %v4156 = vpop.f32.mrb[0].mxu0
  %v4157 = vadd.f32 %v4085, %v4156
  %v4158 = vpop.f32.mrb[0].mxu0
  %4159 = vmatprep.mubr.bf16.mxu0 %v4036
  %4160 = vmatmul.mubr.bf16.gmra.mrb[0].mxu0 %v4003
  %v4161 = vpop.f32.mrb[0].mxu0
  %v4162 = vadd.f32 %v4090, %v4161
  %v4163 = vpop.f32.mrb[0].mxu0
  %v4164 = vpop.f32.mrb[0].mxu0
  %v4165 = vadd.f32 %v4093, %v4164
  %v4166 = vpop.f32.mrb[0].mxu0
  %4167 = vmatprep.mubr.bf16.mxu0 %v4039
  %4168 = vmatmul.mubr.bf16.gmra.mrb[0].mxu0 %v4007
  %v4169 = vpop.f32.mrb[0].mxu0
  %v4170 = vadd.f32 %v4098, %v4169
  %v4171 = vpop.f32.mrb[0].mxu0
  %v4172 = vpop.f32.mrb[0].mxu0
  %v4173 = vadd.f32 %v4101, %v4172
  %v4174 = vpop.f32.mrb[0].mxu0
  %4175 = vmatprep.mubr.bf16.mxu0 %v4042
  %4176 = vmatmul.mubr.bf16.gmra.mrb[0].mxu0 %v4011
  %v4177 = vpop.f32.mrb[0].mxu0
  %v4178 = vadd.f32 %v4106, %v4177
  %v4179 = vpop.f32.mrb[0].mxu0
  %v4180 = vpop.f32.mrb[0].mxu0
  %v4181 = vadd.f32 %v4109, %v4180
  %v4182 = vpop.f32.mrb[0].mxu0
  %4183 = vmatprep.mubr.bf16.mxu0 %v4045
  %4184 = vmatmul.mubr.bf16.gmra.mrb[0].mxu0 %v4015
  %v4185 = vpop.f32.mrb[0].mxu0
  %v4186 = vadd.f32 %v4114, %v4185
  %v4187 = vpop.f32.mrb[0].mxu0
  %v4188 = vpop.f32.mrb[0].mxu0
  %v4189 = vpop.f32.mrb[0].mxu0
  %4190 = vdwg.mxu0
  %v4191 = vpack.c.bf16 %v4157, %v4154
  %v4192 = vpack.c.bf16 %v4165, %v4162
  %v4193 = vpack.c.bf16 %v4173, %v4170
  %v4194 = vpack.c.bf16 %v4181, %v4178
  %v4195 = vpack.c.bf16 %v4186, %v4186
  %s4196 = scalar_lea.vmem %s5, 1152
  %v4197 = vld [vmem:[%s4196] sm:$0xff]
  %v4198 = vld [vmem:[%s4196 + $0x8] sm:$0xff]
  %v4199 = vld [vmem:[%s4196 + $0x10] sm:$0xff]
  %v4200 = vld [vmem:[%s4196 + $0x18] sm:$0xff]
  %v4201 = vld [vmem:[%s4196 + $0x20] sm:$0xff]
  %v4202 = vld [vmem:[%s4196 + $0x28] sm:$0xff]
  %v4203 = vld [vmem:[%s4196 + $0x30] sm:$0xff]
  %v4204 = vld [vmem:[%s4196 + $0x38] sm:$0xff]
  %v4205 = vld [vmem:[%s4196 + $0x40] sm:$0xff]
  %v4206 = vld [vmem:[%s4196 + $0x48] sm:$0xff]
  %v4207 = vld [vmem:[%s4196 + $0x50] sm:$0xff]
  %v4208 = vld [vmem:[%s4196 + $0x58] sm:$0xff]
  %v4209 = vld [vmem:[%s4196 + $0x60] sm:$0xff]
  %v4210 = vld [vmem:[%s4196 + $0x68] sm:$0xff]
  %v4211 = vld [vmem:[%s4196 + $0x70] sm:$0xff]
  %v4212 = vld [vmem:[%s4196 + $0x78] sm:$0xff]
  %v4213 = vld [vmem:[%s4196 + $0x80] sm:$0xff]
  %v4214 = vld [vmem:[%s4196 + $0x88] sm:$0xff]
  %v4233 = vunpack.c.l.b16 %v4197
  %v4234 = vunpack.c.h.b16 %v4197
  %v4235 = vunpack.c.l.b16 %v4198
  %v4236 = vunpack.c.h.b16 %v4198
  %v4237 = vunpack.c.l.b16 %v4199
  %v4238 = vunpack.c.h.b16 %v4199
  %v4239 = vunpack.c.l.b16 %v4200
  %v4240 = vunpack.c.h.b16 %v4200
  %v4241 = vunpack.c.l.b16 %v4201
  %v4242 = vunpack.c.h.b16 %v4201
  %v4243 = vunpack.c.l.b16 %v4202
  %v4244 = vunpack.c.h.b16 %v4202
  %v4245 = vunpack.c.l.b16 %v4203
  %v4246 = vunpack.c.h.b16 %v4203
  %v4247 = vunpack.c.l.b16 %v4204
  %v4248 = vunpack.c.h.b16 %v4204
  %v4249 = vunpack.c.l.b16 %v4205
  %v4250 = vunpack.c.h.b16 %v4205
  %v4251 = vunpack.c.l.b16 %v4206
  %v4252 = vunpack.c.h.b16 %v4206
  %v4253 = vunpack.c.l.b16 %v4207
  %v4254 = vunpack.c.h.b16 %v4207
  %v4255 = vunpack.c.l.b16 %v4208
  %v4256 = vunpack.c.h.b16 %v4208
  %v4257 = vunpack.c.l.b16 %v4209
  %v4258 = vunpack.c.h.b16 %v4209
  %v4259 = vunpack.c.l.b16 %v4210
  %v4260 = vunpack.c.h.b16 %v4210
  %v4261 = vunpack.c.l.b16 %v4211
  %v4262 = vunpack.c.h.b16 %v4211
  %v4263 = vunpack.c.l.b16 %v4212
  %v4264 = vunpack.c.h.b16 %v4212
  %v4265 = vunpack.c.l.b16 %v4213
  %v4266 = vunpack.c.h.b16 %v4213
  %v4267 = vunpack.c.l.b16 %v4214
  %v4268 = vunpack.c.h.b16 %v4214
  %v4269 = vpack.c.b16 %v4237, %v4233
  %v4270 = vpack.c.b16 %v4238, %v4234
  %v4271 = vpack.c.b16 %v4239, %v4235
  %v4272 = vpack.c.b16 %v4240, %v4236
  %v4273 = vpack.c.b16 %v4245, %v4241
  %v4274 = vpack.c.b16 %v4246, %v4242
  %v4275 = vpack.c.b16 %v4247, %v4243
  %v4276 = vpack.c.b16 %v4248, %v4244
  %v4277 = vpack.c.b16 %v4253, %v4249
  %v4278 = vpack.c.b16 %v4254, %v4250
  %v4279 = vpack.c.b16 %v4255, %v4251
  %v4280 = vpack.c.b16 %v4256, %v4252
  %v4281 = vpack.c.b16 %v4261, %v4257
  %v4282 = vpack.c.b16 %v4262, %v4258
  %v4283 = vpack.c.b16 %v4263, %v4259
  %v4284 = vpack.c.b16 %v4264, %v4260
  %v4285 = vpack.c.b16 %v4265, %v4265
  %v4286 = vpack.c.b16 %v4266, %v4266
  %v4287 = vpack.c.b16 %v4267, %v4267
  %v4288 = vpack.c.b16 %v4268, %v4268
  %v4305 = vsel %vm2123, %v4272, 0
  %v4308 = vsel %vm2123, %v4276, 0
  %v4311 = vsel %vm2123, %v4280, 0
  %v4314 = vsel %vm2123, %v4284, 0
  %v4317 = vsel %vm2123, %v4288, 0
  %4319 = vmatprep.subr.bf16.mxu0 0
  %4320 = vmatpush1.bf16.msra.mxu0 %v1991
  %4321 = vmatprep.subr.bf16.mxu0 0
  %4322 = vmatpush1.bf16.msra.mxu0 %v1992
  %4323 = vmatprep.subr.bf16.mxu0 0
  %4324 = vmatpush1.bf16.msra.mxu0 %v1993
  %4325 = vmatprep.subr.bf16.mxu0 0
  %4326 = vmatpush1.bf16.msra.mxu0 %v1994
  %4327 = vmatprep.subr.bf16.mxu0 0
  %4328 = vmatpush1.bf16.msra.mxu0 %v1995
  %4329 = vmatprep.subr.bf16.mxu0 0
  %4330 = vmatpush1.bf16.msra.mxu0 %v1996
  %4331 = vmatprep.subr.bf16.mxu0 0
  %4332 = vmatpush1.bf16.msra.mxu0 %v1997
  %4333 = vmatprep.subr.bf16.mxu0 0
  %4334 = vmatpush1.bf16.msra.mxu0 %v1998
  %4335 = vmatprep.subr.bf16.mxu0 0
  %4336 = vmatpush1.bf16.msra.mxu0 %v1999
  %4337 = vmatprep.subr.bf16.mxu0 0
  %4338 = vmatpush1.bf16.msra.mxu0 %v2000
  %4339 = vmatprep.subr.bf16.mxu0 0
  %4340 = vmatpush1.bf16.msra.mxu0 %v2001
  %4341 = vmatprep.subr.bf16.mxu0 0
  %4342 = vmatpush1.bf16.msra.mxu0 %v2002
  %4343 = vmatprep.subr.bf16.mxu0 0
  %4344 = vmatpush1.bf16.msra.mxu0 %v2003
  %4345 = vmatprep.subr.bf16.mxu0 0
  %4346 = vmatpush1.bf16.msra.mxu0 %v2004
  %4347 = vmatprep.subr.bf16.mxu0 0
  %4348 = vmatpush1.bf16.msra.mxu0 %v2005
  %4349 = vmatprep.subr.bf16.mxu0 0
  %4350 = vmatpush1.bf16.msra.mxu0 %v2006
  %4351 = vmatprep.mubr.bf16.mxu0 %v4270
  %4352 = vmatmul.mubr.bf16.gmra.mrb[0].mxu0 %v4269
  %v4353 = vpop.f32.mrb[0].mxu0
  %v4354 = vadd.f32 0.0, %v4353
  %v4355 = vpop.f32.mrb[0].mxu0
  %v4356 = vpop.f32.mrb[0].mxu0
  %v4357 = vadd.f32 0.0, %v4356
  %v4358 = vpop.f32.mrb[0].mxu0
  %4359 = vmatprep.mubr.bf16.mxu0 %v4274
  %4360 = vmatmul.mubr.bf16.gmra.mrb[0].mxu0 %v4273
  %v4361 = vpop.f32.mrb[0].mxu0
  %v4362 = vadd.f32 0.0, %v4361
  %v4363 = vpop.f32.mrb[0].mxu0
  %v4364 = vpop.f32.mrb[0].mxu0
  %v4365 = vadd.f32 0.0, %v4364
  %v4366 = vpop.f32.mrb[0].mxu0
  %4367 = vmatprep.mubr.bf16.mxu0 %v4278
  %4368 = vmatmul.mubr.bf16.gmra.mrb[0].mxu0 %v4277
  %v4369 = vpop.f32.mrb[0].mxu0
  %v4370 = vadd.f32 0.0, %v4369
  %v4371 = vpop.f32.mrb[0].mxu0
  %v4372 = vpop.f32.mrb[0].mxu0
  %v4373 = vadd.f32 0.0, %v4372
  %v4374 = vpop.f32.mrb[0].mxu0
  %4375 = vmatprep.mubr.bf16.mxu0 %v4282
  %4376 = vmatmul.mubr.bf16.gmra.mrb[0].mxu0 %v4281
  %v4377 = vpop.f32.mrb[0].mxu0
  %v4378 = vadd.f32 0.0, %v4377
  %v4379 = vpop.f32.mrb[0].mxu0
  %v4380 = vpop.f32.mrb[0].mxu0
  %v4381 = vadd.f32 0.0, %v4380
  %v4382 = vpop.f32.mrb[0].mxu0
  %4383 = vmatprep.mubr.bf16.mxu0 %v4286
  %4384 = vmatmul.mubr.bf16.gmra.mrb[0].mxu0 %v4285
  %v4385 = vpop.f32.mrb[0].mxu0
  %v4386 = vadd.f32 0.0, %v4385
  %v4387 = vpop.f32.mrb[0].mxu0
  %v4388 = vpop.f32.mrb[0].mxu0
  %v4389 = vpop.f32.mrb[0].mxu0
  %4390 = vdwg.mxu0
  %4391 = vmatprep.subr.bf16.mxu0 0
  %4392 = vmatpush1.bf16.msra.mxu0 %v2007
  %4393 = vmatprep.subr.bf16.mxu0 0
  %4394 = vmatpush1.bf16.msra.mxu0 %v2008
  %4395 = vmatprep.subr.bf16.mxu0 0
  %4396 = vmatpush1.bf16.msra.mxu0 %v2009
  %4397 = vmatprep.subr.bf16.mxu0 0
  %4398 = vmatpush1.bf16.msra.mxu0 %v2010
  %4399 = vmatprep.subr.bf16.mxu0 0
  %4400 = vmatpush1.bf16.msra.mxu0 %v2011
  %4401 = vmatprep.subr.bf16.mxu0 0
  %4402 = vmatpush1.bf16.msra.mxu0 %v2012
  %4403 = vmatprep.subr.bf16.mxu0 0
  %4404 = vmatpush1.bf16.msra.mxu0 %v2013
  %4405 = vmatprep.subr.bf16.mxu0 0
  %4406 = vmatpush1.bf16.msra.mxu0 %v2014
  %4407 = vmatprep.subr.bf16.mxu0 0
  %4408 = vmatpush1.bf16.msra.mxu0 %v2141
  %4409 = vmatprep.subr.bf16.mxu0 0
  %4410 = vmatpush1.bf16.msra.mxu0 0
  %4411 = vmatprep.subr.bf16.mxu0 0
  %4412 = vmatpush1.bf16.msra.mxu0 0
  %4413 = vmatprep.subr.bf16.mxu0 0
  %4414 = vmatpush1.bf16.msra.mxu0 0
  %4415 = vmatprep.subr.bf16.mxu0 0
  %4416 = vmatpush1.bf16.msra.mxu0 0
  %4417 = vmatprep.subr.bf16.mxu0 0
  %4418 = vmatpush1.bf16.msra.mxu0 0
  %4419 = vmatprep.subr.bf16.mxu0 0
  %4420 = vmatpush1.bf16.msra.mxu0 0
  %4421 = vmatprep.subr.bf16.mxu0 0
  %4422 = vmatpush1.bf16.msra.mxu0 0
  %4423 = vmatprep.mubr.bf16.mxu0 %v4305
  %4424 = vmatmul.mubr.bf16.gmra.mrb[0].mxu0 %v4271
  %v4425 = vpop.f32.mrb[0].mxu0
  %v4426 = vadd.f32 %v4354, %v4425
  %v4427 = vpop.f32.mrb[0].mxu0
  %v4428 = vpop.f32.mrb[0].mxu0
  %v4429 = vadd.f32 %v4357, %v4428
  %v4430 = vpop.f32.mrb[0].mxu0
  %4431 = vmatprep.mubr.bf16.mxu0 %v4308
  %4432 = vmatmul.mubr.bf16.gmra.mrb[0].mxu0 %v4275
  %v4433 = vpop.f32.mrb[0].mxu0
  %v4434 = vadd.f32 %v4362, %v4433
  %v4435 = vpop.f32.mrb[0].mxu0
  %v4436 = vpop.f32.mrb[0].mxu0
  %v4437 = vadd.f32 %v4365, %v4436
  %v4438 = vpop.f32.mrb[0].mxu0
  %4439 = vmatprep.mubr.bf16.mxu0 %v4311
  %4440 = vmatmul.mubr.bf16.gmra.mrb[0].mxu0 %v4279
  %v4441 = vpop.f32.mrb[0].mxu0
  %v4442 = vadd.f32 %v4370, %v4441
  %v4443 = vpop.f32.mrb[0].mxu0
  %v4444 = vpop.f32.mrb[0].mxu0
  %v4445 = vadd.f32 %v4373, %v4444
  %v4446 = vpop.f32.mrb[0].mxu0
  %4447 = vmatprep.mubr.bf16.mxu0 %v4314
  %4448 = vmatmul.mubr.bf16.gmra.mrb[0].mxu0 %v4283
  %v4449 = vpop.f32.mrb[0].mxu0
  %v4450 = vadd.f32 %v4378, %v4449
  %v4451 = vpop.f32.mrb[0].mxu0
  %v4452 = vpop.f32.mrb[0].mxu0
  %v4453 = vadd.f32 %v4381, %v4452
  %v4454 = vpop.f32.mrb[0].mxu0
  %4455 = vmatprep.mubr.bf16.mxu0 %v4317
  %4456 = vmatmul.mubr.bf16.gmra.mrb[0].mxu0 %v4287
  %v4457 = vpop.f32.mrb[0].mxu0
  %v4458 = vadd.f32 %v4386, %v4457
  %v4459 = vpop.f32.mrb[0].mxu0
  %v4460 = vpop.f32.mrb[0].mxu0
  %v4461 = vpop.f32.mrb[0].mxu0
  %4462 = vdwg.mxu0
  %v4463 = vpack.c.bf16 %v4429, %v4426
  %v4464 = vpack.c.bf16 %v4437, %v4434
  %v4465 = vpack.c.bf16 %v4445, %v4442
  %v4466 = vpack.c.bf16 %v4453, %v4450
  %v4467 = vpack.c.bf16 %v4458, %v4458
  %4473 = vrot.lane.b32.xlu0 %v2559, 64
  %v4474 = vpop.permute.xlu0 %4473
  %4475 = vrot.lane.b32.xlu0 %v2560, 64
  %v4476 = vpop.permute.xlu0 %4475
  %4477 = vrot.lane.b32.xlu0 %v2561, 64
  %v4478 = vpop.permute.xlu0 %4477
  %4479 = vrot.lane.b32.xlu0 %v2562, 64
  %v4480 = vpop.permute.xlu0 %4479
  %4481 = vrot.lane.b32.xlu0 %v2563, 64
  %v4482 = vpop.permute.xlu0 %4481
  %4488 = vrot.lane.b32.xlu0 %v3103, 64
  %v4489 = vpop.permute.xlu0 %4488
  %4490 = vrot.lane.b32.xlu0 %v3104, 64
  %v4491 = vpop.permute.xlu0 %4490
  %4492 = vrot.lane.b32.xlu0 %v3105, 64
  %v4493 = vpop.permute.xlu0 %4492
  %4494 = vrot.lane.b32.xlu0 %v3106, 64
  %v4495 = vpop.permute.xlu0 %4494
  %4496 = vrot.lane.b32.xlu0 %v3107, 64
  %v4497 = vpop.permute.xlu0 %4496
  %4503 = vrot.lane.b32.xlu0 %v3647, 64
  %v4504 = vpop.permute.xlu0 %4503
  %4505 = vrot.lane.b32.xlu0 %v3648, 64
  %v4506 = vpop.permute.xlu0 %4505
  %4507 = vrot.lane.b32.xlu0 %v3649, 64
  %v4508 = vpop.permute.xlu0 %4507
  %4509 = vrot.lane.b32.xlu0 %v3650, 64
  %v4510 = vpop.permute.xlu0 %4509
  %4511 = vrot.lane.b32.xlu0 %v3651, 64
  %v4512 = vpop.permute.xlu0 %4511
  %4518 = vrot.lane.b32.xlu0 %v4191, 64
  %v4519 = vpop.permute.xlu0 %4518
  %4520 = vrot.lane.b32.xlu0 %v4192, 64
  %v4521 = vpop.permute.xlu0 %4520
  %4522 = vrot.lane.b32.xlu0 %v4193, 64
  %v4523 = vpop.permute.xlu0 %4522
  %4524 = vrot.lane.b32.xlu0 %v4194, 64
  %v4525 = vpop.permute.xlu0 %4524
  %4526 = vrot.lane.b32.xlu0 %v4195, 64
  %v4527 = vpop.permute.xlu0 %4526
  %vm4528 = vcmask 523264
  %v4531 = vsel %vm4528, %v2287, %v4474
  %v4535 = vsel %vm4528, %v2288, %v4476
  %v4539 = vsel %vm4528, %v2289, %v4478
  %v4543 = vsel %vm4528, %v2290, %v4480
  %v4547 = vsel %vm4528, %v2291, %v4482
  %v4551 = vsel %vm4528, %v2831, %v4489
  %v4555 = vsel %vm4528, %v2832, %v4491
  %v4559 = vsel %vm4528, %v2833, %v4493
  %v4563 = vsel %vm4528, %v2834, %v4495
  %v4567 = vsel %vm4528, %v2835, %v4497
  %v4571 = vsel %vm4528, %v3375, %v4504
  %v4575 = vsel %vm4528, %v3376, %v4506
  %v4579 = vsel %vm4528, %v3377, %v4508
  %v4583 = vsel %vm4528, %v3378, %v4510
  %v4587 = vsel %vm4528, %v3379, %v4512
  %v4591 = vsel %vm4528, %v3919, %v4519
  %v4595 = vsel %vm4528, %v3920, %v4521
  %v4599 = vsel %vm4528, %v3921, %v4523
  %v4603 = vsel %vm4528, %v3922, %v4525
  %v4607 = vsel %vm4528, %v3923, %v4527
  %v4609 = vld [vmem:[%s6] sm:$0xf]
  %v4610 = vld [vmem:[%s6 + $0x4] sm:$0xf]
  %v4611 = vld [vmem:[%s6 + $0x8] sm:$0xf]
  %v4612 = vld [vmem:[%s6 + $0xc] sm:$0xf]
  %v4613 = vld [vmem:[%s6 + $0x10] sm:$0xf]
  %v4614 = vld [vmem:[%s6 + $0x14] sm:$0xf]
  %v4615 = vld [vmem:[%s6 + $0x18] sm:$0xf]
  %v4616 = vld [vmem:[%s6 + $0x1c] sm:$0xf]
  %v4617 = vld [vmem:[%s6 + $0x20] sm:$0xf]
  %v4618 = vld [vmem:[%s6 + $0x24] sm:$0xf]
  %v4619 = vld [vmem:[%s6 + $0x28] sm:$0xf]
  %v4620 = vld [vmem:[%s6 + $0x2c] sm:$0xf]
  %v4621 = vld [vmem:[%s6 + $0x30] sm:$0xf]
  %v4622 = vld [vmem:[%s6 + $0x34] sm:$0xf]
  %v4623 = vld [vmem:[%s6 + $0x38] sm:$0xf]
  %v4624 = vld [vmem:[%s6 + $0x3c] sm:$0xf]
  %v4625 = vld [vmem:[%s6 + $0x40] sm:$0xf]
  %v4626 = vld [vmem:[%s6 + $0x44] sm:$0xf]
  %v4627 = vld [vmem:[%s6 + $0x48] sm:$0xf]
  %v4628 = vld [vmem:[%s6 + $0x4c] sm:$0xf]
  %v4629 = vld [vmem:[%s6 + $0x50] sm:$0xf]
  %v4630 = vld [vmem:[%s6 + $0x54] sm:$0xf]
  %v4631 = vld [vmem:[%s6 + $0x58] sm:$0xf]
  %v4632 = vld [vmem:[%s6 + $0x5c] sm:$0xf]
  %v4633 = vld [vmem:[%s6 + $0x60] sm:$0xf]
  %v4634 = vld [vmem:[%s6 + $0x64] sm:$0xf]
  %v4635 = vld [vmem:[%s6 + $0x68] sm:$0xf]
  %v4636 = vld [vmem:[%s6 + $0x6c] sm:$0xf]
  %v4637 = vld [vmem:[%s6 + $0x70] sm:$0xf]
  %v4638 = vld [vmem:[%s6 + $0x74] sm:$0xf]
  %v4639 = vld [vmem:[%s6 + $0x78] sm:$0xf]
  %v4640 = vld [vmem:[%s6 + $0x7c] sm:$0xf]
  %v4641 = vld [vmem:[%s6 + $0x80] sm:$0xf]
  %v4642 = vld [vmem:[%s6 + $0x84] sm:$0xf]
  %v4643 = vld [vmem:[%s6 + $0x88] sm:$0xf]
  %v4644 = vld [vmem:[%s6 + $0x8c] sm:$0xf]
  %v4645 = vld [vmem:[%s6 + $0x90] sm:$0xf]
  %v4646 = vld [vmem:[%s6 + $0x94] sm:$0xf]
  %v4647 = vld [vmem:[%s6 + $0x98] sm:$0xf]
  %v4648 = vld [vmem:[%s6 + $0x9c] sm:$0xf]
  %v4649 = vld [vmem:[%s6 + $0xa0] sm:$0xf]
  %v4650 = vld [vmem:[%s6 + $0xa4] sm:$0xf]
  %v4651 = vld [vmem:[%s6 + $0xa8] sm:$0xf]
  %v4652 = vld [vmem:[%s6 + $0xac] sm:$0xf]
  %v4653 = vld [vmem:[%s6 + $0xb0] sm:$0xf]
  %v4654 = vld [vmem:[%s6 + $0xb4] sm:$0xf]
  %v4655 = vld [vmem:[%s6 + $0xb8] sm:$0xf]
  %v4656 = vld [vmem:[%s6 + $0xbc] sm:$0xf]
  %v4657 = vld [vmem:[%s6 + $0xc0] sm:$0xf]
  %v4658 = vld [vmem:[%s6 + $0xc4] sm:$0xf]
  %v4659 = vld [vmem:[%s6 + $0xc8] sm:$0xf]
  %v4660 = vld [vmem:[%s6 + $0xcc] sm:$0xf]
  %v4661 = vld [vmem:[%s6 + $0xd0] sm:$0xf]
  %v4662 = vld [vmem:[%s6 + $0xd4] sm:$0xf]
  %v4663 = vld [vmem:[%s6 + $0xd8] sm:$0xf]
  %v4664 = vld [vmem:[%s6 + $0xdc] sm:$0xf]
  %v4665 = vld [vmem:[%s6 + $0xe0] sm:$0xf]
  %v4666 = vld [vmem:[%s6 + $0xe4] sm:$0xf]
  %v4667 = vld [vmem:[%s6 + $0xe8] sm:$0xf]
  %v4668 = vld [vmem:[%s6 + $0xec] sm:$0xf]
  %v4669 = vld [vmem:[%s6 + $0xf0] sm:$0xf]
  %v4670 = vld [vmem:[%s6 + $0xf4] sm:$0xf]
  %v4671 = vld [vmem:[%s6 + $0xf8] sm:$0xf]
  %v4672 = vld [vmem:[%s6 + $0xfc] sm:$0xf]
  %v4673 = vld [vmem:[%s6 + $0x100] sm:$0xf]
  %v4674 = vld [vmem:[%s6 + $0x104] sm:$0xf]
  %v4675 = vld [vmem:[%s6 + $0x108] sm:$0xf]
  %v4676 = vld [vmem:[%s6 + $0x10c] sm:$0xf]
  %v4677 = vld [vmem:[%s6 + $0x110] sm:$0xf]
  %v4678 = vld [vmem:[%s6 + $0x114] sm:$0xf]
  %v4679 = vld [vmem:[%s6 + $0x118] sm:$0xf]
  %v4680 = vld [vmem:[%s6 + $0x11c] sm:$0xf]
  %v4681 = vld [vmem:[%s7] sm:$0x1]
  %v4683 = vlaneseq
  %v4684 = vshrl.u32 %v4683, 7
  %v4685 = vsub.s32 0, %v4684
  %v4686 = vrot.slane %v4681, %v4685
  %v4760 = vunpack.c.l.b16 %v4609
  %v4761 = vunpack.c.l.b16 %v4610
  %v4762 = vunpack.c.l.b16 %v4611
  %v4763 = vunpack.c.l.b16 %v4612
  %v4764 = vunpack.c.l.b16 %v4613
  %v4765 = vunpack.c.l.b16 %v4614
  %v4766 = vunpack.c.l.b16 %v4615
  %v4767 = vunpack.c.l.b16 %v4616
  %v4768 = vunpack.c.l.b16 %v4617
  %v4769 = vunpack.c.l.b16 %v4618
  %v4770 = vunpack.c.l.b16 %v4619
  %v4771 = vunpack.c.l.b16 %v4620
  %v4772 = vunpack.c.l.b16 %v4621
  %v4773 = vunpack.c.l.b16 %v4622
  %v4774 = vunpack.c.l.b16 %v4623
  %v4775 = vunpack.c.l.b16 %v4624
  %v4776 = vunpack.c.l.b16 %v4625
  %v4777 = vunpack.c.l.b16 %v4626
  %v4778 = vunpack.c.l.b16 %v4627
  %v4779 = vunpack.c.l.b16 %v4628
  %v4780 = vunpack.c.l.b16 %v4629
  %v4781 = vunpack.c.l.b16 %v4630
  %v4782 = vunpack.c.l.b16 %v4631
  %v4783 = vunpack.c.l.b16 %v4632
  %v4784 = vunpack.c.l.b16 %v4633
  %v4785 = vunpack.c.l.b16 %v4634
  %v4786 = vunpack.c.l.b16 %v4635
  %v4787 = vunpack.c.l.b16 %v4636
  %v4788 = vunpack.c.l.b16 %v4637
  %v4789 = vunpack.c.l.b16 %v4638
  %v4790 = vunpack.c.l.b16 %v4639
  %v4791 = vunpack.c.l.b16 %v4640
  %v4792 = vunpack.c.l.b16 %v4641
  %v4793 = vunpack.c.l.b16 %v4642
  %v4794 = vunpack.c.l.b16 %v4643
  %v4795 = vunpack.c.l.b16 %v4644
  %v4796 = vunpack.c.l.b16 %v4645
  %v4797 = vunpack.c.l.b16 %v4646
  %v4798 = vunpack.c.l.b16 %v4647
  %v4799 = vunpack.c.l.b16 %v4648
  %v4800 = vunpack.c.l.b16 %v4649
  %v4801 = vunpack.c.l.b16 %v4650
  %v4802 = vunpack.c.l.b16 %v4651
  %v4803 = vunpack.c.l.b16 %v4652
  %v4804 = vunpack.c.l.b16 %v4653
  %v4805 = vunpack.c.l.b16 %v4654
  %v4806 = vunpack.c.l.b16 %v4655
  %v4807 = vunpack.c.l.b16 %v4656
  %v4808 = vunpack.c.l.b16 %v4657
  %v4809 = vunpack.c.l.b16 %v4658
  %v4810 = vunpack.c.l.b16 %v4659
  %v4811 = vunpack.c.l.b16 %v4660
  %v4812 = vunpack.c.l.b16 %v4661
  %v4813 = vunpack.c.l.b16 %v4662
  %v4814 = vunpack.c.l.b16 %v4663
  %v4815 = vunpack.c.l.b16 %v4664
  %v4816 = vunpack.c.l.b16 %v4665
  %v4817 = vunpack.c.l.b16 %v4666
  %v4818 = vunpack.c.l.b16 %v4667
  %v4819 = vunpack.c.l.b16 %v4668
  %v4820 = vunpack.c.l.b16 %v4669
  %v4821 = vunpack.c.l.b16 %v4670
  %v4822 = vunpack.c.l.b16 %v4671
  %v4823 = vunpack.c.l.b16 %v4672
  %v4824 = vunpack.c.l.b16 %v4673
  %v4825 = vunpack.c.l.b16 %v4674
  %v4826 = vunpack.c.l.b16 %v4675
  %v4827 = vunpack.c.l.b16 %v4676
  %v4828 = vunpack.c.l.b16 %v4677
  %v4829 = vunpack.c.l.b16 %v4678
  %v4830 = vunpack.c.l.b16 %v4679
  %v4831 = vunpack.c.l.b16 %v4680
  %v4832 = vpack.c.b16 %v4761, %v4760
  %v4833 = vpack.c.b16 %v4763, %v4762
  %v4834 = vpack.c.b16 %v4765, %v4764
  %v4835 = vpack.c.b16 %v4767, %v4766
  %v4836 = vpack.c.b16 %v4769, %v4768
  %v4837 = vpack.c.b16 %v4771, %v4770
  %v4838 = vpack.c.b16 %v4773, %v4772
  %v4839 = vpack.c.b16 %v4775, %v4774
  %v4840 = vpack.c.b16 %v4777, %v4776
  %v4841 = vpack.c.b16 %v4779, %v4778
  %v4842 = vpack.c.b16 %v4781, %v4780
  %v4843 = vpack.c.b16 %v4783, %v4782
  %v4844 = vpack.c.b16 %v4785, %v4784
  %v4845 = vpack.c.b16 %v4787, %v4786
  %v4846 = vpack.c.b16 %v4789, %v4788
  %v4847 = vpack.c.b16 %v4791, %v4790
  %v4848 = vpack.c.b16 %v4793, %v4792
  %v4849 = vpack.c.b16 %v4795, %v4794
  %v4850 = vpack.c.b16 %v4797, %v4796
  %v4851 = vpack.c.b16 %v4799, %v4798
  %v4852 = vpack.c.b16 %v4801, %v4800
  %v4853 = vpack.c.b16 %v4803, %v4802
  %v4854 = vpack.c.b16 %v4805, %v4804
  %v4855 = vpack.c.b16 %v4807, %v4806
  %v4856 = vpack.c.b16 %v4809, %v4808
  %v4857 = vpack.c.b16 %v4811, %v4810
  %v4858 = vpack.c.b16 %v4813, %v4812
  %v4859 = vpack.c.b16 %v4815, %v4814
  %v4860 = vpack.c.b16 %v4817, %v4816
  %v4861 = vpack.c.b16 %v4819, %v4818
  %v4862 = vpack.c.b16 %v4821, %v4820
  %v4863 = vpack.c.b16 %v4823, %v4822
  %v4864 = vpack.c.b16 %v4825, %v4824
  %v4865 = vpack.c.b16 %v4827, %v4826
  %v4866 = vpack.c.b16 %v4829, %v4828
  %v4867 = vpack.c.b16 %v4831, %v4830
  %v4905 = vsel %vm4528, %v4463, 0
  %v4908 = vsel %vm4528, %v4464, 0
  %v4911 = vsel %vm4528, %v4465, 0
  %v4914 = vsel %vm4528, %v4466, 0
  %v4917 = vsel %vm4528, %v4467, 0
  %4919 = vmatprep.subr.bf16.mxu0 0
  %4920 = vmatpush1.bf16.msra.mxu0 %v4832
  %4921 = vmatprep.subr.bf16.mxu0 0
  %4922 = vmatpush1.bf16.msra.mxu0 %v4833
  %4923 = vmatprep.subr.bf16.mxu0 0
  %4924 = vmatpush1.bf16.msra.mxu0 %v4834
  %4925 = vmatprep.subr.bf16.mxu0 0
  %4926 = vmatpush1.bf16.msra.mxu0 %v4835
  %4927 = vmatprep.subr.bf16.mxu0 0
  %4928 = vmatpush1.bf16.msra.mxu0 %v4836
  %4929 = vmatprep.subr.bf16.mxu0 0
  %4930 = vmatpush1.bf16.msra.mxu0 %v4837
  %4931 = vmatprep.subr.bf16.mxu0 0
  %4932 = vmatpush1.bf16.msra.mxu0 %v4838
  %4933 = vmatprep.subr.bf16.mxu0 0
  %4934 = vmatpush1.bf16.msra.mxu0 %v4839
  %4935 = vmatprep.subr.bf16.mxu0 0
  %4936 = vmatpush1.bf16.msra.mxu0 %v4840
  %4937 = vmatprep.subr.bf16.mxu0 0
  %4938 = vmatpush1.bf16.msra.mxu0 %v4841
  %4939 = vmatprep.subr.bf16.mxu0 0
  %4940 = vmatpush1.bf16.msra.mxu0 %v4842
  %4941 = vmatprep.subr.bf16.mxu0 0
  %4942 = vmatpush1.bf16.msra.mxu0 %v4843
  %4943 = vmatprep.subr.bf16.mxu0 0
  %4944 = vmatpush1.bf16.msra.mxu0 %v4844
  %4945 = vmatprep.subr.bf16.mxu0 0
  %4946 = vmatpush1.bf16.msra.mxu0 %v4845
  %4947 = vmatprep.subr.bf16.mxu0 0
  %4948 = vmatpush1.bf16.msra.mxu0 %v4846
  %4949 = vmatprep.subr.bf16.mxu0 0
  %4950 = vmatpush1.bf16.msra.mxu0 %v4847
  %4951 = vmatprep.mubr.bf16.mxu0 %v4551
  %4952 = vmatmul.mubr.bf16.gmra.mrb[0].mxu0 %v4531
  %v4953 = vpop.f32.mrb[0].mxu0
  %v4954 = vadd.f32 %v4686, %v4953
  %v4955 = vpop.f32.mrb[0].mxu0
  %v4956 = vpop.f32.mrb[0].mxu0
  %v4957 = vadd.f32 %v4686, %v4956
  %v4958 = vpop.f32.mrb[0].mxu0
  %4959 = vmatprep.mubr.bf16.mxu0 %v4555
  %4960 = vmatmul.mubr.bf16.gmra.mrb[0].mxu0 %v4535
  %v4961 = vpop.f32.mrb[0].mxu0
  %v4962 = vadd.f32 %v4686, %v4961
  %v4963 = vpop.f32.mrb[0].mxu0
  %v4964 = vpop.f32.mrb[0].mxu0
  %v4965 = vadd.f32 %v4686, %v4964
  %v4966 = vpop.f32.mrb[0].mxu0
  %4967 = vmatprep.mubr.bf16.mxu0 %v4559
  %4968 = vmatmul.mubr.bf16.gmra.mrb[0].mxu0 %v4539
  %v4969 = vpop.f32.mrb[0].mxu0
  %v4970 = vadd.f32 %v4686, %v4969
  %v4971 = vpop.f32.mrb[0].mxu0
  %v4972 = vpop.f32.mrb[0].mxu0
  %v4973 = vadd.f32 %v4686, %v4972
  %v4974 = vpop.f32.mrb[0].mxu0
  %4975 = vmatprep.mubr.bf16.mxu0 %v4563
  %4976 = vmatmul.mubr.bf16.gmra.mrb[0].mxu0 %v4543
  %v4977 = vpop.f32.mrb[0].mxu0
  %v4978 = vadd.f32 %v4686, %v4977
  %v4979 = vpop.f32.mrb[0].mxu0
  %v4980 = vpop.f32.mrb[0].mxu0
  %v4981 = vadd.f32 %v4686, %v4980
  %v4982 = vpop.f32.mrb[0].mxu0
  %4983 = vmatprep.mubr.bf16.mxu0 %v4567
  %4984 = vmatmul.mubr.bf16.gmra.mrb[0].mxu0 %v4547
  %v4985 = vpop.f32.mrb[0].mxu0
  %v4986 = vadd.f32 %v4686, %v4985
  %v4987 = vpop.f32.mrb[0].mxu0
  %v4988 = vpop.f32.mrb[0].mxu0
  %v4989 = vpop.f32.mrb[0].mxu0
  %4990 = vdwg.mxu0
  %4991 = vmatprep.subr.bf16.mxu0 0
  %4992 = vmatpush1.bf16.msra.mxu0 %v4848
  %4993 = vmatprep.subr.bf16.mxu0 0
  %4994 = vmatpush1.bf16.msra.mxu0 %v4849
  %4995 = vmatprep.subr.bf16.mxu0 0
  %4996 = vmatpush1.bf16.msra.mxu0 %v4850
  %4997 = vmatprep.subr.bf16.mxu0 0
  %4998 = vmatpush1.bf16.msra.mxu0 %v4851
  %4999 = vmatprep.subr.bf16.mxu0 0
  %5000 = vmatpush1.bf16.msra.mxu0 %v4852
  %5001 = vmatprep.subr.bf16.mxu0 0
  %5002 = vmatpush1.bf16.msra.mxu0 %v4853
  %5003 = vmatprep.subr.bf16.mxu0 0
  %5004 = vmatpush1.bf16.msra.mxu0 %v4854
  %5005 = vmatprep.subr.bf16.mxu0 0
  %5006 = vmatpush1.bf16.msra.mxu0 %v4855
  %5007 = vmatprep.subr.bf16.mxu0 0
  %5008 = vmatpush1.bf16.msra.mxu0 %v4856
  %5009 = vmatprep.subr.bf16.mxu0 0
  %5010 = vmatpush1.bf16.msra.mxu0 %v4857
  %5011 = vmatprep.subr.bf16.mxu0 0
  %5012 = vmatpush1.bf16.msra.mxu0 %v4858
  %5013 = vmatprep.subr.bf16.mxu0 0
  %5014 = vmatpush1.bf16.msra.mxu0 %v4859
  %5015 = vmatprep.subr.bf16.mxu0 0
  %5016 = vmatpush1.bf16.msra.mxu0 %v4860
  %5017 = vmatprep.subr.bf16.mxu0 0
  %5018 = vmatpush1.bf16.msra.mxu0 %v4861
  %5019 = vmatprep.subr.bf16.mxu0 0
  %5020 = vmatpush1.bf16.msra.mxu0 %v4862
  %5021 = vmatprep.subr.bf16.mxu0 0
  %5022 = vmatpush1.bf16.msra.mxu0 %v4863
  %5023 = vmatprep.mubr.bf16.mxu0 %v4591
  %5024 = vmatmul.mubr.bf16.gmra.mrb[0].mxu0 %v4571
  %v5025 = vpop.f32.mrb[0].mxu0
  %v5026 = vadd.f32 %v4954, %v5025
  %v5027 = vpop.f32.mrb[0].mxu0
  %v5028 = vpop.f32.mrb[0].mxu0
  %v5029 = vadd.f32 %v4957, %v5028
  %v5030 = vpop.f32.mrb[0].mxu0
  %5031 = vmatprep.mubr.bf16.mxu0 %v4595
  %5032 = vmatmul.mubr.bf16.gmra.mrb[0].mxu0 %v4575
  %v5033 = vpop.f32.mrb[0].mxu0
  %v5034 = vadd.f32 %v4962, %v5033
  %v5035 = vpop.f32.mrb[0].mxu0
  %v5036 = vpop.f32.mrb[0].mxu0
  %v5037 = vadd.f32 %v4965, %v5036
  %v5038 = vpop.f32.mrb[0].mxu0
  %5039 = vmatprep.mubr.bf16.mxu0 %v4599
  %5040 = vmatmul.mubr.bf16.gmra.mrb[0].mxu0 %v4579
  %v5041 = vpop.f32.mrb[0].mxu0
  %v5042 = vadd.f32 %v4970, %v5041
  %v5043 = vpop.f32.mrb[0].mxu0
  %v5044 = vpop.f32.mrb[0].mxu0
  %v5045 = vadd.f32 %v4973, %v5044
  %v5046 = vpop.f32.mrb[0].mxu0
  %5047 = vmatprep.mubr.bf16.mxu0 %v4603
  %5048 = vmatmul.mubr.bf16.gmra.mrb[0].mxu0 %v4583
  %v5049 = vpop.f32.mrb[0].mxu0
  %v5050 = vadd.f32 %v4978, %v5049
  %v5051 = vpop.f32.mrb[0].mxu0
  %v5052 = vpop.f32.mrb[0].mxu0
  %v5053 = vadd.f32 %v4981, %v5052
  %v5054 = vpop.f32.mrb[0].mxu0
  %5055 = vmatprep.mubr.bf16.mxu0 %v4607
  %5056 = vmatmul.mubr.bf16.gmra.mrb[0].mxu0 %v4587
  %v5057 = vpop.f32.mrb[0].mxu0
  %v5058 = vadd.f32 %v4986, %v5057
  %v5059 = vpop.f32.mrb[0].mxu0
  %v5060 = vpop.f32.mrb[0].mxu0
  %v5061 = vpop.f32.mrb[0].mxu0
  %5062 = vdwg.mxu0
  %5063 = vmatprep.subr.bf16.mxu0 0
  %5064 = vmatpush1.bf16.msra.mxu0 %v4864
  %5065 = vmatprep.subr.bf16.mxu0 0
  %5066 = vmatpush1.bf16.msra.mxu0 %v4865
  %5067 = vmatprep.subr.bf16.mxu0 0
  %5068 = vmatpush1.bf16.msra.mxu0 %v4866
  %5069 = vmatprep.subr.bf16.mxu0 0
  %5070 = vmatpush1.bf16.msra.mxu0 %v4867
  %5071 = vmatprep.subr.bf16.mxu0 0
  %5072 = vmatpush1.bf16.msra.mxu0 0
  %5073 = vmatprep.subr.bf16.mxu0 0
  %5074 = vmatpush1.bf16.msra.mxu0 0
  %5075 = vmatprep.subr.bf16.mxu0 0
  %5076 = vmatpush1.bf16.msra.mxu0 0
  %5077 = vmatprep.subr.bf16.mxu0 0
  %5078 = vmatpush1.bf16.msra.mxu0 0
  %5079 = vmatprep.subr.bf16.mxu0 0
  %5080 = vmatpush1.bf16.msra.mxu0 0
  %5081 = vmatprep.subr.bf16.mxu0 0
  %5082 = vmatpush1.bf16.msra.mxu0 0
  %5083 = vmatprep.subr.bf16.mxu0 0
  %5084 = vmatpush1.bf16.msra.mxu0 0
  %5085 = vmatprep.subr.bf16.mxu0 0
  %5086 = vmatpush1.bf16.msra.mxu0 0
  %5087 = vmatprep.subr.bf16.mxu0 0
  %5088 = vmatpush1.bf16.msra.mxu0 0
  %5089 = vmatprep.subr.bf16.mxu0 0
  %5090 = vmatpush1.bf16.msra.mxu0 0
  %5091 = vmatprep.subr.bf16.mxu0 0
  %5092 = vmatpush1.bf16.msra.mxu0 0
  %5093 = vmatprep.subr.bf16.mxu0 0
  %5094 = vmatpush1.bf16.msra.mxu0 0
  %5095 = vmatprep.mubr.bf16.mxu0 0
  %5096 = vmatmul.mubr.bf16.gmra.mrb[0].mxu0 %v4905
  %v5097 = vpop.f32.mrb[0].mxu0
  %v5098 = vadd.f32 %v5026, %v5097
  %v5099 = vpop.f32.mrb[0].mxu0
  %v5100 = vpop.f32.mrb[0].mxu0
  %v5101 = vadd.f32 %v5029, %v5100
  %v5102 = vpop.f32.mrb[0].mxu0
  %5103 = vmatprep.mubr.bf16.mxu0 0
  %5104 = vmatmul.mubr.bf16.gmra.mrb[0].mxu0 %v4908
  %v5105 = vpop.f32.mrb[0].mxu0
  %v5106 = vadd.f32 %v5034, %v5105
  %v5107 = vpop.f32.mrb[0].mxu0
  %v5108 = vpop.f32.mrb[0].mxu0
  %v5109 = vadd.f32 %v5037, %v5108
  %v5110 = vpop.f32.mrb[0].mxu0
  %5111 = vmatprep.mubr.bf16.mxu0 0
  %5112 = vmatmul.mubr.bf16.gmra.mrb[0].mxu0 %v4911
  %v5113 = vpop.f32.mrb[0].mxu0
  %v5114 = vadd.f32 %v5042, %v5113
  %v5115 = vpop.f32.mrb[0].mxu0
  %v5116 = vpop.f32.mrb[0].mxu0
  %v5117 = vadd.f32 %v5045, %v5116
  %v5118 = vpop.f32.mrb[0].mxu0
  %5119 = vmatprep.mubr.bf16.mxu0 0
  %5120 = vmatmul.mubr.bf16.gmra.mrb[0].mxu0 %v4914
  %v5121 = vpop.f32.mrb[0].mxu0
  %v5122 = vadd.f32 %v5050, %v5121
  %v5123 = vpop.f32.mrb[0].mxu0
  %v5124 = vpop.f32.mrb[0].mxu0
  %v5125 = vadd.f32 %v5053, %v5124
  %v5126 = vpop.f32.mrb[0].mxu0
  %5127 = vmatprep.mubr.bf16.mxu0 0
  %5128 = vmatmul.mubr.bf16.gmra.mrb[0].mxu0 %v4917
  %v5129 = vpop.f32.mrb[0].mxu0
  %v5130 = vadd.f32 %v5058, %v5129
  %v5131 = vpop.f32.mrb[0].mxu0
  %v5132 = vpop.f32.mrb[0].mxu0
  %v5133 = vpop.f32.mrb[0].mxu0
  %5134 = vdwg.mxu0
  %v5135 = vmax.f32 %v5098, 0.0
  %v5136 = vmax.f32 %v5101, 0.0
  %v5137 = vmax.f32 %v5106, 0.0
  %v5138 = vmax.f32 %v5109, 0.0
  %v5139 = vmax.f32 %v5114, 0.0
  %v5140 = vmax.f32 %v5117, 0.0
  %v5141 = vmax.f32 %v5122, 0.0
  %v5142 = vmax.f32 %v5125, 0.0
  %v5143 = vmax.f32 %v5130, 0.0
  %v5144 = vpack.c.bf16 %v5135, %v5135
  %v5145 = vpack.c.bf16 %v5136, %v5136
  %v5146 = vpack.c.bf16 %v5137, %v5137
  %v5147 = vpack.c.bf16 %v5138, %v5138
  %v5148 = vpack.c.bf16 %v5139, %v5139
  %v5149 = vpack.c.bf16 %v5140, %v5140
  %v5150 = vpack.c.bf16 %v5141, %v5141
  %v5151 = vpack.c.bf16 %v5142, %v5142
  %v5152 = vpack.c.bf16 %v5143, %v5143
  %v5153 = vld [vmem:[%s8] sm:$0xff]
  %v5154 = vld [vmem:[%s8 + $0x8] sm:$0xff]
  %v5155 = vld [vmem:[%s8 + $0x10] sm:$0xff]
  %v5156 = vld [vmem:[%s8 + $0x18] sm:$0xff]
  %v5157 = vld [vmem:[%s8 + $0x20] sm:$0xff]
  %v5158 = vld [vmem:[%s8 + $0x28] sm:$0xff]
  %v5159 = vld [vmem:[%s8 + $0x30] sm:$0xff]
  %v5160 = vld [vmem:[%s8 + $0x38] sm:$0xff]
  %v5161 = vld [vmem:[%s8 + $0x40] sm:$0xff]
  %v5162 = vld [vmem:[%s8 + $0x48] sm:$0xff]
  %v5163 = vld [vmem:[%s8 + $0x50] sm:$0xff]
  %v5164 = vld [vmem:[%s8 + $0x58] sm:$0xff]
  %v5165 = vld [vmem:[%s8 + $0x60] sm:$0xff]
  %v5166 = vld [vmem:[%s8 + $0x68] sm:$0xff]
  %v5167 = vld [vmem:[%s8 + $0x70] sm:$0xff]
  %v5168 = vld [vmem:[%s8 + $0x78] sm:$0xff]
  %v5169 = vld [vmem:[%s8 + $0x80] sm:$0xff]
  %v5170 = vld [vmem:[%s8 + $0x88] sm:$0xff]
  %v5171 = vld [vmem:[%s8 + $0x90] sm:$0xff]
  %v5172 = vld [vmem:[%s8 + $0x98] sm:$0xff]
  %v5173 = vld [vmem:[%s8 + $0xa0] sm:$0xff]
  %v5174 = vld [vmem:[%s8 + $0xa8] sm:$0xff]
  %v5175 = vld [vmem:[%s8 + $0xb0] sm:$0xff]
  %v5176 = vld [vmem:[%s8 + $0xb8] sm:$0xff]
  %v5177 = vld [vmem:[%s8 + $0xc0] sm:$0xff]
  %v5178 = vld [vmem:[%s8 + $0xc8] sm:$0xff]
  %v5179 = vld [vmem:[%s8 + $0xd0] sm:$0xff]
  %v5180 = vld [vmem:[%s8 + $0xd8] sm:$0xff]
  %v5181 = vld [vmem:[%s8 + $0xe0] sm:$0xff]
  %v5182 = vld [vmem:[%s8 + $0xe8] sm:$0xff]
  %v5183 = vld [vmem:[%s8 + $0xf0] sm:$0xff]
  %v5184 = vld [vmem:[%s8 + $0xf8] sm:$0xff]
  %v5185 = vld [vmem:[%s8 + $0x100] sm:$0xff]
  %v5186 = vld [vmem:[%s8 + $0x108] sm:$0xff]
  %v5187 = vld [vmem:[%s8 + $0x110] sm:$0xff]
  %v5188 = vld [vmem:[%s8 + $0x118] sm:$0xff]
  %v5189 = vld [vmem:[%s8 + $0x120] sm:$0xff]
  %v5190 = vld [vmem:[%s8 + $0x128] sm:$0xff]
  %v5191 = vld [vmem:[%s8 + $0x130] sm:$0xff]
  %v5192 = vld [vmem:[%s8 + $0x138] sm:$0xff]
  %v5193 = vld [vmem:[%s8 + $0x140] sm:$0xff]
  %v5194 = vld [vmem:[%s8 + $0x148] sm:$0xff]
  %v5195 = vld [vmem:[%s8 + $0x150] sm:$0xff]
  %v5196 = vld [vmem:[%s8 + $0x158] sm:$0xff]
  %v5197 = vld [vmem:[%s8 + $0x160] sm:$0xff]
  %v5198 = vld [vmem:[%s8 + $0x168] sm:$0xff]
  %v5199 = vld [vmem:[%s8 + $0x170] sm:$0xff]
  %v5200 = vld [vmem:[%s8 + $0x178] sm:$0xff]
  %v5201 = vld [vmem:[%s8 + $0x180] sm:$0xff]
  %v5202 = vld [vmem:[%s8 + $0x188] sm:$0xff]
  %v5203 = vld [vmem:[%s8 + $0x190] sm:$0xff]
  %v5204 = vld [vmem:[%s8 + $0x198] sm:$0xff]
  %v5205 = vld [vmem:[%s8 + $0x1a0] sm:$0xff]
  %v5206 = vld [vmem:[%s8 + $0x1a8] sm:$0xff]
  %v5207 = vld [vmem:[%s8 + $0x1b0] sm:$0xff]
  %v5208 = vld [vmem:[%s8 + $0x1b8] sm:$0xff]
  %v5209 = vld [vmem:[%s8 + $0x1c0] sm:$0xff]
  %v5210 = vld [vmem:[%s8 + $0x1c8] sm:$0xff]
  %v5211 = vld [vmem:[%s8 + $0x1d0] sm:$0xff]
  %v5212 = vld [vmem:[%s8 + $0x1d8] sm:$0xff]
  %v5213 = vld [vmem:[%s8 + $0x1e0] sm:$0xff]
  %v5214 = vld [vmem:[%s8 + $0x1e8] sm:$0xff]
  %v5215 = vld [vmem:[%s8 + $0x1f0] sm:$0xff]
  %v5216 = vld [vmem:[%s8 + $0x1f8] sm:$0xff]
  %v5217 = vld [vmem:[%s8 + $0x200] sm:$0xff]
  %v5218 = vld [vmem:[%s8 + $0x208] sm:$0xff]
  %v5219 = vld [vmem:[%s8 + $0x210] sm:$0xff]
  %v5220 = vld [vmem:[%s8 + $0x218] sm:$0xff]
  %v5221 = vld [vmem:[%s8 + $0x220] sm:$0xff]
  %v5222 = vld [vmem:[%s8 + $0x228] sm:$0xff]
  %v5223 = vld [vmem:[%s8 + $0x230] sm:$0xff]
  %v5224 = vld [vmem:[%s8 + $0x238] sm:$0xff]
  %v5225 = vld [vmem:[%s8 + $0x240] sm:$0xff]
  %v5226 = vld [vmem:[%s8 + $0x248] sm:$0xff]
  %v5227 = vld [vmem:[%s8 + $0x250] sm:$0xff]
  %v5228 = vld [vmem:[%s8 + $0x258] sm:$0xff]
  %v5229 = vld [vmem:[%s8 + $0x260] sm:$0xff]
  %v5230 = vld [vmem:[%s8 + $0x268] sm:$0xff]
  %v5231 = vld [vmem:[%s8 + $0x270] sm:$0xff]
  %v5232 = vld [vmem:[%s8 + $0x278] sm:$0xff]
  %v5233 = vld [vmem:[%s8 + $0x280] sm:$0xff]
  %v5234 = vld [vmem:[%s8 + $0x288] sm:$0xff]
  %v5235 = vld [vmem:[%s8 + $0x290] sm:$0xff]
  %v5236 = vld [vmem:[%s8 + $0x298] sm:$0xff]
  %v5237 = vld [vmem:[%s8 + $0x2a0] sm:$0xff]
  %v5238 = vld [vmem:[%s8 + $0x2a8] sm:$0xff]
  %v5239 = vld [vmem:[%s8 + $0x2b0] sm:$0xff]
  %v5240 = vld [vmem:[%s8 + $0x2b8] sm:$0xff]
  %v5241 = vld [vmem:[%s8 + $0x2c0] sm:$0xff]
  %v5242 = vld [vmem:[%s8 + $0x2c8] sm:$0xff]
  %v5243 = vld [vmem:[%s8 + $0x2d0] sm:$0xff]
  %v5244 = vld [vmem:[%s8 + $0x2d8] sm:$0xff]
  %v5245 = vld [vmem:[%s8 + $0x2e0] sm:$0xff]
  %v5246 = vld [vmem:[%s8 + $0x2e8] sm:$0xff]
  %v5247 = vld [vmem:[%s8 + $0x2f0] sm:$0xff]
  %v5248 = vld [vmem:[%s8 + $0x2f8] sm:$0xff]
  %v5249 = vld [vmem:[%s8 + $0x300] sm:$0xff]
  %v5250 = vld [vmem:[%s8 + $0x308] sm:$0xff]
  %v5251 = vld [vmem:[%s8 + $0x310] sm:$0xff]
  %v5252 = vld [vmem:[%s8 + $0x318] sm:$0xff]
  %v5253 = vld [vmem:[%s8 + $0x320] sm:$0xff]
  %v5254 = vld [vmem:[%s8 + $0x328] sm:$0xff]
  %v5255 = vld [vmem:[%s8 + $0x330] sm:$0xff]
  %v5256 = vld [vmem:[%s8 + $0x338] sm:$0xff]
  %v5257 = vld [vmem:[%s8 + $0x340] sm:$0xff]
  %v5258 = vld [vmem:[%s8 + $0x348] sm:$0xff]
  %v5259 = vld [vmem:[%s8 + $0x350] sm:$0xff]
  %v5260 = vld [vmem:[%s8 + $0x358] sm:$0xff]
  %v5261 = vld [vmem:[%s8 + $0x360] sm:$0xff]
  %v5262 = vld [vmem:[%s8 + $0x368] sm:$0xff]
  %v5263 = vld [vmem:[%s8 + $0x370] sm:$0xff]
  %v5264 = vld [vmem:[%s8 + $0x378] sm:$0xff]
  %v5265 = vld [vmem:[%s8 + $0x380] sm:$0xff]
  %v5266 = vld [vmem:[%s8 + $0x388] sm:$0xff]
  %v5267 = vld [vmem:[%s8 + $0x390] sm:$0xff]
  %v5268 = vld [vmem:[%s8 + $0x398] sm:$0xff]
  %v5269 = vld [vmem:[%s8 + $0x3a0] sm:$0xff]
  %v5270 = vld [vmem:[%s8 + $0x3a8] sm:$0xff]
  %v5271 = vld [vmem:[%s8 + $0x3b0] sm:$0xff]
  %v5272 = vld [vmem:[%s8 + $0x3b8] sm:$0xff]
  %v5273 = vld [vmem:[%s8 + $0x3c0] sm:$0xff]
  %v5274 = vld [vmem:[%s8 + $0x3c8] sm:$0xff]
  %v5275 = vld [vmem:[%s8 + $0x3d0] sm:$0xff]
  %v5276 = vld [vmem:[%s8 + $0x3d8] sm:$0xff]
  %v5277 = vld [vmem:[%s8 + $0x3e0] sm:$0xff]
  %v5278 = vld [vmem:[%s8 + $0x3e8] sm:$0xff]
  %v5279 = vld [vmem:[%s8 + $0x3f0] sm:$0xff]
  %v5280 = vld [vmem:[%s8 + $0x3f8] sm:$0xff]
  %v5281 = vld [vmem:[%s8 + $0x400] sm:$0xff]
  %v5282 = vld [vmem:[%s8 + $0x408] sm:$0xff]
  %v5283 = vld [vmem:[%s8 + $0x410] sm:$0xff]
  %v5284 = vld [vmem:[%s8 + $0x418] sm:$0xff]
  %v5285 = vld [vmem:[%s8 + $0x420] sm:$0xff]
  %v5286 = vld [vmem:[%s8 + $0x428] sm:$0xff]
  %v5287 = vld [vmem:[%s8 + $0x430] sm:$0xff]
  %v5288 = vld [vmem:[%s8 + $0x438] sm:$0xff]
  %v5289 = vld [vmem:[%s8 + $0x440] sm:$0xff]
  %v5290 = vld [vmem:[%s8 + $0x448] sm:$0xff]
  %v5291 = vld [vmem:[%s8 + $0x450] sm:$0xff]
  %v5292 = vld [vmem:[%s8 + $0x458] sm:$0xff]
  %v5293 = vld [vmem:[%s8 + $0x460] sm:$0xff]
  %v5294 = vld [vmem:[%s8 + $0x468] sm:$0xff]
  %v5295 = vld [vmem:[%s8 + $0x470] sm:$0xff]
  %v5296 = vld [vmem:[%s8 + $0x478] sm:$0xff]
  %v5297 = vld [vmem:[%s9] sm:$0x3]
  %v5299 = vlaneseq
  %v5300 = vshrl.u32 %v5299, 7
  %v5301 = vsub.s32 0, %v5300
  %v5302 = vrot.slane %v5297, %v5301
  %v5303 = vlaneseq
  %v5304 = vshrl.u32 %v5303, 7
  %v5305 = vsub.s32 1, %v5304
  %v5306 = vrot.slane %v5297, %v5305
  %v5453 = vunpack.c.l.b16 %v5153
  %v5454 = vunpack.c.h.b16 %v5153
  %v5455 = vunpack.c.l.b16 %v5154
  %v5456 = vunpack.c.h.b16 %v5154
  %v5457 = vunpack.c.l.b16 %v5155
  %v5458 = vunpack.c.h.b16 %v5155
  %v5459 = vunpack.c.l.b16 %v5156
  %v5460 = vunpack.c.h.b16 %v5156
  %v5461 = vunpack.c.l.b16 %v5157
  %v5462 = vunpack.c.h.b16 %v5157
  %v5463 = vunpack.c.l.b16 %v5158
  %v5464 = vunpack.c.h.b16 %v5158
  %v5465 = vunpack.c.l.b16 %v5159
  %v5466 = vunpack.c.h.b16 %v5159
  %v5467 = vunpack.c.l.b16 %v5160
  %v5468 = vunpack.c.h.b16 %v5160
  %v5469 = vunpack.c.l.b16 %v5161
  %v5470 = vunpack.c.h.b16 %v5161
  %v5471 = vunpack.c.l.b16 %v5162
  %v5472 = vunpack.c.h.b16 %v5162
  %v5473 = vunpack.c.l.b16 %v5163
  %v5474 = vunpack.c.h.b16 %v5163
  %v5475 = vunpack.c.l.b16 %v5164
  %v5476 = vunpack.c.h.b16 %v5164
  %v5477 = vunpack.c.l.b16 %v5165
  %v5478 = vunpack.c.h.b16 %v5165
  %v5479 = vunpack.c.l.b16 %v5166
  %v5480 = vunpack.c.h.b16 %v5166
  %v5481 = vunpack.c.l.b16 %v5167
  %v5482 = vunpack.c.h.b16 %v5167
  %v5483 = vunpack.c.l.b16 %v5168
  %v5484 = vunpack.c.h.b16 %v5168
  %v5485 = vunpack.c.l.b16 %v5169
  %v5486 = vunpack.c.h.b16 %v5169
  %v5487 = vunpack.c.l.b16 %v5170
  %v5488 = vunpack.c.h.b16 %v5170
  %v5489 = vunpack.c.l.b16 %v5171
  %v5490 = vunpack.c.h.b16 %v5171
  %v5491 = vunpack.c.l.b16 %v5172
  %v5492 = vunpack.c.h.b16 %v5172
  %v5493 = vunpack.c.l.b16 %v5173
  %v5494 = vunpack.c.h.b16 %v5173
  %v5495 = vunpack.c.l.b16 %v5174
  %v5496 = vunpack.c.h.b16 %v5174
  %v5497 = vunpack.c.l.b16 %v5175
  %v5498 = vunpack.c.h.b16 %v5175
  %v5499 = vunpack.c.l.b16 %v5176
  %v5500 = vunpack.c.h.b16 %v5176
  %v5501 = vunpack.c.l.b16 %v5177
  %v5502 = vunpack.c.h.b16 %v5177
  %v5503 = vunpack.c.l.b16 %v5178
  %v5504 = vunpack.c.h.b16 %v5178
  %v5505 = vunpack.c.l.b16 %v5179
  %v5506 = vunpack.c.h.b16 %v5179
  %v5507 = vunpack.c.l.b16 %v5180
  %v5508 = vunpack.c.h.b16 %v5180
  %v5509 = vunpack.c.l.b16 %v5181
  %v5510 = vunpack.c.h.b16 %v5181
  %v5511 = vunpack.c.l.b16 %v5182
  %v5512 = vunpack.c.h.b16 %v5182
  %v5513 = vunpack.c.l.b16 %v5183
  %v5514 = vunpack.c.h.b16 %v5183
  %v5515 = vunpack.c.l.b16 %v5184
  %v5516 = vunpack.c.h.b16 %v5184
  %v5517 = vunpack.c.l.b16 %v5185
  %v5518 = vunpack.c.h.b16 %v5185
  %v5519 = vunpack.c.l.b16 %v5186
  %v5520 = vunpack.c.h.b16 %v5186
  %v5521 = vunpack.c.l.b16 %v5187
  %v5522 = vunpack.c.h.b16 %v5187
  %v5523 = vunpack.c.l.b16 %v5188
  %v5524 = vunpack.c.h.b16 %v5188
  %v5525 = vunpack.c.l.b16 %v5189
  %v5526 = vunpack.c.h.b16 %v5189
  %v5527 = vunpack.c.l.b16 %v5190
  %v5528 = vunpack.c.h.b16 %v5190
  %v5529 = vunpack.c.l.b16 %v5191
  %v5530 = vunpack.c.h.b16 %v5191
  %v5531 = vunpack.c.l.b16 %v5192
  %v5532 = vunpack.c.h.b16 %v5192
  %v5533 = vunpack.c.l.b16 %v5193
  %v5534 = vunpack.c.h.b16 %v5193
  %v5535 = vunpack.c.l.b16 %v5194
  %v5536 = vunpack.c.h.b16 %v5194
  %v5537 = vunpack.c.l.b16 %v5195
  %v5538 = vunpack.c.h.b16 %v5195
  %v5539 = vunpack.c.l.b16 %v5196
  %v5540 = vunpack.c.h.b16 %v5196
  %v5541 = vunpack.c.l.b16 %v5197
  %v5542 = vunpack.c.h.b16 %v5197
  %v5543 = vunpack.c.l.b16 %v5198
  %v5544 = vunpack.c.h.b16 %v5198
  %v5545 = vunpack.c.l.b16 %v5199
  %v5546 = vunpack.c.h.b16 %v5199
  %v5547 = vunpack.c.l.b16 %v5200
  %v5548 = vunpack.c.h.b16 %v5200
  %v5549 = vunpack.c.l.b16 %v5201
  %v5550 = vunpack.c.h.b16 %v5201
  %v5551 = vunpack.c.l.b16 %v5202
  %v5552 = vunpack.c.h.b16 %v5202
  %v5553 = vunpack.c.l.b16 %v5203
  %v5554 = vunpack.c.h.b16 %v5203
  %v5555 = vunpack.c.l.b16 %v5204
  %v5556 = vunpack.c.h.b16 %v5204
  %v5557 = vunpack.c.l.b16 %v5205
  %v5558 = vunpack.c.h.b16 %v5205
  %v5559 = vunpack.c.l.b16 %v5206
  %v5560 = vunpack.c.h.b16 %v5206
  %v5561 = vunpack.c.l.b16 %v5207
  %v5562 = vunpack.c.h.b16 %v5207
  %v5563 = vunpack.c.l.b16 %v5208
  %v5564 = vunpack.c.h.b16 %v5208
  %v5565 = vunpack.c.l.b16 %v5209
  %v5566 = vunpack.c.h.b16 %v5209
  %v5567 = vunpack.c.l.b16 %v5210
  %v5568 = vunpack.c.h.b16 %v5210
  %v5569 = vunpack.c.l.b16 %v5211
  %v5570 = vunpack.c.h.b16 %v5211
  %v5571 = vunpack.c.l.b16 %v5212
  %v5572 = vunpack.c.h.b16 %v5212
  %v5573 = vunpack.c.l.b16 %v5213
  %v5574 = vunpack.c.h.b16 %v5213
  %v5575 = vunpack.c.l.b16 %v5214
  %v5576 = vunpack.c.h.b16 %v5214
  %v5577 = vunpack.c.l.b16 %v5215
  %v5578 = vunpack.c.h.b16 %v5215
  %v5579 = vunpack.c.l.b16 %v5216
  %v5580 = vunpack.c.h.b16 %v5216
  %v5581 = vunpack.c.l.b16 %v5217
  %v5582 = vunpack.c.h.b16 %v5217
  %v5583 = vunpack.c.l.b16 %v5218
  %v5584 = vunpack.c.h.b16 %v5218
  %v5585 = vunpack.c.l.b16 %v5219
  %v5586 = vunpack.c.h.b16 %v5219
  %v5587 = vunpack.c.l.b16 %v5220
  %v5588 = vunpack.c.h.b16 %v5220
  %v5589 = vunpack.c.l.b16 %v5221
  %v5590 = vunpack.c.h.b16 %v5221
  %v5591 = vunpack.c.l.b16 %v5222
  %v5592 = vunpack.c.h.b16 %v5222
  %v5593 = vunpack.c.l.b16 %v5223
  %v5594 = vunpack.c.h.b16 %v5223
  %v5595 = vunpack.c.l.b16 %v5224
  %v5596 = vunpack.c.h.b16 %v5224
  %v5597 = vunpack.c.l.b16 %v5225
  %v5598 = vunpack.c.h.b16 %v5225
  %v5599 = vunpack.c.l.b16 %v5226
  %v5600 = vunpack.c.h.b16 %v5226
  %v5601 = vunpack.c.l.b16 %v5227
  %v5602 = vunpack.c.h.b16 %v5227
  %v5603 = vunpack.c.l.b16 %v5228
  %v5604 = vunpack.c.h.b16 %v5228
  %v5605 = vunpack.c.l.b16 %v5229
  %v5606 = vunpack.c.h.b16 %v5229
  %v5607 = vunpack.c.l.b16 %v5230
  %v5608 = vunpack.c.h.b16 %v5230
  %v5609 = vunpack.c.l.b16 %v5231
  %v5610 = vunpack.c.h.b16 %v5231
  %v5611 = vunpack.c.l.b16 %v5232
  %v5612 = vunpack.c.h.b16 %v5232
  %v5613 = vunpack.c.l.b16 %v5233
  %v5614 = vunpack.c.h.b16 %v5233
  %v5615 = vunpack.c.l.b16 %v5234
  %v5616 = vunpack.c.h.b16 %v5234
  %v5617 = vunpack.c.l.b16 %v5235
  %v5618 = vunpack.c.h.b16 %v5235
  %v5619 = vunpack.c.l.b16 %v5236
  %v5620 = vunpack.c.h.b16 %v5236
  %v5621 = vunpack.c.l.b16 %v5237
  %v5622 = vunpack.c.h.b16 %v5237
  %v5623 = vunpack.c.l.b16 %v5238
  %v5624 = vunpack.c.h.b16 %v5238
  %v5625 = vunpack.c.l.b16 %v5239
  %v5626 = vunpack.c.h.b16 %v5239
  %v5627 = vunpack.c.l.b16 %v5240
  %v5628 = vunpack.c.h.b16 %v5240
  %v5629 = vunpack.c.l.b16 %v5241
  %v5630 = vunpack.c.h.b16 %v5241
  %v5631 = vunpack.c.l.b16 %v5242
  %v5632 = vunpack.c.h.b16 %v5242
  %v5633 = vunpack.c.l.b16 %v5243
  %v5634 = vunpack.c.h.b16 %v5243
  %v5635 = vunpack.c.l.b16 %v5244
  %v5636 = vunpack.c.h.b16 %v5244
  %v5637 = vunpack.c.l.b16 %v5245
  %v5638 = vunpack.c.h.b16 %v5245
  %v5639 = vunpack.c.l.b16 %v5246
  %v5640 = vunpack.c.h.b16 %v5246
  %v5641 = vunpack.c.l.b16 %v5247
  %v5642 = vunpack.c.h.b16 %v5247
  %v5643 = vunpack.c.l.b16 %v5248
  %v5644 = vunpack.c.h.b16 %v5248
  %v5645 = vunpack.c.l.b16 %v5249
  %v5646 = vunpack.c.h.b16 %v5249
  %v5647 = vunpack.c.l.b16 %v5250
  %v5648 = vunpack.c.h.b16 %v5250
  %v5649 = vunpack.c.l.b16 %v5251
  %v5650 = vunpack.c.h.b16 %v5251
  %v5651 = vunpack.c.l.b16 %v5252
  %v5652 = vunpack.c.h.b16 %v5252
  %v5653 = vunpack.c.l.b16 %v5253
  %v5654 = vunpack.c.h.b16 %v5253
  %v5655 = vunpack.c.l.b16 %v5254
  %v5656 = vunpack.c.h.b16 %v5254
  %v5657 = vunpack.c.l.b16 %v5255
  %v5658 = vunpack.c.h.b16 %v5255
  %v5659 = vunpack.c.l.b16 %v5256
  %v5660 = vunpack.c.h.b16 %v5256
  %v5661 = vunpack.c.l.b16 %v5257
  %v5662 = vunpack.c.h.b16 %v5257
  %v5663 = vunpack.c.l.b16 %v5258
  %v5664 = vunpack.c.h.b16 %v5258
  %v5665 = vunpack.c.l.b16 %v5259
  %v5666 = vunpack.c.h.b16 %v5259
  %v5667 = vunpack.c.l.b16 %v5260
  %v5668 = vunpack.c.h.b16 %v5260
  %v5669 = vunpack.c.l.b16 %v5261
  %v5670 = vunpack.c.h.b16 %v5261
  %v5671 = vunpack.c.l.b16 %v5262
  %v5672 = vunpack.c.h.b16 %v5262
  %v5673 = vunpack.c.l.b16 %v5263
  %v5674 = vunpack.c.h.b16 %v5263
  %v5675 = vunpack.c.l.b16 %v5264
  %v5676 = vunpack.c.h.b16 %v5264
  %v5677 = vunpack.c.l.b16 %v5265
  %v5678 = vunpack.c.h.b16 %v5265
  %v5679 = vunpack.c.l.b16 %v5266
  %v5680 = vunpack.c.h.b16 %v5266
  %v5681 = vunpack.c.l.b16 %v5267
  %v5682 = vunpack.c.h.b16 %v5267
  %v5683 = vunpack.c.l.b16 %v5268
  %v5684 = vunpack.c.h.b16 %v5268
  %v5685 = vunpack.c.l.b16 %v5269
  %v5686 = vunpack.c.h.b16 %v5269
  %v5687 = vunpack.c.l.b16 %v5270
  %v5688 = vunpack.c.h.b16 %v5270
  %v5689 = vunpack.c.l.b16 %v5271
  %v5690 = vunpack.c.h.b16 %v5271
  %v5691 = vunpack.c.l.b16 %v5272
  %v5692 = vunpack.c.h.b16 %v5272
  %v5693 = vunpack.c.l.b16 %v5273
  %v5694 = vunpack.c.h.b16 %v5273
  %v5695 = vunpack.c.l.b16 %v5274
  %v5696 = vunpack.c.h.b16 %v5274
  %v5697 = vunpack.c.l.b16 %v5275
  %v5698 = vunpack.c.h.b16 %v5275
  %v5699 = vunpack.c.l.b16 %v5276
  %v5700 = vunpack.c.h.b16 %v5276
  %v5701 = vunpack.c.l.b16 %v5277
  %v5702 = vunpack.c.h.b16 %v5277
  %v5703 = vunpack.c.l.b16 %v5278
  %v5704 = vunpack.c.h.b16 %v5278
  %v5705 = vunpack.c.l.b16 %v5279
  %v5706 = vunpack.c.h.b16 %v5279
  %v5707 = vunpack.c.l.b16 %v5280
  %v5708 = vunpack.c.h.b16 %v5280
  %v5709 = vunpack.c.l.b16 %v5281
  %v5710 = vunpack.c.h.b16 %v5281
  %v5711 = vunpack.c.l.b16 %v5282
  %v5712 = vunpack.c.h.b16 %v5282
  %v5713 = vunpack.c.l.b16 %v5283
  %v5714 = vunpack.c.h.b16 %v5283
  %v5715 = vunpack.c.l.b16 %v5284
  %v5716 = vunpack.c.h.b16 %v5284
  %v5717 = vunpack.c.l.b16 %v5285
  %v5718 = vunpack.c.h.b16 %v5285
  %v5719 = vunpack.c.l.b16 %v5286
  %v5720 = vunpack.c.h.b16 %v5286
  %v5721 = vunpack.c.l.b16 %v5287
  %v5722 = vunpack.c.h.b16 %v5287
  %v5723 = vunpack.c.l.b16 %v5288
  %v5724 = vunpack.c.h.b16 %v5288
  %v5725 = vunpack.c.l.b16 %v5289
  %v5726 = vunpack.c.h.b16 %v5289
  %v5727 = vunpack.c.l.b16 %v5290
  %v5728 = vunpack.c.h.b16 %v5290
  %v5729 = vunpack.c.l.b16 %v5291
  %v5730 = vunpack.c.h.b16 %v5291
  %v5731 = vunpack.c.l.b16 %v5292
  %v5732 = vunpack.c.h.b16 %v5292
  %v5733 = vunpack.c.l.b16 %v5293
  %v5734 = vunpack.c.h.b16 %v5293
  %v5735 = vunpack.c.l.b16 %v5294
  %v5736 = vunpack.c.h.b16 %v5294
  %v5737 = vunpack.c.l.b16 %v5295
  %v5738 = vunpack.c.h.b16 %v5295
  %v5739 = vunpack.c.l.b16 %v5296
  %v5740 = vunpack.c.h.b16 %v5296
  %v5741 = vpack.c.b16 %v5455, %v5453
  %v5742 = vpack.c.b16 %v5456, %v5454
  %v5743 = vpack.c.b16 %v5459, %v5457
  %v5744 = vpack.c.b16 %v5460, %v5458
  %v5745 = vpack.c.b16 %v5463, %v5461
  %v5746 = vpack.c.b16 %v5464, %v5462
  %v5747 = vpack.c.b16 %v5467, %v5465
  %v5748 = vpack.c.b16 %v5468, %v5466
  %v5749 = vpack.c.b16 %v5471, %v5469
  %v5750 = vpack.c.b16 %v5472, %v5470
  %v5751 = vpack.c.b16 %v5475, %v5473
  %v5752 = vpack.c.b16 %v5476, %v5474
  %v5753 = vpack.c.b16 %v5479, %v5477
  %v5754 = vpack.c.b16 %v5480, %v5478
  %v5755 = vpack.c.b16 %v5483, %v5481
  %v5756 = vpack.c.b16 %v5484, %v5482
  %v5757 = vpack.c.b16 %v5487, %v5485
  %v5758 = vpack.c.b16 %v5488, %v5486
  %v5759 = vpack.c.b16 %v5491, %v5489
  %v5760 = vpack.c.b16 %v5492, %v5490
  %v5761 = vpack.c.b16 %v5495, %v5493
  %v5762 = vpack.c.b16 %v5496, %v5494
  %v5763 = vpack.c.b16 %v5499, %v5497
  %v5764 = vpack.c.b16 %v5500, %v5498
  %v5765 = vpack.c.b16 %v5503, %v5501
  %v5766 = vpack.c.b16 %v5504, %v5502
  %v5767 = vpack.c.b16 %v5507, %v5505
  %v5768 = vpack.c.b16 %v5508, %v5506
  %v5769 = vpack.c.b16 %v5511, %v5509
  %v5770 = vpack.c.b16 %v5512, %v5510
  %v5771 = vpack.c.b16 %v5515, %v5513
  %v5772 = vpack.c.b16 %v5516, %v5514
  %v5773 = vpack.c.b16 %v5519, %v5517
  %v5774 = vpack.c.b16 %v5520, %v5518
  %v5775 = vpack.c.b16 %v5523, %v5521
  %v5776 = vpack.c.b16 %v5524, %v5522
  %v5777 = vpack.c.b16 %v5527, %v5525
  %v5778 = vpack.c.b16 %v5528, %v5526
  %v5779 = vpack.c.b16 %v5531, %v5529
  %v5780 = vpack.c.b16 %v5532, %v5530
  %v5781 = vpack.c.b16 %v5535, %v5533
  %v5782 = vpack.c.b16 %v5536, %v5534
  %v5783 = vpack.c.b16 %v5539, %v5537
  %v5784 = vpack.c.b16 %v5540, %v5538
  %v5785 = vpack.c.b16 %v5543, %v5541
  %v5786 = vpack.c.b16 %v5544, %v5542
  %v5787 = vpack.c.b16 %v5547, %v5545
  %v5788 = vpack.c.b16 %v5548, %v5546
  %v5789 = vpack.c.b16 %v5551, %v5549
  %v5790 = vpack.c.b16 %v5552, %v5550
  %v5791 = vpack.c.b16 %v5555, %v5553
  %v5792 = vpack.c.b16 %v5556, %v5554
  %v5793 = vpack.c.b16 %v5559, %v5557
  %v5794 = vpack.c.b16 %v5560, %v5558
  %v5795 = vpack.c.b16 %v5563, %v5561
  %v5796 = vpack.c.b16 %v5564, %v5562
  %v5797 = vpack.c.b16 %v5567, %v5565
  %v5798 = vpack.c.b16 %v5568, %v5566
  %v5799 = vpack.c.b16 %v5571, %v5569
  %v5800 = vpack.c.b16 %v5572, %v5570
  %v5801 = vpack.c.b16 %v5575, %v5573
  %v5802 = vpack.c.b16 %v5576, %v5574
  %v5803 = vpack.c.b16 %v5579, %v5577
  %v5804 = vpack.c.b16 %v5580, %v5578
  %v5805 = vpack.c.b16 %v5583, %v5581
  %v5806 = vpack.c.b16 %v5584, %v5582
  %v5807 = vpack.c.b16 %v5587, %v5585
  %v5808 = vpack.c.b16 %v5588, %v5586
  %v5809 = vpack.c.b16 %v5591, %v5589
  %v5810 = vpack.c.b16 %v5592, %v5590
  %v5811 = vpack.c.b16 %v5595, %v5593
  %v5812 = vpack.c.b16 %v5596, %v5594
  %v5813 = vpack.c.b16 %v5599, %v5597
  %v5814 = vpack.c.b16 %v5600, %v5598
  %v5815 = vpack.c.b16 %v5603, %v5601
  %v5816 = vpack.c.b16 %v5604, %v5602
  %v5817 = vpack.c.b16 %v5607, %v5605
  %v5818 = vpack.c.b16 %v5608, %v5606
  %v5819 = vpack.c.b16 %v5611, %v5609
  %v5820 = vpack.c.b16 %v5612, %v5610
  %v5821 = vpack.c.b16 %v5615, %v5613
  %v5822 = vpack.c.b16 %v5616, %v5614
  %v5823 = vpack.c.b16 %v5619, %v5617
  %v5824 = vpack.c.b16 %v5620, %v5618
  %v5825 = vpack.c.b16 %v5623, %v5621
  %v5826 = vpack.c.b16 %v5624, %v5622
  %v5827 = vpack.c.b16 %v5627, %v5625
  %v5828 = vpack.c.b16 %v5628, %v5626
  %v5829 = vpack.c.b16 %v5631, %v5629
  %v5830 = vpack.c.b16 %v5632, %v5630
  %v5831 = vpack.c.b16 %v5635, %v5633
  %v5832 = vpack.c.b16 %v5636, %v5634
  %v5833 = vpack.c.b16 %v5639, %v5637
  %v5834 = vpack.c.b16 %v5640, %v5638
  %v5835 = vpack.c.b16 %v5643, %v5641
  %v5836 = vpack.c.b16 %v5644, %v5642
  %v5837 = vpack.c.b16 %v5647, %v5645
  %v5838 = vpack.c.b16 %v5648, %v5646
  %v5839 = vpack.c.b16 %v5651, %v5649
  %v5840 = vpack.c.b16 %v5652, %v5650
  %v5841 = vpack.c.b16 %v5655, %v5653
  %v5842 = vpack.c.b16 %v5656, %v5654
  %v5843 = vpack.c.b16 %v5659, %v5657
  %v5844 = vpack.c.b16 %v5660, %v5658
  %v5845 = vpack.c.b16 %v5663, %v5661
  %v5846 = vpack.c.b16 %v5664, %v5662
  %v5847 = vpack.c.b16 %v5667, %v5665
  %v5848 = vpack.c.b16 %v5668, %v5666
  %v5849 = vpack.c.b16 %v5671, %v5669
  %v5850 = vpack.c.b16 %v5672, %v5670
  %v5851 = vpack.c.b16 %v5675, %v5673
  %v5852 = vpack.c.b16 %v5676, %v5674
  %v5853 = vpack.c.b16 %v5679, %v5677
  %v5854 = vpack.c.b16 %v5680, %v5678
  %v5855 = vpack.c.b16 %v5683, %v5681
  %v5856 = vpack.c.b16 %v5684, %v5682
  %v5857 = vpack.c.b16 %v5687, %v5685
  %v5858 = vpack.c.b16 %v5688, %v5686
  %v5859 = vpack.c.b16 %v5691, %v5689
  %v5860 = vpack.c.b16 %v5692, %v5690
  %v5861 = vpack.c.b16 %v5695, %v5693
  %v5862 = vpack.c.b16 %v5696, %v5694
  %v5863 = vpack.c.b16 %v5699, %v5697
  %v5864 = vpack.c.b16 %v5700, %v5698
  %v5865 = vpack.c.b16 %v5703, %v5701
  %v5866 = vpack.c.b16 %v5704, %v5702
  %v5867 = vpack.c.b16 %v5707, %v5705
  %v5868 = vpack.c.b16 %v5708, %v5706
  %v5869 = vpack.c.b16 %v5711, %v5709
  %v5870 = vpack.c.b16 %v5712, %v5710
  %v5871 = vpack.c.b16 %v5715, %v5713
  %v5872 = vpack.c.b16 %v5716, %v5714
  %v5873 = vpack.c.b16 %v5719, %v5717
  %v5874 = vpack.c.b16 %v5720, %v5718
  %v5875 = vpack.c.b16 %v5723, %v5721
  %v5876 = vpack.c.b16 %v5724, %v5722
  %v5877 = vpack.c.b16 %v5727, %v5725
  %v5878 = vpack.c.b16 %v5728, %v5726
  %v5879 = vpack.c.b16 %v5731, %v5729
  %v5880 = vpack.c.b16 %v5732, %v5730
  %v5881 = vpack.c.b16 %v5735, %v5733
  %v5882 = vpack.c.b16 %v5736, %v5734
  %v5883 = vpack.c.b16 %v5739, %v5737
  %v5884 = vpack.c.b16 %v5740, %v5738
  %6029 = vmatprep.subr.bf16.mxu0 %v5742
  %6030 = vmatpush1.bf16.msra.mxu0 %v5741
  %6031 = vmatprep.subr.bf16.mxu0 %v5744
  %6032 = vmatpush1.bf16.msra.mxu0 %v5743
  %6033 = vmatprep.subr.bf16.mxu0 %v5746
  %6034 = vmatpush1.bf16.msra.mxu0 %v5745
  %6035 = vmatprep.subr.bf16.mxu0 %v5748
  %6036 = vmatpush1.bf16.msra.mxu0 %v5747
  %6037 = vmatprep.subr.bf16.mxu0 %v5750
  %6038 = vmatpush1.bf16.msra.mxu0 %v5749
  %6039 = vmatprep.subr.bf16.mxu0 %v5752
  %6040 = vmatpush1.bf16.msra.mxu0 %v5751
  %6041 = vmatprep.subr.bf16.mxu0 %v5754
  %6042 = vmatpush1.bf16.msra.mxu0 %v5753
  %6043 = vmatprep.subr.bf16.mxu0 %v5756
  %6044 = vmatpush1.bf16.msra.mxu0 %v5755
  %6045 = vmatprep.subr.bf16.mxu0 %v5758
  %6046 = vmatpush1.bf16.msra.mxu0 %v5757
  %6047 = vmatprep.subr.bf16.mxu0 %v5760
  %6048 = vmatpush1.bf16.msra.mxu0 %v5759
  %6049 = vmatprep.subr.bf16.mxu0 %v5762
  %6050 = vmatpush1.bf16.msra.mxu0 %v5761
  %6051 = vmatprep.subr.bf16.mxu0 %v5764
  %6052 = vmatpush1.bf16.msra.mxu0 %v5763
  %6053 = vmatprep.subr.bf16.mxu0 %v5766
  %6054 = vmatpush1.bf16.msra.mxu0 %v5765
  %6055 = vmatprep.subr.bf16.mxu0 %v5768
  %6056 = vmatpush1.bf16.msra.mxu0 %v5767
  %6057 = vmatprep.subr.bf16.mxu0 %v5770
  %6058 = vmatpush1.bf16.msra.mxu0 %v5769
  %6059 = vmatprep.subr.bf16.mxu0 %v5772
  %6060 = vmatpush1.bf16.msra.mxu0 %v5771
  %6061 = vmatprep.mubr.bf16.mxu0 %v5145
  %6062 = vmatmul.mubr.bf16.gmra.mrb[0].mxu0 %v5144
  %v6063 = vpop.f32.mrb[0].mxu0
  %v6064 = vadd.f32 %v5302, %v6063
  %v6065 = vpop.f32.mrb[0].mxu0
  %v6066 = vadd.f32 %v5306, %v6065
  %v6067 = vpop.f32.mrb[0].mxu0
  %v6068 = vpop.f32.mrb[0].mxu0
  %6069 = vdwg.mxu0
  %6070 = vmatprep.subr.bf16.mxu0 %v5774
  %6071 = vmatpush1.bf16.msra.mxu0 %v5773
  %6072 = vmatprep.subr.bf16.mxu0 %v5776
  %6073 = vmatpush1.bf16.msra.mxu0 %v5775
  %6074 = vmatprep.subr.bf16.mxu0 %v5778
  %6075 = vmatpush1.bf16.msra.mxu0 %v5777
  %6076 = vmatprep.subr.bf16.mxu0 %v5780
  %6077 = vmatpush1.bf16.msra.mxu0 %v5779
  %6078 = vmatprep.subr.bf16.mxu0 %v5782
  %6079 = vmatpush1.bf16.msra.mxu0 %v5781
  %6080 = vmatprep.subr.bf16.mxu0 %v5784
  %6081 = vmatpush1.bf16.msra.mxu0 %v5783
  %6082 = vmatprep.subr.bf16.mxu0 %v5786
  %6083 = vmatpush1.bf16.msra.mxu0 %v5785
  %6084 = vmatprep.subr.bf16.mxu0 %v5788
  %6085 = vmatpush1.bf16.msra.mxu0 %v5787
  %6086 = vmatprep.subr.bf16.mxu0 %v5790
  %6087 = vmatpush1.bf16.msra.mxu0 %v5789
  %6088 = vmatprep.subr.bf16.mxu0 %v5792
  %6089 = vmatpush1.bf16.msra.mxu0 %v5791
  %6090 = vmatprep.subr.bf16.mxu0 %v5794
  %6091 = vmatpush1.bf16.msra.mxu0 %v5793
  %6092 = vmatprep.subr.bf16.mxu0 %v5796
  %6093 = vmatpush1.bf16.msra.mxu0 %v5795
  %6094 = vmatprep.subr.bf16.mxu0 %v5798
  %6095 = vmatpush1.bf16.msra.mxu0 %v5797
  %6096 = vmatprep.subr.bf16.mxu0 %v5800
  %6097 = vmatpush1.bf16.msra.mxu0 %v5799
  %6098 = vmatprep.subr.bf16.mxu0 %v5802
  %6099 = vmatpush1.bf16.msra.mxu0 %v5801
  %6100 = vmatprep.subr.bf16.mxu0 %v5804
  %6101 = vmatpush1.bf16.msra.mxu0 %v5803
  %6102 = vmatprep.mubr.bf16.mxu0 %v5147
  %6103 = vmatmul.mubr.bf16.gmra.mrb[0].mxu0 %v5146
  %v6104 = vpop.f32.mrb[0].mxu0
  %v6105 = vadd.f32 %v6064, %v6104
  %v6106 = vpop.f32.mrb[0].mxu0
  %v6107 = vadd.f32 %v6066, %v6106
  %v6108 = vpop.f32.mrb[0].mxu0
  %v6109 = vpop.f32.mrb[0].mxu0
  %6110 = vdwg.mxu0
  %6111 = vmatprep.subr.bf16.mxu0 %v5806
  %6112 = vmatpush1.bf16.msra.mxu0 %v5805
  %6113 = vmatprep.subr.bf16.mxu0 %v5808
  %6114 = vmatpush1.bf16.msra.mxu0 %v5807
  %6115 = vmatprep.subr.bf16.mxu0 %v5810
  %6116 = vmatpush1.bf16.msra.mxu0 %v5809
  %6117 = vmatprep.subr.bf16.mxu0 %v5812
  %6118 = vmatpush1.bf16.msra.mxu0 %v5811
  %6119 = vmatprep.subr.bf16.mxu0 %v5814
  %6120 = vmatpush1.bf16.msra.mxu0 %v5813
  %6121 = vmatprep.subr.bf16.mxu0 %v5816
  %6122 = vmatpush1.bf16.msra.mxu0 %v5815
  %6123 = vmatprep.subr.bf16.mxu0 %v5818
  %6124 = vmatpush1.bf16.msra.mxu0 %v5817
  %6125 = vmatprep.subr.bf16.mxu0 %v5820
  %6126 = vmatpush1.bf16.msra.mxu0 %v5819
  %6127 = vmatprep.subr.bf16.mxu0 %v5822
  %6128 = vmatpush1.bf16.msra.mxu0 %v5821
  %6129 = vmatprep.subr.bf16.mxu0 %v5824
  %6130 = vmatpush1.bf16.msra.mxu0 %v5823
  %6131 = vmatprep.subr.bf16.mxu0 %v5826
  %6132 = vmatpush1.bf16.msra.mxu0 %v5825
  %6133 = vmatprep.subr.bf16.mxu0 %v5828
  %6134 = vmatpush1.bf16.msra.mxu0 %v5827
  %6135 = vmatprep.subr.bf16.mxu0 %v5830
  %6136 = vmatpush1.bf16.msra.mxu0 %v5829
  %6137 = vmatprep.subr.bf16.mxu0 %v5832
  %6138 = vmatpush1.bf16.msra.mxu0 %v5831
  %6139 = vmatprep.subr.bf16.mxu0 %v5834
  %6140 = vmatpush1.bf16.msra.mxu0 %v5833
  %6141 = vmatprep.subr.bf16.mxu0 %v5836
  %6142 = vmatpush1.bf16.msra.mxu0 %v5835
  %6143 = vmatprep.mubr.bf16.mxu0 %v5149
  %6144 = vmatmul.mubr.bf16.gmra.mrb[0].mxu0 %v5148
  %v6145 = vpop.f32.mrb[0].mxu0
  %v6146 = vadd.f32 %v6105, %v6145
  %v6147 = vpop.f32.mrb[0].mxu0
  %v6148 = vadd.f32 %v6107, %v6147
  %v6149 = vpop.f32.mrb[0].mxu0
  %v6150 = vpop.f32.mrb[0].mxu0
  %6151 = vdwg.mxu0
  %6152 = vmatprep.subr.bf16.mxu0 %v5838
  %6153 = vmatpush1.bf16.msra.mxu0 %v5837
  %6154 = vmatprep.subr.bf16.mxu0 %v5840
  %6155 = vmatpush1.bf16.msra.mxu0 %v5839
  %6156 = vmatprep.subr.bf16.mxu0 %v5842
  %6157 = vmatpush1.bf16.msra.mxu0 %v5841
  %6158 = vmatprep.subr.bf16.mxu0 %v5844
  %6159 = vmatpush1.bf16.msra.mxu0 %v5843
  %6160 = vmatprep.subr.bf16.mxu0 %v5846
  %6161 = vmatpush1.bf16.msra.mxu0 %v5845
  %6162 = vmatprep.subr.bf16.mxu0 %v5848
  %6163 = vmatpush1.bf16.msra.mxu0 %v5847
  %6164 = vmatprep.subr.bf16.mxu0 %v5850
  %6165 = vmatpush1.bf16.msra.mxu0 %v5849
  %6166 = vmatprep.subr.bf16.mxu0 %v5852
  %6167 = vmatpush1.bf16.msra.mxu0 %v5851
  %6168 = vmatprep.subr.bf16.mxu0 %v5854
  %6169 = vmatpush1.bf16.msra.mxu0 %v5853
  %6170 = vmatprep.subr.bf16.mxu0 %v5856
  %6171 = vmatpush1.bf16.msra.mxu0 %v5855
  %6172 = vmatprep.subr.bf16.mxu0 %v5858
  %6173 = vmatpush1.bf16.msra.mxu0 %v5857
  %6174 = vmatprep.subr.bf16.mxu0 %v5860
  %6175 = vmatpush1.bf16.msra.mxu0 %v5859
  %6176 = vmatprep.subr.bf16.mxu0 %v5862
  %6177 = vmatpush1.bf16.msra.mxu0 %v5861
  %6178 = vmatprep.subr.bf16.mxu0 %v5864
  %6179 = vmatpush1.bf16.msra.mxu0 %v5863
  %6180 = vmatprep.subr.bf16.mxu0 %v5866
  %6181 = vmatpush1.bf16.msra.mxu0 %v5865
  %6182 = vmatprep.subr.bf16.mxu0 %v5868
  %6183 = vmatpush1.bf16.msra.mxu0 %v5867
  %6184 = vmatprep.mubr.bf16.mxu0 %v5151
  %6185 = vmatmul.mubr.bf16.gmra.mrb[0].mxu0 %v5150
  %v6186 = vpop.f32.mrb[0].mxu0
  %v6187 = vadd.f32 %v6146, %v6186
  %v6188 = vpop.f32.mrb[0].mxu0
  %v6189 = vadd.f32 %v6148, %v6188
  %v6190 = vpop.f32.mrb[0].mxu0
  %v6191 = vpop.f32.mrb[0].mxu0
  %6192 = vdwg.mxu0
  %6193 = vmatprep.subr.bf16.mxu0 %v5870
  %6194 = vmatpush1.bf16.msra.mxu0 %v5869
  %6195 = vmatprep.subr.bf16.mxu0 %v5872
  %6196 = vmatpush1.bf16.msra.mxu0 %v5871
  %6197 = vmatprep.subr.bf16.mxu0 %v5874
  %6198 = vmatpush1.bf16.msra.mxu0 %v5873
  %6199 = vmatprep.subr.bf16.mxu0 %v5876
  %6200 = vmatpush1.bf16.msra.mxu0 %v5875
  %6201 = vmatprep.subr.bf16.mxu0 %v5878
  %6202 = vmatpush1.bf16.msra.mxu0 %v5877
  %6203 = vmatprep.subr.bf16.mxu0 %v5880
  %6204 = vmatpush1.bf16.msra.mxu0 %v5879
  %6205 = vmatprep.subr.bf16.mxu0 %v5882
  %6206 = vmatpush1.bf16.msra.mxu0 %v5881
  %6207 = vmatprep.subr.bf16.mxu0 %v5884
  %6208 = vmatpush1.bf16.msra.mxu0 %v5883
  %6209 = vmatprep.subr.bf16.mxu0 0
  %6210 = vmatpush1.bf16.msra.mxu0 0
  %6211 = vmatprep.subr.bf16.mxu0 0
  %6212 = vmatpush1.bf16.msra.mxu0 0
  %6213 = vmatprep.subr.bf16.mxu0 0
  %6214 = vmatpush1.bf16.msra.mxu0 0
  %6215 = vmatprep.subr.bf16.mxu0 0
  %6216 = vmatpush1.bf16.msra.mxu0 0
  %6217 = vmatprep.subr.bf16.mxu0 0
  %6218 = vmatpush1.bf16.msra.mxu0 0
  %6219 = vmatprep.subr.bf16.mxu0 0
  %6220 = vmatpush1.bf16.msra.mxu0 0
  %6221 = vmatprep.subr.bf16.mxu0 0
  %6222 = vmatpush1.bf16.msra.mxu0 0
  %6223 = vmatprep.subr.bf16.mxu0 0
  %6224 = vmatpush1.bf16.msra.mxu0 0
  %6225 = vmatprep.mubr.bf16.mxu0 0
  %6226 = vmatmul.mubr.bf16.gmra.mrb[0].mxu0 %v5152
  %v6227 = vpop.f32.mrb[0].mxu0
  %v6228 = vadd.f32 %v6187, %v6227
  %v6229 = vpop.f32.mrb[0].mxu0
  %v6230 = vadd.f32 %v6189, %v6229
  %v6231 = vpop.f32.mrb[0].mxu0
  %v6232 = vpop.f32.mrb[0].mxu0
  %6233 = vdwg.mxu0
  %v6234 = vmax.f32 %v6228, 0.0
  %v6235 = vmax.f32 %v6230, 0.0
  %6236 = vst [vmem:[%s10] sm:$0xff] %v6234
  %6237 = vst [vmem:[%s10 + $0x8] sm:$0xff] %v6235
  // Predicated region
  $region42: #{dqn_base_forward.1} parent=0 // pred_check
    _
  $region43: #{dqn_base_forward.1} parent=0 // pred_check_branch
    %6239 = sbr.rel (0) target = $region45
  $region44: #{dqn_base_forward.1} parent=0 // pred_region
    _
  $region45: #{dqn_base_forward.1} parent=0 // pred_fallthru
    _
  // Predicated region
  $region46: #{dqn_base_forward.1} parent=0 // pred_check
    _
  $region47: #{dqn_base_forward.1} parent=0 // pred_check_branch
    %6241 = sbr.rel (0) target = $region49
  $region48: #{dqn_base_forward.1} parent=0 // pred_region
    _
  $region49: #{dqn_base_forward.1} parent=0 // pred_fallthru
    _

</llo_original>
